<compile_context>
chip_gen: v5e
topology: v5e:2x2
jax: 0.10.0
libtpu: 0.0.40
codegen_flags: <defaults>
</compile_context>

<pallas_src>
import jax
import jax.numpy as jnp
from jax.experimental import pallas as pl
from jax.experimental.pallas import tpu as pltpu

# -------------------- model hyper-parameters --------------------
NUM_LAYERS = 2
D_MODEL = 32
NUM_HEADS = 4
D_FF = 64
INPUT_DIM = 32          # == D_MODEL (required by the torch use_weights accumulation)
NUM_WEIGHTS = 4
N_NODES = 32            # == INPUT_DIM so adjacency.size(1) == x.size(1) in the reference
BATCH = 8               # number of independent graphs processed over the grid
LN_EPS = 1e-5           # torch.nn.LayerNorm default
LANES = 128
HEAD_DIM = D_MODEL // NUM_HEADS

# ---- packed activation slab column offsets: [x | A | G | weights | pad] ----
X_OFF_X = 0
X_OFF_A = INPUT_DIM
X_OFF_G = INPUT_DIM + N_NODES
X_OFF_W = INPUT_DIM + 2 * N_NODES
assert X_OFF_W + NUM_WEIGHTS <= LANES

# ---- packed weight-matrix slab row offsets (all matrices padded to 128 lanes) ----
MAT_WLIN = 0                                # (INPUT_DIM, NUM_WEIGHTS*D_MODEL) fused projections
MAT_QKV = MAT_WLIN + INPUT_DIM              # NUM_LAYERS x (D_MODEL, 3*D_MODEL)
MAT_AO = MAT_QKV + NUM_LAYERS * D_MODEL     # NUM_LAYERS x (D_MODEL, D_MODEL)
MAT_FF1 = MAT_AO + NUM_LAYERS * D_MODEL     # NUM_LAYERS x (D_MODEL, D_FF)
MAT_FF2 = MAT_FF1 + NUM_LAYERS * D_MODEL    # NUM_LAYERS x (D_FF, D_MODEL)
MAT_OUT = MAT_FF2 + NUM_LAYERS * D_FF       # (D_MODEL, INPUT_DIM)
MAT_ROWS = MAT_OUT + D_MODEL                # = 384
assert NUM_WEIGHTS * D_MODEL <= LANES and 3 * D_MODEL <= LANES

# ---- packed bias / LayerNorm vector slab rows (one vector per row) ----
VEC_WLIN_B = 0          # NUM_WEIGHTS*D_MODEL biases packed lane-wise
VEC_LN0_W = 1
VEC_LN0_B = 2
VEC_LAYER = 3           # 8 rows per layer: qkv_b, ao_b, ff1_b, ff2_b, n1_w, n1_b, n2_w, n2_b
VEC_OUT_B = VEC_LAYER + 8 * NUM_LAYERS      # = 19
VEC_ROWS = ((VEC_OUT_B + 1 + 7) // 8) * 8   # pad to sublane multiple -> 24


def _layernorm(v, w, b, eps=LN_EPS):
    mu = jnp.mean(v, axis=-1, keepdims=True)
    var = jnp.mean((v - mu) ** 2, axis=-1, keepdims=True)
    return (v - mu) * jax.lax.rsqrt(var + eps) * w + b


def graph_transformer_kernel(inp_ref, mat_ref, vec_ref, o_ref):
    f32 = jnp.float32
    blk = inp_ref[0]                                    # (N_NODES, 128) packed activations
    x = blk[:, X_OFF_X:X_OFF_X + INPUT_DIM]             # (N, Din)
    wts = blk[:, X_OFF_W:X_OFF_W + NUM_WEIGHTS]         # (N, NW)

    # ---- weighted input projections: all NUM_WEIGHTS linears in ONE lane-dense matmul ----
    proj = jnp.dot(x, mat_ref[MAT_WLIN:MAT_WLIN + INPUT_DIM, :NUM_WEIGHTS * D_MODEL],
                   preferred_element_type=f32)
    proj = proj + vec_ref[VEC_WLIN_B:VEC_WLIN_B + 1, :NUM_WEIGHTS * D_MODEL]
    h = proj[:, 0:D_MODEL] * wts[:, 0:1]
    for i in range(1, NUM_WEIGHTS):
        h = h + proj[:, i * D_MODEL:(i + 1) * D_MODEL] * wts[:, i:i + 1]

    # ---- outer LayerNorm ----
    h = _layernorm(h, vec_ref[VEC_LN0_W:VEC_LN0_W + 1, :D_MODEL],
                   vec_ref[VEC_LN0_B:VEC_LN0_B + 1, :D_MODEL])

    # ---- post-norm Transformer encoder layers (relu FFN; eval-mode dropout = identity) ----
    scale = 1.0 / (HEAD_DIM ** 0.5)
    for l in range(NUM_LAYERS):
        vb = VEC_LAYER + 8 * l

        # multi-head self-attention: single QKV matmul, heads batched into one einsum pair
        rq = MAT_QKV + l * D_MODEL
        qkv = jnp.dot(h, mat_ref[rq:rq + D_MODEL, :3 * D_MODEL], preferred_element_type=f32)
        qkv = qkv + vec_ref[vb:vb + 1, :3 * D_MODEL]
        q = qkv[:, 0:D_MODEL]
        k = qkv[:, D_MODEL:2 * D_MODEL]
        v = qkv[:, 2 * D_MODEL:3 * D_MODEL]
        q3 = jnp.stack([q[:, i * HEAD_DIM:(i + 1) * HEAD_DIM] for i in range(NUM_HEADS)], axis=0)
        k3 = jnp.stack([k[:, i * HEAD_DIM:(i + 1) * HEAD_DIM] for i in range(NUM_HEADS)], axis=0)
        v3 = jnp.stack([v[:, i * HEAD_DIM:(i + 1) * HEAD_DIM] for i in range(NUM_HEADS)], axis=0)
        s = jnp.einsum("hqd,hkd->hqk", q3, k3, preferred_element_type=f32) * scale
        s = s - jnp.max(s, axis=-1, keepdims=True)      # one fused softmax over all heads
        p = jnp.exp(s)
        # exact divide (not pl.reciprocal(approx=True)) to preserve f32 fidelity to torch
        p = p / jnp.sum(p, axis=-1, keepdims=True)
        a3 = jnp.einsum("hqk,hkd->hqd", p, v3, preferred_element_type=f32)
        attn = jnp.concatenate([a3[i] for i in range(NUM_HEADS)], axis=-1)

        ra = MAT_AO + l * D_MODEL
        attn = jnp.dot(attn, mat_ref[ra:ra + D_MODEL, :D_MODEL], preferred_element_type=f32)
        attn = attn + vec_ref[vb + 1:vb + 2, :D_MODEL]
        h = _layernorm(h + attn, vec_ref[vb + 4:vb + 5, :D_MODEL],
                       vec_ref[vb + 5:vb + 6, :D_MODEL])

        # feed-forward
        r1 = MAT_FF1 + l * D_MODEL
        ff = jnp.dot(h, mat_ref[r1:r1 + D_MODEL, :D_FF], preferred_element_type=f32)
        ff = jnp.maximum(ff + vec_ref[vb + 2:vb + 3, :D_FF], 0.0)
        r2 = MAT_FF2 + l * D_FF
        ff = jnp.dot(ff, mat_ref[r2:r2 + D_FF, :D_MODEL], preferred_element_type=f32)
        ff = ff + vec_ref[vb + 3:vb + 4, :D_MODEL]
        h = _layernorm(h + ff, vec_ref[vb + 6:vb + 7, :D_MODEL],
                       vec_ref[vb + 7:vb + 8, :D_MODEL])

    # ---- output projection ----
    y = jnp.dot(h, mat_ref[MAT_OUT:MAT_OUT + D_MODEL, :INPUT_DIM], preferred_element_type=f32)
    y = y + vec_ref[VEC_OUT_B:VEC_OUT_B + 1, :INPUT_DIM]
    # TODO(synk): Dropout layers are identity here (eval-mode semantics; stochastic
    #             training-mode dropout is intentionally not emulated).

    # ---- DNG graph scores (computed last to keep A/G live ranges short) ----
    A = blk[:, X_OFF_A:X_OFF_A + N_NODES]
    G = blk[:, X_OFF_G:X_OFF_G + N_NODES]
    direct = jnp.dot(A, x, preferred_element_type=f32)
    inter = jnp.dot(A, A, preferred_element_type=f32)
    row_sums = jnp.sum(A, axis=1, keepdims=True)
    col_sums = jnp.sum(A, axis=0, keepdims=True)
    union = row_sums + col_sums - inter
    sim = inter / (union + 1e-6)          # mirrors the torch reference formula exactly
    neigh = jnp.dot(sim, x, preferred_element_type=f32)
    gss = jnp.dot(G, x, preferred_element_type=f32)
    dng = direct + neigh + gss

    o_ref[0] = jnp.maximum(y + dng, 0.0)


# -------------------- host-side packing --------------------
def pack_inputs(x, adjacency_matrix, graph_metrics, weights):
    f32 = jnp.float32
    b = x.shape[0]
    pad = jnp.zeros((b, N_NODES, LANES - (X_OFF_W + NUM_WEIGHTS)), f32)
    return jnp.concatenate(
        [x.astype(f32), adjacency_matrix.astype(f32), graph_metrics.astype(f32),
         weights.astype(f32), pad], axis=-1)


def pack_params(params):
    (wlin_w, wlin_b, ln0_w, ln0_b, qkv_w, qkv_b, ao_w, ao_b,
     ff1_w, ff1_b, ff2_w, ff2_b, n1_w, n1_b, n2_w, n2_b, out_w, out_b) = params
    f32 = jnp.float32

    def padc(m):  # (r, c) -> (r, 128)
        m = m.astype(f32)
        return jnp.pad(m, ((0, 0), (0, LANES - m.shape[1])))

    wlin_packed = jnp.transpose(wlin_w, (1, 0, 2)).reshape(INPUT_DIM, NUM_WEIGHTS * D_MODEL)
    mat_rows = [padc(wlin_packed)]
    mat_rows += [padc(qkv_w[l]) for l in range(NUM_LAYERS)]
    mat_rows += [padc(ao_w[l]) for l in range(NUM_LAYERS)]
    mat_rows += [padc(ff1_w[l]) for l in range(NUM_LAYERS)]
    mat_rows += [padc(ff2_w[l]) for l in range(NUM_LAYERS)]
    mat_rows += [padc(out_w)]
    mat = jnp.concatenate(mat_rows, axis=0)             # (MAT_ROWS, 128)

    def vrow(v):  # (c,) -> (1, 128)
        v = v.astype(f32).reshape(-1)
        return jnp.pad(v, (0, LANES - v.shape[0]))[None, :]

    vec_rows = [vrow(wlin_b), vrow(ln0_w), vrow(ln0_b)]
    for l in range(NUM_LAYERS):
        vec_rows += [vrow(qkv_b[l]), vrow(ao_b[l]), vrow(ff1_b[l]), vrow(ff2_b[l]),
                     vrow(n1_w[l]), vrow(n1_b[l]), vrow(n2_w[l]), vrow(n2_b[l])]
    vec_rows += [vrow(out_b)]
    vec = jnp.concatenate(vec_rows, axis=0)
    vec = jnp.pad(vec, ((0, VEC_ROWS - vec.shape[0]), (0, 0)))   # (VEC_ROWS, 128)
    return mat, vec


def graph_transformer_v2(x, adjacency_matrix, graph_metrics, weights, params):
    squeeze = x.ndim == 2
    if squeeze:
        x, adjacency_matrix, graph_metrics, weights = (
            a[None] for a in (x, adjacency_matrix, graph_metrics, weights))
    b = x.shape[0]
    inp = pack_inputs(x, adjacency_matrix, graph_metrics, weights)
    mat, vec = pack_params(params)

    grid_spec = pltpu.PrefetchScalarGridSpec(
        num_scalar_prefetch=0,
        grid=(b,),
        in_specs=[
            pl.BlockSpec((1, N_NODES, LANES), lambda g: (g, 0, 0)),       # per-graph activations
            pl.BlockSpec((MAT_ROWS, LANES), lambda g: (0, 0)),            # weights: VMEM-resident
            pl.BlockSpec((VEC_ROWS, LANES), lambda g: (0, 0)),            # biases:  VMEM-resident
        ],
        out_specs=pl.BlockSpec((1, N_NODES, INPUT_DIM), lambda g: (g, 0, 0)),
    )
    out = pl.pallas_call(
        graph_transformer_kernel,
        out_shape=jax.ShapeDtypeStruct((b, N_NODES, INPUT_DIM), jnp.float32),
        grid_spec=grid_spec,
        compiler_params=pltpu.CompilerParams(
            dimension_semantics=("parallel",)),   # batch axis splits across TCs on v7x
    )(inp, mat, vec)
    return out[0] if squeeze else out


def init_params(key):
    keys = iter(jax.random.split(key, 32))

    def nrm(shape, scale=0.05):
        return jax.random.normal(next(keys), shape, jnp.float32) * scale

    wlin_w = nrm((NUM_WEIGHTS, INPUT_DIM, D_MODEL))
    wlin_b = nrm((NUM_WEIGHTS, D_MODEL))
    ln0_w = jnp.ones((D_MODEL,), jnp.float32)
    ln0_b = jnp.zeros((D_MODEL,), jnp.float32)
    qkv_w = nrm((NUM_LAYERS, D_MODEL, 3 * D_MODEL))
    qkv_b = nrm((NUM_LAYERS, 3 * D_MODEL))
    ao_w = nrm((NUM_LAYERS, D_MODEL, D_MODEL))
    ao_b = nrm((NUM_LAYERS, D_MODEL))
    ff1_w = nrm((NUM_LAYERS, D_MODEL, D_FF))
    ff1_b = nrm((NUM_LAYERS, D_FF))
    ff2_w = nrm((NUM_LAYERS, D_FF, D_MODEL))
    ff2_b = nrm((NUM_LAYERS, D_MODEL))
    n1_w = jnp.ones((NUM_LAYERS, D_MODEL), jnp.float32)
    n1_b = jnp.zeros((NUM_LAYERS, D_MODEL), jnp.float32)
    n2_w = jnp.ones((NUM_LAYERS, D_MODEL), jnp.float32)
    n2_b = jnp.zeros((NUM_LAYERS, D_MODEL), jnp.float32)
    out_w = nrm((D_MODEL, INPUT_DIM))
    out_b = nrm((INPUT_DIM,))
    return (wlin_w, wlin_b, ln0_w, ln0_b, qkv_w, qkv_b, ao_w, ao_b,
            ff1_w, ff1_b, ff2_w, ff2_b, n1_w, n1_b, n2_w, n2_b, out_w, out_b)


if __name__ == "__main__":
    key = jax.random.PRNGKey(0)
    k_x, k_adj, k_gm, k_wts, k_par = jax.random.split(key, 5)

    x = jax.random.normal(k_x, (BATCH, N_NODES, INPUT_DIM), jnp.float32)
    adjacency_matrix = jax.random.bernoulli(
        k_adj, 0.3, (BATCH, N_NODES, N_NODES)).astype(jnp.float32)
    graph_metrics = jax.random.normal(k_gm, (BATCH, N_NODES, N_NODES), jnp.float32) * 0.1
    weights = jax.random.uniform(k_wts, (BATCH, N_NODES, NUM_WEIGHTS), jnp.float32)

    params = init_params(k_par)

    fwd = jax.jit(graph_transformer_v2)
    out = jax.block_until_ready(fwd(x, adjacency_matrix, graph_metrics, weights, params))
    assert out.shape == (BATCH, N_NODES, INPUT_DIM)
    assert bool(jnp.all(jnp.isfinite(out)))
    print("KERNEL_OK")
</pallas_src>

<mosaic_0001>
module attributes {stable_mosaic.version = 11 : i64} {
  func.func @graph_transformer_kernel(%arg0: i32, %arg1: memref<1x32x128xf32, #tpu.memory_space<vmem>>, %arg2: memref<384x128xf32, #tpu.memory_space<vmem>>, %arg3: memref<24x128xf32, #tpu.memory_space<vmem>>, %arg4: memref<1x32x32xf32, #tpu.memory_space<vmem>>) attributes {dimension_semantics = [#tpu.dimension_semantics<parallel>], iteration_bounds = array<i64: 8>, scalar_prefetch = 0 : i64, scratch_operands = 0 : i64, tpu.core_type = #tpu.core_type<tc>, window_params = [{transform_indices = @transform_0, window_bounds = array<i64: 1, 32, 128>}, {pipeline_mode = #tpu.pipeline_mode<synchronous>, transform_indices = @transform_1, window_bounds = array<i64: 384, 128>}, {pipeline_mode = #tpu.pipeline_mode<synchronous>, transform_indices = @transform_2, window_bounds = array<i64: 24, 128>}, {transform_indices = @transform_3, window_bounds = array<i64: 1, 32, 32>}]} {
    %c0 = arith.constant 0 : index
    %c0_0 = arith.constant 0 : index
    %c0_1 = arith.constant 0 : index
    %0 = vector.load %arg1[%c0, %c0_0, %c0_1] : memref<1x32x128xf32, #tpu.memory_space<vmem>>, vector<1x32x128xf32>
    %1 = vector.shape_cast %0 : vector<1x32x128xf32> to vector<32x128xf32>
    %2 = vector.extract_strided_slice %1 {offsets = [0, 0], sizes = [32, 32], strides = [1, 1]} : vector<32x128xf32> to vector<32x32xf32>
    %3 = vector.extract_strided_slice %1 {offsets = [0, 96], sizes = [32, 4], strides = [1, 1]} : vector<32x128xf32> to vector<32x4xf32>
    %c0_2 = arith.constant 0 : index
    %c0_3 = arith.constant 0 : index
    %4 = vector.load %arg2[%c0_2, %c0_3] : memref<384x128xf32, #tpu.memory_space<vmem>>, vector<32x128xf32>
    %cst = arith.constant dense<0.000000e+00> : vector<32x128xf32>
    %5 = tpu.matmul %2, %4, %cst {dimension_numbers = #tpu.dot_dimension_numbers<[1], [0], [0], [1], [0, 0, 1, 1], [], []>} : vector<32x32xf32>, vector<32x128xf32>, vector<32x128xf32> -> vector<32x128xf32>
    %c0_4 = arith.constant 0 : index
    %c0_5 = arith.constant 0 : index
    %6 = vector.load %arg3[%c0_4, %c0_5] : memref<24x128xf32, #tpu.memory_space<vmem>>, vector<1x128xf32>
    %7 = vector.broadcast %6 : vector<1x128xf32> to vector<32x128xf32>
    %8 = arith.addf %5, %7 : vector<32x128xf32>
    %9 = vector.extract_strided_slice %8 {offsets = [0, 0], sizes = [32, 32], strides = [1, 1]} : vector<32x128xf32> to vector<32x32xf32>
    %10 = vector.extract_strided_slice %3 {offsets = [0, 0], sizes = [32, 1], strides = [1, 1]} : vector<32x4xf32> to vector<32x1xf32>
    %11 = vector.broadcast %10 : vector<32x1xf32> to vector<32x32xf32>
    %12 = arith.mulf %9, %11 : vector<32x32xf32>
    %13 = vector.extract_strided_slice %8 {offsets = [0, 32], sizes = [32, 32], strides = [1, 1]} : vector<32x128xf32> to vector<32x32xf32>
    %14 = vector.extract_strided_slice %3 {offsets = [0, 1], sizes = [32, 1], strides = [1, 1]} : vector<32x4xf32> to vector<32x1xf32>
    %15 = vector.broadcast %14 : vector<32x1xf32> to vector<32x32xf32>
    %16 = arith.mulf %13, %15 : vector<32x32xf32>
    %17 = arith.addf %12, %16 : vector<32x32xf32>
    %18 = vector.extract_strided_slice %8 {offsets = [0, 64], sizes = [32, 32], strides = [1, 1]} : vector<32x128xf32> to vector<32x32xf32>
    %19 = vector.extract_strided_slice %3 {offsets = [0, 2], sizes = [32, 1], strides = [1, 1]} : vector<32x4xf32> to vector<32x1xf32>
    %20 = vector.broadcast %19 : vector<32x1xf32> to vector<32x32xf32>
    %21 = arith.mulf %18, %20 : vector<32x32xf32>
    %22 = arith.addf %17, %21 : vector<32x32xf32>
    %23 = vector.extract_strided_slice %8 {offsets = [0, 96], sizes = [32, 32], strides = [1, 1]} : vector<32x128xf32> to vector<32x32xf32>
    %24 = vector.extract_strided_slice %3 {offsets = [0, 3], sizes = [32, 1], strides = [1, 1]} : vector<32x4xf32> to vector<32x1xf32>
    %25 = vector.broadcast %24 : vector<32x1xf32> to vector<32x32xf32>
    %26 = arith.mulf %23, %25 : vector<32x32xf32>
    %27 = arith.addf %22, %26 : vector<32x32xf32>
    %c1 = arith.constant 1 : index
    %c0_6 = arith.constant 0 : index
    %28 = vector.load %arg3[%c1, %c0_6] : memref<24x128xf32, #tpu.memory_space<vmem>>, vector<1x32xf32>
    %c2 = arith.constant 2 : index
    %c0_7 = arith.constant 0 : index
    %29 = vector.load %arg3[%c2, %c0_7] : memref<24x128xf32, #tpu.memory_space<vmem>>, vector<1x32xf32>
    %cst_8 = arith.constant dense<0.000000e+00> : vector<32xf32>
    %30 = vector.multi_reduction <add>, %27, %cst_8 [1] : vector<32x32xf32> to vector<32xf32>
    %31 = vector.shape_cast %30 : vector<32xf32> to vector<32x1xf32>
    %cst_9 = arith.constant 3.200000e+01 : f32
    %32 = vector.broadcast %cst_9 : f32 to vector<32x1xf32>
    %33 = arith.divf %31, %32 : vector<32x1xf32>
    %34 = vector.broadcast %33 : vector<32x1xf32> to vector<32x32xf32>
    %35 = arith.subf %27, %34 : vector<32x32xf32>
    %36 = arith.mulf %35, %35 : vector<32x32xf32>
    %cst_10 = arith.constant dense<0.000000e+00> : vector<32xf32>
    %37 = vector.multi_reduction <add>, %36, %cst_10 [1] : vector<32x32xf32> to vector<32xf32>
    %38 = vector.shape_cast %37 : vector<32xf32> to vector<32x1xf32>
    %cst_11 = arith.constant 3.200000e+01 : f32
    %39 = vector.broadcast %cst_11 : f32 to vector<32x1xf32>
    %40 = arith.divf %38, %39 : vector<32x1xf32>
    %41 = vector.broadcast %33 : vector<32x1xf32> to vector<32x32xf32>
    %42 = arith.subf %27, %41 : vector<32x32xf32>
    %cst_12 = arith.constant 9.99999974E-6 : f32
    %43 = vector.broadcast %cst_12 : f32 to vector<32x1xf32>
    %44 = arith.addf %40, %43 : vector<32x1xf32>
    %45 = math.rsqrt %44 : vector<32x1xf32>
    %46 = vector.broadcast %45 : vector<32x1xf32> to vector<32x32xf32>
    %47 = arith.mulf %42, %46 : vector<32x32xf32>
    %48 = vector.broadcast %28 : vector<1x32xf32> to vector<32x32xf32>
    %49 = arith.mulf %47, %48 : vector<32x32xf32>
    %50 = vector.broadcast %29 : vector<1x32xf32> to vector<32x32xf32>
    %51 = arith.addf %49, %50 : vector<32x32xf32>
    %c32 = arith.constant 32 : index
    %c0_13 = arith.constant 0 : index
    %52 = vector.load %arg2[%c32, %c0_13] : memref<384x128xf32, #tpu.memory_space<vmem>>, vector<32x96xf32>
    %cst_14 = arith.constant dense<0.000000e+00> : vector<32x96xf32>
    %53 = tpu.matmul %51, %52, %cst_14 {dimension_numbers = #tpu.dot_dimension_numbers<[1], [0], [0], [1], [0, 0, 1, 1], [], []>} : vector<32x32xf32>, vector<32x96xf32>, vector<32x96xf32> -> vector<32x96xf32>
    %c3 = arith.constant 3 : index
    %c0_15 = arith.constant 0 : index
    %54 = vector.load %arg3[%c3, %c0_15] : memref<24x128xf32, #tpu.memory_space<vmem>>, vector<1x96xf32>
    %55 = vector.broadcast %54 : vector<1x96xf32> to vector<32x96xf32>
    %56 = arith.addf %53, %55 : vector<32x96xf32>
    %57 = vector.extract_strided_slice %56 {offsets = [0, 0], sizes = [32, 32], strides = [1, 1]} : vector<32x96xf32> to vector<32x32xf32>
    %58 = vector.extract_strided_slice %56 {offsets = [0, 32], sizes = [32, 32], strides = [1, 1]} : vector<32x96xf32> to vector<32x32xf32>
    %59 = vector.extract_strided_slice %56 {offsets = [0, 64], sizes = [32, 32], strides = [1, 1]} : vector<32x96xf32> to vector<32x32xf32>
    %60 = vector.extract_strided_slice %57 {offsets = [0, 0], sizes = [32, 8], strides = [1, 1]} : vector<32x32xf32> to vector<32x8xf32>
    %61 = vector.extract_strided_slice %57 {offsets = [0, 8], sizes = [32, 8], strides = [1, 1]} : vector<32x32xf32> to vector<32x8xf32>
    %62 = vector.extract_strided_slice %57 {offsets = [0, 16], sizes = [32, 8], strides = [1, 1]} : vector<32x32xf32> to vector<32x8xf32>
    %63 = vector.extract_strided_slice %57 {offsets = [0, 24], sizes = [32, 8], strides = [1, 1]} : vector<32x32xf32> to vector<32x8xf32>
    %64 = vector.shape_cast %60 : vector<32x8xf32> to vector<1x32x8xf32>
    %65 = vector.shape_cast %61 : vector<32x8xf32> to vector<1x32x8xf32>
    %66 = vector.shape_cast %62 : vector<32x8xf32> to vector<1x32x8xf32>
    %67 = vector.shape_cast %63 : vector<32x8xf32> to vector<1x32x8xf32>
    %68 = tpu.concatenate %64, %65, %66, %67 in 0 : vector<1x32x8xf32>, vector<1x32x8xf32>, vector<1x32x8xf32>, vector<1x32x8xf32> -> vector<4x32x8xf32>
    %69 = vector.extract_strided_slice %58 {offsets = [0, 0], sizes = [32, 8], strides = [1, 1]} : vector<32x32xf32> to vector<32x8xf32>
    %70 = vector.extract_strided_slice %58 {offsets = [0, 8], sizes = [32, 8], strides = [1, 1]} : vector<32x32xf32> to vector<32x8xf32>
    %71 = vector.extract_strided_slice %58 {offsets = [0, 16], sizes = [32, 8], strides = [1, 1]} : vector<32x32xf32> to vector<32x8xf32>
    %72 = vector.extract_strided_slice %58 {offsets = [0, 24], sizes = [32, 8], strides = [1, 1]} : vector<32x32xf32> to vector<32x8xf32>
    %73 = vector.shape_cast %69 : vector<32x8xf32> to vector<1x32x8xf32>
    %74 = vector.shape_cast %70 : vector<32x8xf32> to vector<1x32x8xf32>
    %75 = vector.shape_cast %71 : vector<32x8xf32> to vector<1x32x8xf32>
    %76 = vector.shape_cast %72 : vector<32x8xf32> to vector<1x32x8xf32>
    %77 = tpu.concatenate %73, %74, %75, %76 in 0 : vector<1x32x8xf32>, vector<1x32x8xf32>, vector<1x32x8xf32>, vector<1x32x8xf32> -> vector<4x32x8xf32>
    %78 = vector.extract_strided_slice %59 {offsets = [0, 0], sizes = [32, 8], strides = [1, 1]} : vector<32x32xf32> to vector<32x8xf32>
    %79 = vector.extract_strided_slice %59 {offsets = [0, 8], sizes = [32, 8], strides = [1, 1]} : vector<32x32xf32> to vector<32x8xf32>
    %80 = vector.extract_strided_slice %59 {offsets = [0, 16], sizes = [32, 8], strides = [1, 1]} : vector<32x32xf32> to vector<32x8xf32>
    %81 = vector.extract_strided_slice %59 {offsets = [0, 24], sizes = [32, 8], strides = [1, 1]} : vector<32x32xf32> to vector<32x8xf32>
    %82 = vector.shape_cast %78 : vector<32x8xf32> to vector<1x32x8xf32>
    %83 = vector.shape_cast %79 : vector<32x8xf32> to vector<1x32x8xf32>
    %84 = vector.shape_cast %80 : vector<32x8xf32> to vector<1x32x8xf32>
    %85 = vector.shape_cast %81 : vector<32x8xf32> to vector<1x32x8xf32>
    %86 = tpu.concatenate %82, %83, %84, %85 in 0 : vector<1x32x8xf32>, vector<1x32x8xf32>, vector<1x32x8xf32>, vector<1x32x8xf32> -> vector<4x32x8xf32>
    "tpu.trace_start"() <{level = 10 : i32, message = "hqd,hkd->hqk"}> : () -> ()
    %cst_16 = arith.constant dense<0.000000e+00> : vector<4x32x32xf32>
    %87 = tpu.matmul %68, %77, %cst_16 {dimension_numbers = #tpu.dot_dimension_numbers<[2], [2], [1], [1], [0, 0, 0, 1, 1, 1], [0], [0]>} : vector<4x32x8xf32>, vector<4x32x8xf32>, vector<4x32x32xf32> -> vector<4x32x32xf32>
    "tpu.trace_stop"() : () -> ()
    %cst_17 = arith.constant 0.353553385 : f32
    %88 = vector.broadcast %cst_17 : f32 to vector<4x32x32xf32>
    %89 = arith.mulf %87, %88 : vector<4x32x32xf32>
    %cst_18 = arith.constant dense<0xFF800000> : vector<4x32xf32>
    %90 = vector.multi_reduction <maximumf>, %89, %cst_18 [2] : vector<4x32x32xf32> to vector<4x32xf32>
    %91 = vector.shape_cast %90 : vector<4x32xf32> to vector<4x32x1xf32>
    %92 = vector.broadcast %91 : vector<4x32x1xf32> to vector<4x32x32xf32>
    %93 = arith.subf %89, %92 : vector<4x32x32xf32>
    %94 = math.exp %93 : vector<4x32x32xf32>
    %cst_19 = arith.constant dense<0.000000e+00> : vector<4x32xf32>
    %95 = vector.multi_reduction <add>, %94, %cst_19 [2] : vector<4x32x32xf32> to vector<4x32xf32>
    %96 = vector.shape_cast %95 : vector<4x32xf32> to vector<4x32x1xf32>
    %97 = vector.broadcast %96 : vector<4x32x1xf32> to vector<4x32x32xf32>
    %98 = arith.divf %94, %97 : vector<4x32x32xf32>
    "tpu.trace_start"() <{level = 10 : i32, message = "hqk,hkd->hqd"}> : () -> ()
    %cst_20 = arith.constant dense<0.000000e+00> : vector<4x32x8xf32>
    %99 = tpu.matmul %98, %86, %cst_20 {dimension_numbers = #tpu.dot_dimension_numbers<[2], [1], [1], [2], [0, 0, 0, 1, 1, 2], [0], [0]>} : vector<4x32x32xf32>, vector<4x32x8xf32>, vector<4x32x8xf32> -> vector<4x32x8xf32>
    "tpu.trace_stop"() : () -> ()
    %100 = vector.extract_strided_slice %99 {offsets = [0, 0, 0], sizes = [1, 32, 8], strides = [1, 1, 1]} : vector<4x32x8xf32> to vector<1x32x8xf32>
    %101 = vector.shape_cast %100 : vector<1x32x8xf32> to vector<32x8xf32>
    %102 = vector.extract_strided_slice %99 {offsets = [1, 0, 0], sizes = [1, 32, 8], strides = [1, 1, 1]} : vector<4x32x8xf32> to vector<1x32x8xf32>
    %103 = vector.shape_cast %102 : vector<1x32x8xf32> to vector<32x8xf32>
    %104 = vector.extract_strided_slice %99 {offsets = [2, 0, 0], sizes = [1, 32, 8], strides = [1, 1, 1]} : vector<4x32x8xf32> to vector<1x32x8xf32>
    %105 = vector.shape_cast %104 : vector<1x32x8xf32> to vector<32x8xf32>
    %106 = vector.extract_strided_slice %99 {offsets = [3, 0, 0], sizes = [1, 32, 8], strides = [1, 1, 1]} : vector<4x32x8xf32> to vector<1x32x8xf32>
    %107 = vector.shape_cast %106 : vector<1x32x8xf32> to vector<32x8xf32>
    %108 = tpu.concatenate %101, %103, %105, %107 in 1 : vector<32x8xf32>, vector<32x8xf32>, vector<32x8xf32>, vector<32x8xf32> -> vector<32x32xf32>
    %c96 = arith.constant 96 : index
    %c0_21 = arith.constant 0 : index
    %109 = vector.load %arg2[%c96, %c0_21] : memref<384x128xf32, #tpu.memory_space<vmem>>, vector<32x32xf32>
    %cst_22 = arith.constant dense<0.000000e+00> : vector<32x32xf32>
    %110 = tpu.matmul %108, %109, %cst_22 {dimension_numbers = #tpu.dot_dimension_numbers<[1], [0], [0], [1], [0, 0, 1, 1], [], []>} : vector<32x32xf32>, vector<32x32xf32>, vector<32x32xf32> -> vector<32x32xf32>
    %c4 = arith.constant 4 : index
    %c0_23 = arith.constant 0 : index
    %111 = vector.load %arg3[%c4, %c0_23] : memref<24x128xf32, #tpu.memory_space<vmem>>, vector<1x32xf32>
    %112 = vector.broadcast %111 : vector<1x32xf32> to vector<32x32xf32>
    %113 = arith.addf %110, %112 : vector<32x32xf32>
    %114 = arith.addf %51, %113 : vector<32x32xf32>
    %c7 = arith.constant 7 : index
    %c0_24 = arith.constant 0 : index
    %115 = vector.load %arg3[%c7, %c0_24] : memref<24x128xf32, #tpu.memory_space<vmem>>, vector<1x32xf32>
    %c8 = arith.constant 8 : index
    %c0_25 = arith.constant 0 : index
    %116 = vector.load %arg3[%c8, %c0_25] : memref<24x128xf32, #tpu.memory_space<vmem>>, vector<1x32xf32>
    %cst_26 = arith.constant dense<0.000000e+00> : vector<32xf32>
    %117 = vector.multi_reduction <add>, %114, %cst_26 [1] : vector<32x32xf32> to vector<32xf32>
    %118 = vector.shape_cast %117 : vector<32xf32> to vector<32x1xf32>
    %cst_27 = arith.constant 3.200000e+01 : f32
    %119 = vector.broadcast %cst_27 : f32 to vector<32x1xf32>
    %120 = arith.divf %118, %119 : vector<32x1xf32>
    %121 = vector.broadcast %120 : vector<32x1xf32> to vector<32x32xf32>
    %122 = arith.subf %114, %121 : vector<32x32xf32>
    %123 = arith.mulf %122, %122 : vector<32x32xf32>
    %cst_28 = arith.constant dense<0.000000e+00> : vector<32xf32>
    %124 = vector.multi_reduction <add>, %123, %cst_28 [1] : vector<32x32xf32> to vector<32xf32>
    %125 = vector.shape_cast %124 : vector<32xf32> to vector<32x1xf32>
    %cst_29 = arith.constant 3.200000e+01 : f32
    %126 = vector.broadcast %cst_29 : f32 to vector<32x1xf32>
    %127 = arith.divf %125, %126 : vector<32x1xf32>
    %128 = vector.broadcast %120 : vector<32x1xf32> to vector<32x32xf32>
    %129 = arith.subf %114, %128 : vector<32x32xf32>
    %cst_30 = arith.constant 9.99999974E-6 : f32
    %130 = vector.broadcast %cst_30 : f32 to vector<32x1xf32>
    %131 = arith.addf %127, %130 : vector<32x1xf32>
    %132 = math.rsqrt %131 : vector<32x1xf32>
    %133 = vector.broadcast %132 : vector<32x1xf32> to vector<32x32xf32>
    %134 = arith.mulf %129, %133 : vector<32x32xf32>
    %135 = vector.broadcast %115 : vector<1x32xf32> to vector<32x32xf32>
    %136 = arith.mulf %134, %135 : vector<32x32xf32>
    %137 = vector.broadcast %116 : vector<1x32xf32> to vector<32x32xf32>
    %138 = arith.addf %136, %137 : vector<32x32xf32>
    %c160 = arith.constant 160 : index
    %c0_31 = arith.constant 0 : index
    %139 = vector.load %arg2[%c160, %c0_31] : memref<384x128xf32, #tpu.memory_space<vmem>>, vector<32x64xf32>
    %cst_32 = arith.constant dense<0.000000e+00> : vector<32x64xf32>
    %140 = tpu.matmul %138, %139, %cst_32 {dimension_numbers = #tpu.dot_dimension_numbers<[1], [0], [0], [1], [0, 0, 1, 1], [], []>} : vector<32x32xf32>, vector<32x64xf32>, vector<32x64xf32> -> vector<32x64xf32>
    %c5 = arith.constant 5 : index
    %c0_33 = arith.constant 0 : index
    %141 = vector.load %arg3[%c5, %c0_33] : memref<24x128xf32, #tpu.memory_space<vmem>>, vector<1x64xf32>
    %142 = vector.broadcast %141 : vector<1x64xf32> to vector<32x64xf32>
    %143 = arith.addf %140, %142 : vector<32x64xf32>
    %cst_34 = arith.constant 0.000000e+00 : f32
    %144 = vector.broadcast %cst_34 : f32 to vector<32x64xf32>
    %145 = arith.maximumf %143, %144 : vector<32x64xf32>
    %c224 = arith.constant 224 : index
    %c0_35 = arith.constant 0 : index
    %146 = vector.load %arg2[%c224, %c0_35] : memref<384x128xf32, #tpu.memory_space<vmem>>, vector<64x32xf32>
    %cst_36 = arith.constant dense<0.000000e+00> : vector<32x32xf32>
    %147 = tpu.matmul %145, %146, %cst_36 {dimension_numbers = #tpu.dot_dimension_numbers<[1], [0], [0], [1], [0, 0, 1, 1], [], []>} : vector<32x64xf32>, vector<64x32xf32>, vector<32x32xf32> -> vector<32x32xf32>
    %c6 = arith.constant 6 : index
    %c0_37 = arith.constant 0 : index
    %148 = vector.load %arg3[%c6, %c0_37] : memref<24x128xf32, #tpu.memory_space<vmem>>, vector<1x32xf32>
    %149 = vector.broadcast %148 : vector<1x32xf32> to vector<32x32xf32>
    %150 = arith.addf %147, %149 : vector<32x32xf32>
    %151 = arith.addf %138, %150 : vector<32x32xf32>
    %c9 = arith.constant 9 : index
    %c0_38 = arith.constant 0 : index
    %152 = vector.load %arg3[%c9, %c0_38] : memref<24x128xf32, #tpu.memory_space<vmem>>, vector<1x32xf32>
    %c10 = arith.constant 10 : index
    %c0_39 = arith.constant 0 : index
    %153 = vector.load %arg3[%c10, %c0_39] : memref<24x128xf32, #tpu.memory_space<vmem>>, vector<1x32xf32>
    %cst_40 = arith.constant dense<0.000000e+00> : vector<32xf32>
    %154 = vector.multi_reduction <add>, %151, %cst_40 [1] : vector<32x32xf32> to vector<32xf32>
    %155 = vector.shape_cast %154 : vector<32xf32> to vector<32x1xf32>
    %cst_41 = arith.constant 3.200000e+01 : f32
    %156 = vector.broadcast %cst_41 : f32 to vector<32x1xf32>
    %157 = arith.divf %155, %156 : vector<32x1xf32>
    %158 = vector.broadcast %157 : vector<32x1xf32> to vector<32x32xf32>
    %159 = arith.subf %151, %158 : vector<32x32xf32>
    %160 = arith.mulf %159, %159 : vector<32x32xf32>
    %cst_42 = arith.constant dense<0.000000e+00> : vector<32xf32>
    %161 = vector.multi_reduction <add>, %160, %cst_42 [1] : vector<32x32xf32> to vector<32xf32>
    %162 = vector.shape_cast %161 : vector<32xf32> to vector<32x1xf32>
    %cst_43 = arith.constant 3.200000e+01 : f32
    %163 = vector.broadcast %cst_43 : f32 to vector<32x1xf32>
    %164 = arith.divf %162, %163 : vector<32x1xf32>
    %165 = vector.broadcast %157 : vector<32x1xf32> to vector<32x32xf32>
    %166 = arith.subf %151, %165 : vector<32x32xf32>
    %cst_44 = arith.constant 9.99999974E-6 : f32
    %167 = vector.broadcast %cst_44 : f32 to vector<32x1xf32>
    %168 = arith.addf %164, %167 : vector<32x1xf32>
    %169 = math.rsqrt %168 : vector<32x1xf32>
    %170 = vector.broadcast %169 : vector<32x1xf32> to vector<32x32xf32>
    %171 = arith.mulf %166, %170 : vector<32x32xf32>
    %172 = vector.broadcast %152 : vector<1x32xf32> to vector<32x32xf32>
    %173 = arith.mulf %171, %172 : vector<32x32xf32>
    %174 = vector.broadcast %153 : vector<1x32xf32> to vector<32x32xf32>
    %175 = arith.addf %173, %174 : vector<32x32xf32>
    %c64 = arith.constant 64 : index
    %c0_45 = arith.constant 0 : index
    %176 = vector.load %arg2[%c64, %c0_45] : memref<384x128xf32, #tpu.memory_space<vmem>>, vector<32x96xf32>
    %cst_46 = arith.constant dense<0.000000e+00> : vector<32x96xf32>
    %177 = tpu.matmul %175, %176, %cst_46 {dimension_numbers = #tpu.dot_dimension_numbers<[1], [0], [0], [1], [0, 0, 1, 1], [], []>} : vector<32x32xf32>, vector<32x96xf32>, vector<32x96xf32> -> vector<32x96xf32>
    %c11 = arith.constant 11 : index
    %c0_47 = arith.constant 0 : index
    %178 = vector.load %arg3[%c11, %c0_47] : memref<24x128xf32, #tpu.memory_space<vmem>>, vector<1x96xf32>
    %179 = vector.broadcast %178 : vector<1x96xf32> to vector<32x96xf32>
    %180 = arith.addf %177, %179 : vector<32x96xf32>
    %181 = vector.extract_strided_slice %180 {offsets = [0, 0], sizes = [32, 32], strides = [1, 1]} : vector<32x96xf32> to vector<32x32xf32>
    %182 = vector.extract_strided_slice %180 {offsets = [0, 32], sizes = [32, 32], strides = [1, 1]} : vector<32x96xf32> to vector<32x32xf32>
    %183 = vector.extract_strided_slice %180 {offsets = [0, 64], sizes = [32, 32], strides = [1, 1]} : vector<32x96xf32> to vector<32x32xf32>
    %184 = vector.extract_strided_slice %181 {offsets = [0, 0], sizes = [32, 8], strides = [1, 1]} : vector<32x32xf32> to vector<32x8xf32>
    %185 = vector.extract_strided_slice %181 {offsets = [0, 8], sizes = [32, 8], strides = [1, 1]} : vector<32x32xf32> to vector<32x8xf32>
    %186 = vector.extract_strided_slice %181 {offsets = [0, 16], sizes = [32, 8], strides = [1, 1]} : vector<32x32xf32> to vector<32x8xf32>
    %187 = vector.extract_strided_slice %181 {offsets = [0, 24], sizes = [32, 8], strides = [1, 1]} : vector<32x32xf32> to vector<32x8xf32>
    %188 = vector.shape_cast %184 : vector<32x8xf32> to vector<1x32x8xf32>
    %189 = vector.shape_cast %185 : vector<32x8xf32> to vector<1x32x8xf32>
    %190 = vector.shape_cast %186 : vector<32x8xf32> to vector<1x32x8xf32>
    %191 = vector.shape_cast %187 : vector<32x8xf32> to vector<1x32x8xf32>
    %192 = tpu.concatenate %188, %189, %190, %191 in 0 : vector<1x32x8xf32>, vector<1x32x8xf32>, vector<1x32x8xf32>, vector<1x32x8xf32> -> vector<4x32x8xf32>
    %193 = vector.extract_strided_slice %182 {offsets = [0, 0], sizes = [32, 8], strides = [1, 1]} : vector<32x32xf32> to vector<32x8xf32>
    %194 = vector.extract_strided_slice %182 {offsets = [0, 8], sizes = [32, 8], strides = [1, 1]} : vector<32x32xf32> to vector<32x8xf32>
    %195 = vector.extract_strided_slice %182 {offsets = [0, 16], sizes = [32, 8], strides = [1, 1]} : vector<32x32xf32> to vector<32x8xf32>
    %196 = vector.extract_strided_slice %182 {offsets = [0, 24], sizes = [32, 8], strides = [1, 1]} : vector<32x32xf32> to vector<32x8xf32>
    %197 = vector.shape_cast %193 : vector<32x8xf32> to vector<1x32x8xf32>
    %198 = vector.shape_cast %194 : vector<32x8xf32> to vector<1x32x8xf32>
    %199 = vector.shape_cast %195 : vector<32x8xf32> to vector<1x32x8xf32>
    %200 = vector.shape_cast %196 : vector<32x8xf32> to vector<1x32x8xf32>
    %201 = tpu.concatenate %197, %198, %199, %200 in 0 : vector<1x32x8xf32>, vector<1x32x8xf32>, vector<1x32x8xf32>, vector<1x32x8xf32> -> vector<4x32x8xf32>
    %202 = vector.extract_strided_slice %183 {offsets = [0, 0], sizes = [32, 8], strides = [1, 1]} : vector<32x32xf32> to vector<32x8xf32>
    %203 = vector.extract_strided_slice %183 {offsets = [0, 8], sizes = [32, 8], strides = [1, 1]} : vector<32x32xf32> to vector<32x8xf32>
    %204 = vector.extract_strided_slice %183 {offsets = [0, 16], sizes = [32, 8], strides = [1, 1]} : vector<32x32xf32> to vector<32x8xf32>
    %205 = vector.extract_strided_slice %183 {offsets = [0, 24], sizes = [32, 8], strides = [1, 1]} : vector<32x32xf32> to vector<32x8xf32>
    %206 = vector.shape_cast %202 : vector<32x8xf32> to vector<1x32x8xf32>
    %207 = vector.shape_cast %203 : vector<32x8xf32> to vector<1x32x8xf32>
    %208 = vector.shape_cast %204 : vector<32x8xf32> to vector<1x32x8xf32>
    %209 = vector.shape_cast %205 : vector<32x8xf32> to vector<1x32x8xf32>
    %210 = tpu.concatenate %206, %207, %208, %209 in 0 : vector<1x32x8xf32>, vector<1x32x8xf32>, vector<1x32x8xf32>, vector<1x32x8xf32> -> vector<4x32x8xf32>
    "tpu.trace_start"() <{level = 10 : i32, message = "hqd,hkd->hqk"}> : () -> ()
    %cst_48 = arith.constant dense<0.000000e+00> : vector<4x32x32xf32>
    %211 = tpu.matmul %192, %201, %cst_48 {dimension_numbers = #tpu.dot_dimension_numbers<[2], [2], [1], [1], [0, 0, 0, 1, 1, 1], [0], [0]>} : vector<4x32x8xf32>, vector<4x32x8xf32>, vector<4x32x32xf32> -> vector<4x32x32xf32>
    "tpu.trace_stop"() : () -> ()
    %cst_49 = arith.constant 0.353553385 : f32
    %212 = vector.broadcast %cst_49 : f32 to vector<4x32x32xf32>
    %213 = arith.mulf %211, %212 : vector<4x32x32xf32>
    %cst_50 = arith.constant dense<0xFF800000> : vector<4x32xf32>
    %214 = vector.multi_reduction <maximumf>, %213, %cst_50 [2] : vector<4x32x32xf32> to vector<4x32xf32>
    %215 = vector.shape_cast %214 : vector<4x32xf32> to vector<4x32x1xf32>
    %216 = vector.broadcast %215 : vector<4x32x1xf32> to vector<4x32x32xf32>
    %217 = arith.subf %213, %216 : vector<4x32x32xf32>
    %218 = math.exp %217 : vector<4x32x32xf32>
    %cst_51 = arith.constant dense<0.000000e+00> : vector<4x32xf32>
    %219 = vector.multi_reduction <add>, %218, %cst_51 [2] : vector<4x32x32xf32> to vector<4x32xf32>
    %220 = vector.shape_cast %219 : vector<4x32xf32> to vector<4x32x1xf32>
    %221 = vector.broadcast %220 : vector<4x32x1xf32> to vector<4x32x32xf32>
    %222 = arith.divf %218, %221 : vector<4x32x32xf32>
    "tpu.trace_start"() <{level = 10 : i32, message = "hqk,hkd->hqd"}> : () -> ()
    %cst_52 = arith.constant dense<0.000000e+00> : vector<4x32x8xf32>
    %223 = tpu.matmul %222, %210, %cst_52 {dimension_numbers = #tpu.dot_dimension_numbers<[2], [1], [1], [2], [0, 0, 0, 1, 1, 2], [0], [0]>} : vector<4x32x32xf32>, vector<4x32x8xf32>, vector<4x32x8xf32> -> vector<4x32x8xf32>
    "tpu.trace_stop"() : () -> ()
    %224 = vector.extract_strided_slice %223 {offsets = [0, 0, 0], sizes = [1, 32, 8], strides = [1, 1, 1]} : vector<4x32x8xf32> to vector<1x32x8xf32>
    %225 = vector.shape_cast %224 : vector<1x32x8xf32> to vector<32x8xf32>
    %226 = vector.extract_strided_slice %223 {offsets = [1, 0, 0], sizes = [1, 32, 8], strides = [1, 1, 1]} : vector<4x32x8xf32> to vector<1x32x8xf32>
    %227 = vector.shape_cast %226 : vector<1x32x8xf32> to vector<32x8xf32>
    %228 = vector.extract_strided_slice %223 {offsets = [2, 0, 0], sizes = [1, 32, 8], strides = [1, 1, 1]} : vector<4x32x8xf32> to vector<1x32x8xf32>
    %229 = vector.shape_cast %228 : vector<1x32x8xf32> to vector<32x8xf32>
    %230 = vector.extract_strided_slice %223 {offsets = [3, 0, 0], sizes = [1, 32, 8], strides = [1, 1, 1]} : vector<4x32x8xf32> to vector<1x32x8xf32>
    %231 = vector.shape_cast %230 : vector<1x32x8xf32> to vector<32x8xf32>
    %232 = tpu.concatenate %225, %227, %229, %231 in 1 : vector<32x8xf32>, vector<32x8xf32>, vector<32x8xf32>, vector<32x8xf32> -> vector<32x32xf32>
    %c128 = arith.constant 128 : index
    %c0_53 = arith.constant 0 : index
    %233 = vector.load %arg2[%c128, %c0_53] : memref<384x128xf32, #tpu.memory_space<vmem>>, vector<32x32xf32>
    %cst_54 = arith.constant dense<0.000000e+00> : vector<32x32xf32>
    %234 = tpu.matmul %232, %233, %cst_54 {dimension_numbers = #tpu.dot_dimension_numbers<[1], [0], [0], [1], [0, 0, 1, 1], [], []>} : vector<32x32xf32>, vector<32x32xf32>, vector<32x32xf32> -> vector<32x32xf32>
    %c12 = arith.constant 12 : index
    %c0_55 = arith.constant 0 : index
    %235 = vector.load %arg3[%c12, %c0_55] : memref<24x128xf32, #tpu.memory_space<vmem>>, vector<1x32xf32>
    %236 = vector.broadcast %235 : vector<1x32xf32> to vector<32x32xf32>
    %237 = arith.addf %234, %236 : vector<32x32xf32>
    %238 = arith.addf %175, %237 : vector<32x32xf32>
    %c15 = arith.constant 15 : index
    %c0_56 = arith.constant 0 : index
    %239 = vector.load %arg3[%c15, %c0_56] : memref<24x128xf32, #tpu.memory_space<vmem>>, vector<1x32xf32>
    %c16 = arith.constant 16 : index
    %c0_57 = arith.constant 0 : index
    %240 = vector.load %arg3[%c16, %c0_57] : memref<24x128xf32, #tpu.memory_space<vmem>>, vector<1x32xf32>
    %cst_58 = arith.constant dense<0.000000e+00> : vector<32xf32>
    %241 = vector.multi_reduction <add>, %238, %cst_58 [1] : vector<32x32xf32> to vector<32xf32>
    %242 = vector.shape_cast %241 : vector<32xf32> to vector<32x1xf32>
    %cst_59 = arith.constant 3.200000e+01 : f32
    %243 = vector.broadcast %cst_59 : f32 to vector<32x1xf32>
    %244 = arith.divf %242, %243 : vector<32x1xf32>
    %245 = vector.broadcast %244 : vector<32x1xf32> to vector<32x32xf32>
    %246 = arith.subf %238, %245 : vector<32x32xf32>
    %247 = arith.mulf %246, %246 : vector<32x32xf32>
    %cst_60 = arith.constant dense<0.000000e+00> : vector<32xf32>
    %248 = vector.multi_reduction <add>, %247, %cst_60 [1] : vector<32x32xf32> to vector<32xf32>
    %249 = vector.shape_cast %248 : vector<32xf32> to vector<32x1xf32>
    %cst_61 = arith.constant 3.200000e+01 : f32
    %250 = vector.broadcast %cst_61 : f32 to vector<32x1xf32>
    %251 = arith.divf %249, %250 : vector<32x1xf32>
    %252 = vector.broadcast %244 : vector<32x1xf32> to vector<32x32xf32>
    %253 = arith.subf %238, %252 : vector<32x32xf32>
    %cst_62 = arith.constant 9.99999974E-6 : f32
    %254 = vector.broadcast %cst_62 : f32 to vector<32x1xf32>
    %255 = arith.addf %251, %254 : vector<32x1xf32>
    %256 = math.rsqrt %255 : vector<32x1xf32>
    %257 = vector.broadcast %256 : vector<32x1xf32> to vector<32x32xf32>
    %258 = arith.mulf %253, %257 : vector<32x32xf32>
    %259 = vector.broadcast %239 : vector<1x32xf32> to vector<32x32xf32>
    %260 = arith.mulf %258, %259 : vector<32x32xf32>
    %261 = vector.broadcast %240 : vector<1x32xf32> to vector<32x32xf32>
    %262 = arith.addf %260, %261 : vector<32x32xf32>
    %c192 = arith.constant 192 : index
    %c0_63 = arith.constant 0 : index
    %263 = vector.load %arg2[%c192, %c0_63] : memref<384x128xf32, #tpu.memory_space<vmem>>, vector<32x64xf32>
    %cst_64 = arith.constant dense<0.000000e+00> : vector<32x64xf32>
    %264 = tpu.matmul %262, %263, %cst_64 {dimension_numbers = #tpu.dot_dimension_numbers<[1], [0], [0], [1], [0, 0, 1, 1], [], []>} : vector<32x32xf32>, vector<32x64xf32>, vector<32x64xf32> -> vector<32x64xf32>
    %c13 = arith.constant 13 : index
    %c0_65 = arith.constant 0 : index
    %265 = vector.load %arg3[%c13, %c0_65] : memref<24x128xf32, #tpu.memory_space<vmem>>, vector<1x64xf32>
    %266 = vector.broadcast %265 : vector<1x64xf32> to vector<32x64xf32>
    %267 = arith.addf %264, %266 : vector<32x64xf32>
    %cst_66 = arith.constant 0.000000e+00 : f32
    %268 = vector.broadcast %cst_66 : f32 to vector<32x64xf32>
    %269 = arith.maximumf %267, %268 : vector<32x64xf32>
    %c288 = arith.constant 288 : index
    %c0_67 = arith.constant 0 : index
    %270 = vector.load %arg2[%c288, %c0_67] : memref<384x128xf32, #tpu.memory_space<vmem>>, vector<64x32xf32>
    %cst_68 = arith.constant dense<0.000000e+00> : vector<32x32xf32>
    %271 = tpu.matmul %269, %270, %cst_68 {dimension_numbers = #tpu.dot_dimension_numbers<[1], [0], [0], [1], [0, 0, 1, 1], [], []>} : vector<32x64xf32>, vector<64x32xf32>, vector<32x32xf32> -> vector<32x32xf32>
    %c14 = arith.constant 14 : index
    %c0_69 = arith.constant 0 : index
    %272 = vector.load %arg3[%c14, %c0_69] : memref<24x128xf32, #tpu.memory_space<vmem>>, vector<1x32xf32>
    %273 = vector.broadcast %272 : vector<1x32xf32> to vector<32x32xf32>
    %274 = arith.addf %271, %273 : vector<32x32xf32>
    %275 = arith.addf %262, %274 : vector<32x32xf32>
    %c17 = arith.constant 17 : index
    %c0_70 = arith.constant 0 : index
    %276 = vector.load %arg3[%c17, %c0_70] : memref<24x128xf32, #tpu.memory_space<vmem>>, vector<1x32xf32>
    %c18 = arith.constant 18 : index
    %c0_71 = arith.constant 0 : index
    %277 = vector.load %arg3[%c18, %c0_71] : memref<24x128xf32, #tpu.memory_space<vmem>>, vector<1x32xf32>
    %cst_72 = arith.constant dense<0.000000e+00> : vector<32xf32>
    %278 = vector.multi_reduction <add>, %275, %cst_72 [1] : vector<32x32xf32> to vector<32xf32>
    %279 = vector.shape_cast %278 : vector<32xf32> to vector<32x1xf32>
    %cst_73 = arith.constant 3.200000e+01 : f32
    %280 = vector.broadcast %cst_73 : f32 to vector<32x1xf32>
    %281 = arith.divf %279, %280 : vector<32x1xf32>
    %282 = vector.broadcast %281 : vector<32x1xf32> to vector<32x32xf32>
    %283 = arith.subf %275, %282 : vector<32x32xf32>
    %284 = arith.mulf %283, %283 : vector<32x32xf32>
    %cst_74 = arith.constant dense<0.000000e+00> : vector<32xf32>
    %285 = vector.multi_reduction <add>, %284, %cst_74 [1] : vector<32x32xf32> to vector<32xf32>
    %286 = vector.shape_cast %285 : vector<32xf32> to vector<32x1xf32>
    %cst_75 = arith.constant 3.200000e+01 : f32
    %287 = vector.broadcast %cst_75 : f32 to vector<32x1xf32>
    %288 = arith.divf %286, %287 : vector<32x1xf32>
    %289 = vector.broadcast %281 : vector<32x1xf32> to vector<32x32xf32>
    %290 = arith.subf %275, %289 : vector<32x32xf32>
    %cst_76 = arith.constant 9.99999974E-6 : f32
    %291 = vector.broadcast %cst_76 : f32 to vector<32x1xf32>
    %292 = arith.addf %288, %291 : vector<32x1xf32>
    %293 = math.rsqrt %292 : vector<32x1xf32>
    %294 = vector.broadcast %293 : vector<32x1xf32> to vector<32x32xf32>
    %295 = arith.mulf %290, %294 : vector<32x32xf32>
    %296 = vector.broadcast %276 : vector<1x32xf32> to vector<32x32xf32>
    %297 = arith.mulf %295, %296 : vector<32x32xf32>
    %298 = vector.broadcast %277 : vector<1x32xf32> to vector<32x32xf32>
    %299 = arith.addf %297, %298 : vector<32x32xf32>
    %c352 = arith.constant 352 : index
    %c0_77 = arith.constant 0 : index
    %300 = vector.load %arg2[%c352, %c0_77] : memref<384x128xf32, #tpu.memory_space<vmem>>, vector<32x32xf32>
    %cst_78 = arith.constant dense<0.000000e+00> : vector<32x32xf32>
    %301 = tpu.matmul %299, %300, %cst_78 {dimension_numbers = #tpu.dot_dimension_numbers<[1], [0], [0], [1], [0, 0, 1, 1], [], []>} : vector<32x32xf32>, vector<32x32xf32>, vector<32x32xf32> -> vector<32x32xf32>
    %c19 = arith.constant 19 : index
    %c0_79 = arith.constant 0 : index
    %302 = vector.load %arg3[%c19, %c0_79] : memref<24x128xf32, #tpu.memory_space<vmem>>, vector<1x32xf32>
    %303 = vector.broadcast %302 : vector<1x32xf32> to vector<32x32xf32>
    %304 = arith.addf %301, %303 : vector<32x32xf32>
    %305 = vector.extract_strided_slice %1 {offsets = [0, 32], sizes = [32, 32], strides = [1, 1]} : vector<32x128xf32> to vector<32x32xf32>
    %306 = vector.extract_strided_slice %1 {offsets = [0, 64], sizes = [32, 32], strides = [1, 1]} : vector<32x128xf32> to vector<32x32xf32>
    %cst_80 = arith.constant dense<0.000000e+00> : vector<32x32xf32>
    %307 = tpu.matmul %305, %2, %cst_80 {dimension_numbers = #tpu.dot_dimension_numbers<[1], [0], [0], [1], [0, 0, 1, 1], [], []>} : vector<32x32xf32>, vector<32x32xf32>, vector<32x32xf32> -> vector<32x32xf32>
    %cst_81 = arith.constant dense<0.000000e+00> : vector<32x32xf32>
    %308 = tpu.matmul %305, %305, %cst_81 {dimension_numbers = #tpu.dot_dimension_numbers<[1], [0], [0], [1], [0, 0, 1, 1], [], []>} : vector<32x32xf32>, vector<32x32xf32>, vector<32x32xf32> -> vector<32x32xf32>
    %cst_82 = arith.constant dense<0.000000e+00> : vector<32xf32>
    %309 = vector.multi_reduction <add>, %305, %cst_82 [1] : vector<32x32xf32> to vector<32xf32>
    %310 = vector.shape_cast %309 : vector<32xf32> to vector<32x1xf32>
    %cst_83 = arith.constant dense<0.000000e+00> : vector<32xf32>
    %311 = vector.multi_reduction <add>, %305, %cst_83 [0] : vector<32x32xf32> to vector<32xf32>
    %312 = vector.shape_cast %311 : vector<32xf32> to vector<1x32xf32>
    %313 = vector.broadcast %310 : vector<32x1xf32> to vector<32x32xf32>
    %314 = vector.broadcast %312 : vector<1x32xf32> to vector<32x32xf32>
    %315 = arith.addf %313, %314 : vector<32x32xf32>
    %316 = arith.subf %315, %308 : vector<32x32xf32>
    %cst_84 = arith.constant 9.99999997E-7 : f32
    %317 = vector.broadcast %cst_84 : f32 to vector<32x32xf32>
    %318 = arith.addf %316, %317 : vector<32x32xf32>
    %319 = arith.divf %308, %318 : vector<32x32xf32>
    %cst_85 = arith.constant dense<0.000000e+00> : vector<32x32xf32>
    %320 = tpu.matmul %319, %2, %cst_85 {dimension_numbers = #tpu.dot_dimension_numbers<[1], [0], [0], [1], [0, 0, 1, 1], [], []>} : vector<32x32xf32>, vector<32x32xf32>, vector<32x32xf32> -> vector<32x32xf32>
    %cst_86 = arith.constant dense<0.000000e+00> : vector<32x32xf32>
    %321 = tpu.matmul %306, %2, %cst_86 {dimension_numbers = #tpu.dot_dimension_numbers<[1], [0], [0], [1], [0, 0, 1, 1], [], []>} : vector<32x32xf32>, vector<32x32xf32>, vector<32x32xf32> -> vector<32x32xf32>
    %322 = arith.addf %307, %320 : vector<32x32xf32>
    %323 = arith.addf %322, %321 : vector<32x32xf32>
    %324 = arith.addf %304, %323 : vector<32x32xf32>
    %cst_87 = arith.constant 0.000000e+00 : f32
    %325 = vector.broadcast %cst_87 : f32 to vector<32x32xf32>
    %326 = arith.maximumf %324, %325 : vector<32x32xf32>
    %c0_88 = arith.constant 0 : index
    %c0_89 = arith.constant 0 : index
    %c0_90 = arith.constant 0 : index
    %327 = vector.load %arg4[%c0_88, %c0_89, %c0_90] : memref<1x32x32xf32, #tpu.memory_space<vmem>>, vector<1x32x32xf32>
    %328 = vector.shape_cast %327 : vector<1x32x32xf32> to vector<32x32xf32>
    %329 = vector.shape_cast %326 : vector<32x32xf32> to vector<1x32x32xf32>
    tpu.vector_store %arg4[%c0_88, %c0_89, %c0_90], %329 {strides = array<i32>} : memref<1x32x32xf32, #tpu.memory_space<vmem>>, vector<1x32x32xf32>,
    return
  }
  func.func @transform_0(%arg0: i32) -> (i32, i32, i32) {
    %c0_i32 = arith.constant 0 : i32
    %c0_i32_0 = arith.constant 0 : i32
    %c0_i32_1 = arith.constant 0 : i32
    return %arg0, %c0_i32, %c0_i32_0 : i32, i32, i32
  }
  func.func @transform_1(%arg0: i32) -> (i32, i32) {
    %c0_i32 = arith.constant 0 : i32
    %c0_i32_0 = arith.constant 0 : i32
    %c0_i32_1 = arith.constant 0 : i32
    return %c0_i32, %c0_i32_0 : i32, i32
  }
  func.func @transform_2(%arg0: i32) -> (i32, i32) {
    %c0_i32 = arith.constant 0 : i32
    %c0_i32_0 = arith.constant 0 : i32
    %c0_i32_1 = arith.constant 0 : i32
    return %c0_i32, %c0_i32_0 : i32, i32
  }
  func.func @transform_3(%arg0: i32) -> (i32, i32, i32) {
    %c0_i32 = arith.constant 0 : i32
    %c0_i32_0 = arith.constant 0 : i32
    %c0_i32_1 = arith.constant 0 : i32
    return %arg0, %c0_i32, %c0_i32_0 : i32, i32, i32
  }
}

</mosaic_0001>

<llo_original>
// kernel: graph_transformer_v2.1
$region0: #{graph_transformer_v2.1}
  #allocation0 [shape = 'u32[]', space=smem, size = 0x4, offset = 0x4, fixed_abs, tag = 'smem constant byte address 0x4 - core index']
  #allocation1 [shape = 'u32[72,128]{1,0:T(1,128)}', space=vmem, size = 0x9000, scoped, tag = 'internal scratch']
  %s0 = inlined_call_operand.vmem [shape: f32[8,32,128], index: 0, kind: input, shape index: {}]
  %s1 = inlined_call_operand.vmem [shape: f32[384,128], index: 1, kind: input, shape index: {}]
  %s2 = inlined_call_operand.vmem [shape: f32[24,128], index: 2, kind: input, shape index: {}]
  %s3 = inlined_call_operand.hbm [shape: f32[8,32,32], index: 3, kind: output, shape index: {}]
  %s4 = sld [smem:[#allocation0]]
  $region45: #{graph_transformer_v2.1} parent=0
    _
  %s6 = ssub.s32 1, %s4
  %s7 = scalar_select 0, %s6, %s4
  $region1: #{graph_transformer_v2.1} parent=0
    #allocation2 [shape = 'u8[32768]{0}', space=vmem, size = 0x8000, scoped, tag = 'output window, operand 0']
    #allocation3 [shape = 's32[2]{0}', space=sflag, size = 0x8, scoped, tag = 'scoped memory for graph_transformer_v2.1']
    %8 = vsyncpa [#allocation3], 0
    %s9 = scalar_lea.sflag [#allocation3], 1
    %10 = vsyncpa %s9, 0
    loop: start=0, step=1, limit=10
    $region2: #{graph_transformer_v2.1} parent=1 // loop_pre_header
      _
    $region3: #{graph_transformer_v2.1} parent=1 // loop_header
      %s12 = sphi 0, %s16
      %p13 = scmp.ge.s32.totalorder %s12, 10
      %s22 = sphi 0, %s24
      %s25 = sphi 0, %s22
      %s26 = sphi 0, %s25
      %s42 = sphi 0, %s26
      %s46 = sphi 0, %s46
      %s48 = sphi 0, %s46
      %s49 = sphi 0, %s48
      %s63 = sphi 0, %s49
      %s67 = sphi 0, %s67
      %s69 = sphi 0, %s67
      %s70 = sphi 0, %s69
      %s84 = sphi 0, %s70
      %s90 = sphi 0, %s92
      %s93 = sphi 0, %s90
      %s94 = sphi 0, %s93
      %s110 = sphi 0, %s94
    $region4: #{graph_transformer_v2.1} parent=1 // loop_header_branch
      %15 = sbr.rel (%p13) target = $region8
    $region5: #{graph_transformer_v2.1} parent=1 // loop_body
      %s17 = ssub.s32 %s12, 1
      %s18 = ssub.s32 %s12, 2
      %s19 = sadd.s32 %s12, 1
      %s20 = ssub.s32 %s12, %s19
      %p21 = scmp.eq.s32.totalorder %s20, 0
      %s23 = sadd.s32 %s22, 1
      %s24 = scalar_select %p21, %s22, %s23
      %p27 = pneg %p21
      %p28 = scmp.eq.s32.totalorder %s12, 7
      %p29 = por %p27, %p28
      %p30 = scmp.ne.s32.totalorder %s22, %s25
      %p31 = scmp.eq.s32.totalorder %s12, 0
      %p32 = por %p30, %p31
      %p33 = scmp.ne.s32.totalorder %s22, %s25
      %p34 = scmp.eq.s32.totalorder %s17, 7
      %p35 = por %p33, %p34
      %p36 = scmp.ne.s32.totalorder %s25, %s26
      %p37 = scmp.eq.s32.totalorder %s17, 0
      %p38 = por %p36, %p37
      %p39 = scmp.ne.s32.totalorder %s25, %s26
      %p40 = scmp.eq.s32.totalorder %s18, 7
      %p41 = por %p39, %p40
      %p43 = scmp.ne.s32.totalorder %s26, %s42
      %p44 = scmp.eq.s32.totalorder %s18, 0
      %p45 = por %p43, %p44
      %s47 = sadd.s32 %s46, 1
      %p50 = scmp.eq.s32.totalorder %s12, 7
      %p51 = scmp.ne.s32.totalorder %s46, %s48
      %p52 = scmp.eq.s32.totalorder %s12, 0
      %p53 = por %p51, %p52
      %p54 = scmp.ne.s32.totalorder %s46, %s48
      %p55 = scmp.eq.s32.totalorder %s17, 7
      %p56 = por %p54, %p55
      %p57 = scmp.ne.s32.totalorder %s48, %s49
      %p58 = scmp.eq.s32.totalorder %s17, 0
      %p59 = por %p57, %p58
      %p60 = scmp.ne.s32.totalorder %s48, %s49
      %p61 = scmp.eq.s32.totalorder %s18, 7
      %p62 = por %p60, %p61
      %p64 = scmp.ne.s32.totalorder %s49, %s63
      %p65 = scmp.eq.s32.totalorder %s18, 0
      %p66 = por %p64, %p65
      %s68 = sadd.s32 %s67, 1
      %p71 = scmp.eq.s32.totalorder %s12, 7
      %p72 = scmp.ne.s32.totalorder %s67, %s69
      %p73 = scmp.eq.s32.totalorder %s12, 0
      %p74 = por %p72, %p73
      %p75 = scmp.ne.s32.totalorder %s67, %s69
      %p76 = scmp.eq.s32.totalorder %s17, 7
      %p77 = por %p75, %p76
      %p78 = scmp.ne.s32.totalorder %s69, %s70
      %p79 = scmp.eq.s32.totalorder %s17, 0
      %p80 = por %p78, %p79
      %p81 = scmp.ne.s32.totalorder %s69, %s70
      %p82 = scmp.eq.s32.totalorder %s18, 7
      %p83 = por %p81, %p82
      %p85 = scmp.ne.s32.totalorder %s70, %s84
      %p86 = scmp.eq.s32.totalorder %s18, 0
      %p87 = por %p85, %p86
      %s88 = ssub.s32 %s12, %s19
      %p89 = scmp.eq.s32.totalorder %s88, 0
      %s91 = sadd.s32 %s90, 1
      %s92 = scalar_select %p89, %s90, %s91
      %p95 = pneg %p89
      %p96 = scmp.eq.s32.totalorder %s12, 7
      %p97 = por %p95, %p96
      %p98 = scmp.ne.s32.totalorder %s90, %s93
      %p99 = scmp.eq.s32.totalorder %s12, 0
      %p100 = por %p98, %p99
      %p101 = scmp.ne.s32.totalorder %s90, %s93
      %p102 = scmp.eq.s32.totalorder %s17, 7
      %p103 = por %p101, %p102
      %p104 = scmp.ne.s32.totalorder %s93, %s94
      %p105 = scmp.eq.s32.totalorder %s17, 0
      %p106 = por %p104, %p105
      %p107 = scmp.ne.s32.totalorder %s93, %s94
      %p108 = scmp.eq.s32.totalorder %s18, 7
      %p109 = por %p107, %p108
      %p111 = scmp.ne.s32.totalorder %s94, %s110
      %p112 = scmp.eq.s32.totalorder %s18, 0
      %p113 = por %p111, %p112
      %p114 = scmp.le.s32.totalorder 1, %s12
      %p115 = scmp.lt.s32.totalorder %s12, 9
      %p116 = pnand %p114, %p115
      %p117 = pneg %p116
      // Predicated region
      $region9: #{graph_transformer_v2.1} parent=5 // pred_check
        _
      $region10: #{graph_transformer_v2.1} parent=5 // pred_check_branch
        %119 = sbr.rel (%p116) target = $region12
      $region11: #{graph_transformer_v2.1} parent=5 // pred_region
        %s120 = ssub.s32 %s12, 1
        // Predicated region
        $region13: #{graph_transformer_v2.1} parent=11 // pred_check
          %p121 = pneg %p59
        $region14: #{graph_transformer_v2.1} parent=11 // pred_check_branch
          %123 = sbr.rel (%p121) target = $region16
        $region15: #{graph_transformer_v2.1} parent=11 // pred_region
          _
        $region16: #{graph_transformer_v2.1} parent=11 // pred_fallthru
          _
        // Predicated region
        $region17: #{graph_transformer_v2.1} parent=11 // pred_check
          %p124 = pneg %p80
        $region18: #{graph_transformer_v2.1} parent=11 // pred_check_branch
          %126 = sbr.rel (%p124) target = $region20
        $region19: #{graph_transformer_v2.1} parent=11 // pred_region
          _
        $region20: #{graph_transformer_v2.1} parent=11 // pred_fallthru
          _
      $region12: #{graph_transformer_v2.1} parent=5 // pred_fallthru
        _
      %p127 = scmp.lt.s32.totalorder %s12, 8
      // Predicated region
      $region21: #{graph_transformer_v2.1} parent=5 // pred_check
        %p128 = pneg %p127
      $region22: #{graph_transformer_v2.1} parent=5 // pred_check_branch
        %130 = sbr.rel (%p128) target = $region24
      $region23: #{graph_transformer_v2.1} parent=5 // pred_region
        // Predicated region
        $region25: #{graph_transformer_v2.1} parent=23 // pred_check
          %p131 = pneg %p32
        $region26: #{graph_transformer_v2.1} parent=23 // pred_check_branch
          %133 = sbr.rel (%p131) target = $region28
        $region27: #{graph_transformer_v2.1} parent=23 // pred_region
          %p134 = scmp.lt.s32.totalorder %s12, 7
          %s135 = scalar_select %p134, %s12, 7
          %s136 = smul.addr %s135, 4
          %s137 = smul.addr %s136, 8
          %s138 = scalar_lea.vmem %s0, %s137
        $region28: #{graph_transformer_v2.1} parent=23 // pred_fallthru
          _
      $region24: #{graph_transformer_v2.1} parent=5 // pred_fallthru
        _
      %p139 = scmp.le.s32.totalorder 1, %s12
      %p140 = scmp.lt.s32.totalorder %s12, 9
      %p141 = pnand %p139, %p140
      %p142 = pneg %p141
      // Predicated region
      $region29: #{graph_transformer_v2.1} parent=5 // pred_check
        _
      $region30: #{graph_transformer_v2.1} parent=5 // pred_check_branch
        %144 = sbr.rel (%p141) target = $region32
      $region31: #{graph_transformer_v2.1} parent=5 // pred_region
        %s145 = ssub.s32 %s12, 1
        %p146 = scmp.lt.s32.totalorder %s17, 7
        %s147 = scalar_select %p146, %s17, 7
        %s148 = smul.addr %s147, 4
        %s149 = smul.addr %s148, 8
        %s150 = scalar_lea.vmem %s0, %s149
        %p151 = pneg %p38
        %p152 = pneg %p35
        %p153 = pneg %p59
        %p154 = pneg %p56
        %p155 = pneg %p80
        %p156 = pneg %p77
        %p157 = pneg %p106
        %p158 = pneg %p103
        %s159 = sand.u32 %s93, 1
        %s160 = scalar_lea.sflag [#allocation3], %s159
        %s161 = sand.u32 %s93, 1
        %s162 = smul.addr %s161, 32
        %s163 = scalar_lea.vmem [#allocation2], %s162
        %p164 = scmp.lt.s32.totalorder %s17, 7
        %s165 = scalar_select %p164, %s17, 7
        %s166 = smul.addr %s165, 4
        %s167 = smul.addr %s166, 8
        %s168 = scalar_lea.vmem %s0, %s167
        %v169 = vld [vmem:[%s168] sm:$0xff]
        %v170 = vld [vmem:[%s168 + $0x8] sm:$0xff]
        %v171 = vld [vmem:[%s168 + $0x10] sm:$0xff]
        %v172 = vld [vmem:[%s168 + $0x18] sm:$0xff]
        %v173 = vld [vmem:[%s1] sm:$0xff]
        %v174 = vld [vmem:[%s1 + $0x8] sm:$0xff]
        %v175 = vld [vmem:[%s1 + $0x10] sm:$0xff]
        %v176 = vld [vmem:[%s1 + $0x18] sm:$0xff]
        %v177 = vld [vmem:[%s2] sm:$0x1]
        %v178 = vperm.slane %v177, 0
        %vm179 = vcmask 261120
        %v181 = vsel %vm179, %v169, 0
        %v184 = vsel %vm179, %v170, 0
        %v187 = vsel %vm179, %v171, 0
        %v190 = vsel %vm179, %v172, 0
        %192 = vmatpush.msra.mxu0 0.0
        %193 = vmatpush.msra.mxu0 0.0
        %194 = vmatpush.msra.mxu0 0.0
        %195 = vmatpush.msra.mxu0 0.0
        %196 = vmatpush.msra.mxu0 0.0
        %197 = vmatpush.msra.mxu0 0.0
        %198 = vmatpush.msra.mxu0 0.0
        %199 = vmatpush.msra.mxu0 0.0
        %200 = vmatpush.msra.mxu0 0.0
        %201 = vmatpush.msra.mxu0 0.0
        %202 = vmatpush.msra.mxu0 0.0
        %203 = vmatpush.msra.mxu0 0.0
        %204 = vmatpush.msra.mxu0 %v176
        %205 = vmatpush.msra.mxu0 %v175
        %206 = vmatpush.msra.mxu0 %v174
        %207 = vmatpush.msra.mxu0 %v173
        %208 = vmatmul.f32.gmra.mxu0 %v181
        %v209 = vpop.f32.mrf.mxu0
        %v210 = vadd.f32 %v178, %v209
        %211 = vmatmul.f32.gmra.mxu0 %v184
        %v212 = vpop.f32.mrf.mxu0
        %v213 = vadd.f32 %v178, %v212
        %214 = vmatmul.f32.gmra.mxu0 %v187
        %v215 = vpop.f32.mrf.mxu0
        %v216 = vadd.f32 %v178, %v215
        %217 = vmatmul.f32.gmra.mxu0 %v190
        %v218 = vpop.f32.mrf.mxu0
        %v219 = vadd.f32 %v178, %v218
        %220 = vdwg.mxu0
        %221 = vset.pattern.permute.xlu0 96
        %222 = vperm.xlu0 %221, %v169
        %v223 = vpop.permute.xlu0 %222
        %225 = vset.pattern.permute.xlu0 96
        %226 = vperm.xlu0 %225, %v170
        %v227 = vpop.permute.xlu0 %226
        %229 = vset.pattern.permute.xlu0 96
        %230 = vperm.xlu0 %229, %v171
        %v231 = vpop.permute.xlu0 %230
        %233 = vset.pattern.permute.xlu0 96
        %234 = vperm.xlu0 %233, %v172
        %v235 = vpop.permute.xlu0 %234
        %v237 = vmul.f32 %v210, %v223
        %v238 = vmul.f32 %v213, %v227
        %v239 = vmul.f32 %v216, %v231
        %v240 = vmul.f32 %v219, %v235
        %241 = vset.pattern.permute.xlu0 97
        %242 = vperm.xlu0 %241, %v169
        %v243 = vpop.permute.xlu0 %242
        %245 = vset.pattern.permute.xlu0 97
        %246 = vperm.xlu0 %245, %v170
        %v247 = vpop.permute.xlu0 %246
        %249 = vset.pattern.permute.xlu0 97
        %250 = vperm.xlu0 %249, %v171
        %v251 = vpop.permute.xlu0 %250
        %253 = vset.pattern.permute.xlu0 97
        %254 = vperm.xlu0 %253, %v172
        %v255 = vpop.permute.xlu0 %254
        %v257 = vmul.f32 %v210, %v243
        %v258 = vmul.f32 %v213, %v247
        %v259 = vmul.f32 %v216, %v251
        %v260 = vmul.f32 %v219, %v255
        %265 = vrot.lane.b32.xlu0 %v257, 96
        %v266 = vpop.permute.xlu0 %265
        %267 = vrot.lane.b32.xlu0 %v258, 96
        %v268 = vpop.permute.xlu0 %267
        %269 = vrot.lane.b32.xlu0 %v259, 96
        %v270 = vpop.permute.xlu0 %269
        %271 = vrot.lane.b32.xlu0 %v260, 96
        %v272 = vpop.permute.xlu0 %271
        %v277 = vadd.f32 %v237, %v266
        %v278 = vadd.f32 %v238, %v268
        %v279 = vadd.f32 %v239, %v270
        %v280 = vadd.f32 %v240, %v272
        %281 = vset.pattern.permute.xlu0 98
        %282 = vperm.xlu0 %281, %v169
        %v283 = vpop.permute.xlu0 %282
        %285 = vset.pattern.permute.xlu0 98
        %286 = vperm.xlu0 %285, %v170
        %v287 = vpop.permute.xlu0 %286
        %289 = vset.pattern.permute.xlu0 98
        %290 = vperm.xlu0 %289, %v171
        %v291 = vpop.permute.xlu0 %290
        %293 = vset.pattern.permute.xlu0 98
        %294 = vperm.xlu0 %293, %v172
        %v295 = vpop.permute.xlu0 %294
        %v297 = vmul.f32 %v210, %v283
        %v298 = vmul.f32 %v213, %v287
        %v299 = vmul.f32 %v216, %v291
        %v300 = vmul.f32 %v219, %v295
        %305 = vrot.lane.b32.xlu0 %v297, 64
        %v306 = vpop.permute.xlu0 %305
        %307 = vrot.lane.b32.xlu0 %v298, 64
        %v308 = vpop.permute.xlu0 %307
        %309 = vrot.lane.b32.xlu0 %v299, 64
        %v310 = vpop.permute.xlu0 %309
        %311 = vrot.lane.b32.xlu0 %v300, 64
        %v312 = vpop.permute.xlu0 %311
        %v317 = vadd.f32 %v277, %v306
        %v318 = vadd.f32 %v278, %v308
        %v319 = vadd.f32 %v279, %v310
        %v320 = vadd.f32 %v280, %v312
        %321 = vset.pattern.permute.xlu0 99
        %322 = vperm.xlu0 %321, %v169
        %v323 = vpop.permute.xlu0 %322
        %325 = vset.pattern.permute.xlu0 99
        %326 = vperm.xlu0 %325, %v170
        %v327 = vpop.permute.xlu0 %326
        %329 = vset.pattern.permute.xlu0 99
        %330 = vperm.xlu0 %329, %v171
        %v331 = vpop.permute.xlu0 %330
        %333 = vset.pattern.permute.xlu0 99
        %334 = vperm.xlu0 %333, %v172
        %v335 = vpop.permute.xlu0 %334
        %v337 = vmul.f32 %v210, %v323
        %v338 = vmul.f32 %v213, %v327
        %v339 = vmul.f32 %v216, %v331
        %v340 = vmul.f32 %v219, %v335
        %345 = vrot.lane.b32.xlu0 %v337, 32
        %v346 = vpop.permute.xlu0 %345
        %347 = vrot.lane.b32.xlu0 %v338, 32
        %v348 = vpop.permute.xlu0 %347
        %349 = vrot.lane.b32.xlu0 %v339, 32
        %v350 = vpop.permute.xlu0 %349
        %351 = vrot.lane.b32.xlu0 %v340, 32
        %v352 = vpop.permute.xlu0 %351
        %v357 = vadd.f32 %v317, %v346
        %v358 = vadd.f32 %v318, %v348
        %v359 = vadd.f32 %v319, %v350
        %v360 = vadd.f32 %v320, %v352
        %v361 = vld [vmem:[%s2 + $0x1] sm:$0x1]
        %v362 = vld [vmem:[%s2 + $0x2] sm:$0x1]
        %v363 = vsel %vm179, %v357, 0.0
        %364 = vadd.xlane.f32.xlu0 %v363
        %v365 = vpop.xlane.xlu0 %364
        %v366 = vsel %vm179, %v358, 0.0
        %367 = vadd.xlane.f32.xlu0 %v366
        %v368 = vpop.xlane.xlu0 %367
        %v369 = vsel %vm179, %v359, 0.0
        %370 = vadd.xlane.f32.xlu0 %v369
        %v371 = vpop.xlane.xlu0 %370
        %v372 = vsel %vm179, %v360, 0.0
        %373 = vadd.xlane.f32.xlu0 %v372
        %v374 = vpop.xlane.xlu0 %373
        %v375 = vrcp.pop 32.0
        %v376 = vmul.f32 32.0, %v375
        %v377 = vsub.f32 1.0, %v376
        %v378 = vmul.f32 %v375, %v377
        %v379 = vadd.f32 %v375, %v378
        %vm380 = vweird.f32 %v375
        %v381 = vsel %vm380, %v375, %v379
        %v382 = vmul.f32 %v365, %v381
        %v383 = vmul.f32 %v368, %v381
        %v384 = vmul.f32 %v371, %v381
        %v385 = vmul.f32 %v374, %v381
        %v386 = vsub.f32 %v357, %v382
        %v387 = vsub.f32 %v358, %v383
        %v388 = vsub.f32 %v359, %v384
        %v389 = vsub.f32 %v360, %v385
        %v390 = vmul.f32 %v386, %v386
        %v391 = vmul.f32 %v387, %v387
        %v392 = vmul.f32 %v388, %v388
        %v393 = vmul.f32 %v389, %v389
        %v394 = vsel %vm179, %v390, 0.0
        %395 = vadd.xlane.f32.xlu0 %v394
        %v396 = vpop.xlane.xlu0 %395
        %v397 = vsel %vm179, %v391, 0.0
        %398 = vadd.xlane.f32.xlu0 %v397
        %v399 = vpop.xlane.xlu0 %398
        %v400 = vsel %vm179, %v392, 0.0
        %401 = vadd.xlane.f32.xlu0 %v400
        %v402 = vpop.xlane.xlu0 %401
        %v403 = vsel %vm179, %v393, 0.0
        %404 = vadd.xlane.f32.xlu0 %v403
        %v405 = vpop.xlane.xlu0 %404
        %v406 = vmul.f32 %v396, %v381
        %v407 = vmul.f32 %v399, %v381
        %v408 = vmul.f32 %v402, %v381
        %v409 = vmul.f32 %v405, %v381
        %v410 = vadd.f32 %v406, 1e-05
        %v411 = vadd.f32 %v407, 1e-05
        %v412 = vadd.f32 %v408, 1e-05
        %v413 = vadd.f32 %v409, 1e-05
        %v414 = vrsqrt.pop %v410
        %v415 = vmul.f32 %v414, %v410
        %v416 = vmul.f32 %v415, %v414
        %v417 = vmul.f32 0.5, %v416
        %v418 = vsub.f32 1.5, %v417
        %v419 = vmul.f32 %v414, %v418
        %vm420 = vweird.f32 %v410
        %vm421 = vweird.f32 %v414
        %vm422 = vmor %vm420, %vm421
        %v423 = vsel %vm422, %v414, %v419
        %v424 = vrsqrt.pop %v411
        %v425 = vmul.f32 %v424, %v411
        %v426 = vmul.f32 %v425, %v424
        %v427 = vmul.f32 0.5, %v426
        %v428 = vsub.f32 1.5, %v427
        %v429 = vmul.f32 %v424, %v428
        %vm430 = vweird.f32 %v411
        %vm431 = vweird.f32 %v424
        %vm432 = vmor %vm430, %vm431
        %v433 = vsel %vm432, %v424, %v429
        %v434 = vrsqrt.pop %v412
        %v435 = vmul.f32 %v434, %v412
        %v436 = vmul.f32 %v435, %v434
        %v437 = vmul.f32 0.5, %v436
        %v438 = vsub.f32 1.5, %v437
        %v439 = vmul.f32 %v434, %v438
        %vm440 = vweird.f32 %v412
        %vm441 = vweird.f32 %v434
        %vm442 = vmor %vm440, %vm441
        %v443 = vsel %vm442, %v434, %v439
        %v444 = vrsqrt.pop %v413
        %v445 = vmul.f32 %v444, %v413
        %v446 = vmul.f32 %v445, %v444
        %v447 = vmul.f32 0.5, %v446
        %v448 = vsub.f32 1.5, %v447
        %v449 = vmul.f32 %v444, %v448
        %vm450 = vweird.f32 %v413
        %vm451 = vweird.f32 %v444
        %vm452 = vmor %vm450, %vm451
        %v453 = vsel %vm452, %v444, %v449
        %v454 = vmul.f32 %v386, %v423
        %v455 = vmul.f32 %v387, %v433
        %v456 = vmul.f32 %v388, %v443
        %v457 = vmul.f32 %v389, %v453
        %v458 = vperm.slane %v361, 0
        %v459 = vmul.f32 %v454, %v458
        %v460 = vmul.f32 %v455, %v458
        %v461 = vmul.f32 %v456, %v458
        %v462 = vmul.f32 %v457, %v458
        %v463 = vperm.slane %v362, 0
        %v464 = vadd.f32 %v459, %v463
        %v465 = vadd.f32 %v460, %v463
        %v466 = vadd.f32 %v461, %v463
        %v467 = vadd.f32 %v462, %v463
        %v468 = vld [vmem:[%s1 + $0x20] sm:$0xff]
        %v469 = vld [vmem:[%s1 + $0x28] sm:$0xff]
        %v470 = vld [vmem:[%s1 + $0x30] sm:$0xff]
        %v471 = vld [vmem:[%s1 + $0x38] sm:$0xff]
        %v472 = vld [vmem:[%s2 + $0x3] sm:$0x1]
        %v473 = vperm.slane %v472, 0
        %v475 = vsel %vm179, %v464, 0
        %v478 = vsel %vm179, %v465, 0
        %v481 = vsel %vm179, %v466, 0
        %v484 = vsel %vm179, %v467, 0
        %486 = vmatpush.msra.mxu0 0.0
        %487 = vmatpush.msra.mxu0 0.0
        %488 = vmatpush.msra.mxu0 0.0
        %489 = vmatpush.msra.mxu0 0.0
        %490 = vmatpush.msra.mxu0 0.0
        %491 = vmatpush.msra.mxu0 0.0
        %492 = vmatpush.msra.mxu0 0.0
        %493 = vmatpush.msra.mxu0 0.0
        %494 = vmatpush.msra.mxu0 0.0
        %495 = vmatpush.msra.mxu0 0.0
        %496 = vmatpush.msra.mxu0 0.0
        %497 = vmatpush.msra.mxu0 0.0
        %498 = vmatpush.msra.mxu0 %v471
        %499 = vmatpush.msra.mxu0 %v470
        %500 = vmatpush.msra.mxu0 %v469
        %501 = vmatpush.msra.mxu0 %v468
        %502 = vmatmul.f32.gmra.mxu0 %v475
        %v503 = vpop.f32.mrf.mxu0
        %v504 = vadd.f32 %v473, %v503
        %505 = vmatmul.f32.gmra.mxu0 %v478
        %v506 = vpop.f32.mrf.mxu0
        %v507 = vadd.f32 %v473, %v506
        %508 = vmatmul.f32.gmra.mxu0 %v481
        %v509 = vpop.f32.mrf.mxu0
        %v510 = vadd.f32 %v473, %v509
        %511 = vmatmul.f32.gmra.mxu0 %v484
        %v512 = vpop.f32.mrf.mxu0
        %v513 = vadd.f32 %v473, %v512
        %514 = vdwg.mxu0
        %519 = vrot.lane.b32.xlu0 %v504, 120
        %v520 = vpop.permute.xlu0 %519
        %521 = vrot.lane.b32.xlu0 %v507, 120
        %v522 = vpop.permute.xlu0 %521
        %523 = vrot.lane.b32.xlu0 %v510, 120
        %v524 = vpop.permute.xlu0 %523
        %525 = vrot.lane.b32.xlu0 %v513, 120
        %v526 = vpop.permute.xlu0 %525
        %527 = vrot.lane.b32.xlu0 %v504, 112
        %v528 = vpop.permute.xlu0 %527
        %529 = vrot.lane.b32.xlu0 %v507, 112
        %v530 = vpop.permute.xlu0 %529
        %531 = vrot.lane.b32.xlu0 %v510, 112
        %v532 = vpop.permute.xlu0 %531
        %533 = vrot.lane.b32.xlu0 %v513, 112
        %v534 = vpop.permute.xlu0 %533
        %535 = vrot.lane.b32.xlu0 %v504, 104
        %v536 = vpop.permute.xlu0 %535
        %537 = vrot.lane.b32.xlu0 %v507, 104
        %v538 = vpop.permute.xlu0 %537
        %539 = vrot.lane.b32.xlu0 %v510, 104
        %v540 = vpop.permute.xlu0 %539
        %541 = vrot.lane.b32.xlu0 %v513, 104
        %v542 = vpop.permute.xlu0 %541
        %543 = vrot.lane.b32.xlu0 %v504, 96
        %v544 = vpop.permute.xlu0 %543
        %545 = vrot.lane.b32.xlu0 %v507, 96
        %v546 = vpop.permute.xlu0 %545
        %547 = vrot.lane.b32.xlu0 %v510, 96
        %v548 = vpop.permute.xlu0 %547
        %549 = vrot.lane.b32.xlu0 %v513, 96
        %v550 = vpop.permute.xlu0 %549
        %vm551 = vcmask 64512
        %v552 = vsel %vm551, %v504, 0
        %v554 = vsel %vm551, %v507, 0
        %v556 = vsel %vm551, %v510, 0
        %v558 = vsel %vm551, %v513, 0
        %v560 = vsel %vm551, %v544, 0
        %v562 = vsel %vm551, %v546, 0
        %v564 = vsel %vm551, %v548, 0
        %v566 = vsel %vm551, %v550, 0
        %568 = vmatpush.xpose.msra.mxu0 0.0
        %569 = vmatpush.xpose.msra.mxu0 0.0
        %570 = vmatpush.xpose.msra.mxu0 0.0
        %571 = vmatpush.xpose.msra.mxu0 0.0
        %572 = vmatpush.xpose.msra.mxu0 0.0
        %573 = vmatpush.xpose.msra.mxu0 0.0
        %574 = vmatpush.xpose.msra.mxu0 0.0
        %575 = vmatpush.xpose.msra.mxu0 0.0
        %576 = vmatpush.xpose.msra.mxu0 0.0
        %577 = vmatpush.xpose.msra.mxu0 0.0
        %578 = vmatpush.xpose.msra.mxu0 0.0
        %579 = vmatpush.xpose.msra.mxu0 0.0
        %580 = vmatpush.xpose.msra.mxu0 %v566
        %581 = vmatpush.xpose.msra.mxu0 %v564
        %582 = vmatpush.xpose.msra.mxu0 %v562
        %583 = vmatpush.xpose.msra.mxu0 %v560
        %584 = vmatmul.f32.gmra.mxu0 %v552
        %v585 = vpop.f32.mrf.mxu0
        %v586 = vadd.f32 0.0, %v585
        %587 = vmatmul.f32.gmra.mxu0 %v554
        %v588 = vpop.f32.mrf.mxu0
        %v589 = vadd.f32 0.0, %v588
        %590 = vmatmul.f32.gmra.mxu0 %v556
        %v591 = vpop.f32.mrf.mxu0
        %v592 = vadd.f32 0.0, %v591
        %593 = vmatmul.f32.gmra.mxu0 %v558
        %v594 = vpop.f32.mrf.mxu0
        %v595 = vadd.f32 0.0, %v594
        %596 = vdwg.mxu0
        %597 = vrot.lane.b32.xlu0 %v520, 96
        %v598 = vpop.permute.xlu0 %597
        %599 = vrot.lane.b32.xlu0 %v522, 96
        %v600 = vpop.permute.xlu0 %599
        %601 = vrot.lane.b32.xlu0 %v524, 96
        %v602 = vpop.permute.xlu0 %601
        %603 = vrot.lane.b32.xlu0 %v526, 96
        %v604 = vpop.permute.xlu0 %603
        %v605 = vsel %vm551, %v520, 0
        %v607 = vsel %vm551, %v522, 0
        %v609 = vsel %vm551, %v524, 0
        %v611 = vsel %vm551, %v526, 0
        %v613 = vsel %vm551, %v598, 0
        %v615 = vsel %vm551, %v600, 0
        %v617 = vsel %vm551, %v602, 0
        %v619 = vsel %vm551, %v604, 0
        %621 = vmatpush.xpose.msra.mxu0 0.0
        %622 = vmatpush.xpose.msra.mxu0 0.0
        %623 = vmatpush.xpose.msra.mxu0 0.0
        %624 = vmatpush.xpose.msra.mxu0 0.0
        %625 = vmatpush.xpose.msra.mxu0 0.0
        %626 = vmatpush.xpose.msra.mxu0 0.0
        %627 = vmatpush.xpose.msra.mxu0 0.0
        %628 = vmatpush.xpose.msra.mxu0 0.0
        %629 = vmatpush.xpose.msra.mxu0 0.0
        %630 = vmatpush.xpose.msra.mxu0 0.0
        %631 = vmatpush.xpose.msra.mxu0 0.0
        %632 = vmatpush.xpose.msra.mxu0 0.0
        %633 = vmatpush.xpose.msra.mxu0 %v619
        %634 = vmatpush.xpose.msra.mxu0 %v617
        %635 = vmatpush.xpose.msra.mxu0 %v615
        %636 = vmatpush.xpose.msra.mxu0 %v613
        %637 = vmatmul.f32.gmra.mxu0 %v605
        %v638 = vpop.f32.mrf.mxu0
        %v639 = vadd.f32 0.0, %v638
        %640 = vmatmul.f32.gmra.mxu0 %v607
        %v641 = vpop.f32.mrf.mxu0
        %v642 = vadd.f32 0.0, %v641
        %643 = vmatmul.f32.gmra.mxu0 %v609
        %v644 = vpop.f32.mrf.mxu0
        %v645 = vadd.f32 0.0, %v644
        %646 = vmatmul.f32.gmra.mxu0 %v611
        %v647 = vpop.f32.mrf.mxu0
        %v648 = vadd.f32 0.0, %v647
        %649 = vdwg.mxu0
        %650 = vrot.lane.b32.xlu0 %v528, 96
        %v651 = vpop.permute.xlu0 %650
        %652 = vrot.lane.b32.xlu0 %v530, 96
        %v653 = vpop.permute.xlu0 %652
        %654 = vrot.lane.b32.xlu0 %v532, 96
        %v655 = vpop.permute.xlu0 %654
        %656 = vrot.lane.b32.xlu0 %v534, 96
        %v657 = vpop.permute.xlu0 %656
        %v658 = vsel %vm551, %v528, 0
        %v660 = vsel %vm551, %v530, 0
        %v662 = vsel %vm551, %v532, 0
        %v664 = vsel %vm551, %v534, 0
        %v666 = vsel %vm551, %v651, 0
        %v668 = vsel %vm551, %v653, 0
        %v670 = vsel %vm551, %v655, 0
        %v672 = vsel %vm551, %v657, 0
        %674 = vmatpush.xpose.msra.mxu0 0.0
        %675 = vmatpush.xpose.msra.mxu0 0.0
        %676 = vmatpush.xpose.msra.mxu0 0.0
        %677 = vmatpush.xpose.msra.mxu0 0.0
        %678 = vmatpush.xpose.msra.mxu0 0.0
        %679 = vmatpush.xpose.msra.mxu0 0.0
        %680 = vmatpush.xpose.msra.mxu0 0.0
        %681 = vmatpush.xpose.msra.mxu0 0.0
        %682 = vmatpush.xpose.msra.mxu0 0.0
        %683 = vmatpush.xpose.msra.mxu0 0.0
        %684 = vmatpush.xpose.msra.mxu0 0.0
        %685 = vmatpush.xpose.msra.mxu0 0.0
        %686 = vmatpush.xpose.msra.mxu0 %v672
        %687 = vmatpush.xpose.msra.mxu0 %v670
        %688 = vmatpush.xpose.msra.mxu0 %v668
        %689 = vmatpush.xpose.msra.mxu0 %v666
        %690 = vmatmul.f32.gmra.mxu0 %v658
        %v691 = vpop.f32.mrf.mxu0
        %v692 = vadd.f32 0.0, %v691
        %693 = vmatmul.f32.gmra.mxu0 %v660
        %v694 = vpop.f32.mrf.mxu0
        %v695 = vadd.f32 0.0, %v694
        %696 = vmatmul.f32.gmra.mxu0 %v662
        %v697 = vpop.f32.mrf.mxu0
        %v698 = vadd.f32 0.0, %v697
        %699 = vmatmul.f32.gmra.mxu0 %v664
        %v700 = vpop.f32.mrf.mxu0
        %v701 = vadd.f32 0.0, %v700
        %702 = vdwg.mxu0
        %703 = vrot.lane.b32.xlu0 %v536, 96
        %v704 = vpop.permute.xlu0 %703
        %705 = vrot.lane.b32.xlu0 %v538, 96
        %v706 = vpop.permute.xlu0 %705
        %707 = vrot.lane.b32.xlu0 %v540, 96
        %v708 = vpop.permute.xlu0 %707
        %709 = vrot.lane.b32.xlu0 %v542, 96
        %v710 = vpop.permute.xlu0 %709
        %v711 = vsel %vm551, %v536, 0
        %v713 = vsel %vm551, %v538, 0
        %v715 = vsel %vm551, %v540, 0
        %v717 = vsel %vm551, %v542, 0
        %v719 = vsel %vm551, %v704, 0
        %v721 = vsel %vm551, %v706, 0
        %v723 = vsel %vm551, %v708, 0
        %v725 = vsel %vm551, %v710, 0
        %727 = vmatpush.xpose.msra.mxu0 0.0
        %728 = vmatpush.xpose.msra.mxu0 0.0
        %729 = vmatpush.xpose.msra.mxu0 0.0
        %730 = vmatpush.xpose.msra.mxu0 0.0
        %731 = vmatpush.xpose.msra.mxu0 0.0
        %732 = vmatpush.xpose.msra.mxu0 0.0
        %733 = vmatpush.xpose.msra.mxu0 0.0
        %734 = vmatpush.xpose.msra.mxu0 0.0
        %735 = vmatpush.xpose.msra.mxu0 0.0
        %736 = vmatpush.xpose.msra.mxu0 0.0
        %737 = vmatpush.xpose.msra.mxu0 0.0
        %738 = vmatpush.xpose.msra.mxu0 0.0
        %739 = vmatpush.xpose.msra.mxu0 %v725
        %740 = vmatpush.xpose.msra.mxu0 %v723
        %741 = vmatpush.xpose.msra.mxu0 %v721
        %742 = vmatpush.xpose.msra.mxu0 %v719
        %743 = vmatmul.f32.gmra.mxu0 %v711
        %v744 = vpop.f32.mrf.mxu0
        %v745 = vadd.f32 0.0, %v744
        %746 = vmatmul.f32.gmra.mxu0 %v713
        %v747 = vpop.f32.mrf.mxu0
        %v748 = vadd.f32 0.0, %v747
        %749 = vmatmul.f32.gmra.mxu0 %v715
        %v750 = vpop.f32.mrf.mxu0
        %v751 = vadd.f32 0.0, %v750
        %752 = vmatmul.f32.gmra.mxu0 %v717
        %v753 = vpop.f32.mrf.mxu0
        %v754 = vadd.f32 0.0, %v753
        %755 = vdwg.mxu0
        %v756 = vmul.f32 %v586, 0.35355338
        %v757 = vmul.f32 %v589, 0.35355338
        %v758 = vmul.f32 %v592, 0.35355338
        %v759 = vmul.f32 %v595, 0.35355338
        %v760 = vmul.f32 %v639, 0.35355338
        %v761 = vmul.f32 %v642, 0.35355338
        %v762 = vmul.f32 %v645, 0.35355338
        %v763 = vmul.f32 %v648, 0.35355338
        %v764 = vmul.f32 %v692, 0.35355338
        %v765 = vmul.f32 %v695, 0.35355338
        %v766 = vmul.f32 %v698, 0.35355338
        %v767 = vmul.f32 %v701, 0.35355338
        %v768 = vmul.f32 %v745, 0.35355338
        %v769 = vmul.f32 %v748, 0.35355338
        %v770 = vmul.f32 %v751, 0.35355338
        %v771 = vmul.f32 %v754, 0.35355338
        %v772 = vsel %vm179, %v756, -inf
        %773 = vmax.xlane.f32.xlu0 %v772
        %v774 = vpop.xlane.xlu0 %773
        %v775 = vsel %vm179, %v757, -inf
        %776 = vmax.xlane.f32.xlu0 %v775
        %v777 = vpop.xlane.xlu0 %776
        %v778 = vsel %vm179, %v758, -inf
        %779 = vmax.xlane.f32.xlu0 %v778
        %v780 = vpop.xlane.xlu0 %779
        %v781 = vsel %vm179, %v759, -inf
        %782 = vmax.xlane.f32.xlu0 %v781
        %v783 = vpop.xlane.xlu0 %782
        %v784 = vsel %vm179, %v760, -inf
        %785 = vmax.xlane.f32.xlu0 %v784
        %v786 = vpop.xlane.xlu0 %785
        %v787 = vsel %vm179, %v761, -inf
        %788 = vmax.xlane.f32.xlu0 %v787
        %v789 = vpop.xlane.xlu0 %788
        %v790 = vsel %vm179, %v762, -inf
        %791 = vmax.xlane.f32.xlu0 %v790
        %v792 = vpop.xlane.xlu0 %791
        %v793 = vsel %vm179, %v763, -inf
        %794 = vmax.xlane.f32.xlu0 %v793
        %v795 = vpop.xlane.xlu0 %794
        %v796 = vsel %vm179, %v764, -inf
        %797 = vmax.xlane.f32.xlu0 %v796
        %v798 = vpop.xlane.xlu0 %797
        %v799 = vsel %vm179, %v765, -inf
        %800 = vmax.xlane.f32.xlu0 %v799
        %v801 = vpop.xlane.xlu0 %800
        %v802 = vsel %vm179, %v766, -inf
        %803 = vmax.xlane.f32.xlu0 %v802
        %v804 = vpop.xlane.xlu0 %803
        %v805 = vsel %vm179, %v767, -inf
        %806 = vmax.xlane.f32.xlu0 %v805
        %v807 = vpop.xlane.xlu0 %806
        %v808 = vsel %vm179, %v768, -inf
        %809 = vmax.xlane.f32.xlu0 %v808
        %v810 = vpop.xlane.xlu0 %809
        %v811 = vsel %vm179, %v769, -inf
        %812 = vmax.xlane.f32.xlu0 %v811
        %v813 = vpop.xlane.xlu0 %812
        %v814 = vsel %vm179, %v770, -inf
        %815 = vmax.xlane.f32.xlu0 %v814
        %v816 = vpop.xlane.xlu0 %815
        %v817 = vsel %vm179, %v771, -inf
        %818 = vmax.xlane.f32.xlu0 %v817
        %v819 = vpop.xlane.xlu0 %818
        %v820 = vsub.f32 %v756, %v774
        %v821 = vsub.f32 %v757, %v777
        %v822 = vsub.f32 %v758, %v780
        %v823 = vsub.f32 %v759, %v783
        %v824 = vsub.f32 %v760, %v786
        %v825 = vsub.f32 %v761, %v789
        %v826 = vsub.f32 %v762, %v792
        %v827 = vsub.f32 %v763, %v795
        %v828 = vsub.f32 %v764, %v798
        %v829 = vsub.f32 %v765, %v801
        %v830 = vsub.f32 %v766, %v804
        %v831 = vsub.f32 %v767, %v807
        %v832 = vsub.f32 %v768, %v810
        %v833 = vsub.f32 %v769, %v813
        %v834 = vsub.f32 %v770, %v816
        %v835 = vsub.f32 %v771, %v819
        %v836 = vmul.f32 %v820, 1.442695
        %v837 = vpow.pop %v836
        %v838 = vmul.f32 %v821, 1.442695
        %v839 = vpow.pop %v838
        %v840 = vmul.f32 %v822, 1.442695
        %v841 = vpow.pop %v840
        %v842 = vmul.f32 %v823, 1.442695
        %v843 = vpow.pop %v842
        %v844 = vmul.f32 %v824, 1.442695
        %v845 = vpow.pop %v844
        %v846 = vmul.f32 %v825, 1.442695
        %v847 = vpow.pop %v846
        %v848 = vmul.f32 %v826, 1.442695
        %v849 = vpow.pop %v848
        %v850 = vmul.f32 %v827, 1.442695
        %v851 = vpow.pop %v850
        %v852 = vmul.f32 %v828, 1.442695
        %v853 = vpow.pop %v852
        %v854 = vmul.f32 %v829, 1.442695
        %v855 = vpow.pop %v854
        %v856 = vmul.f32 %v830, 1.442695
        %v857 = vpow.pop %v856
        %v858 = vmul.f32 %v831, 1.442695
        %v859 = vpow.pop %v858
        %v860 = vmul.f32 %v832, 1.442695
        %v861 = vpow.pop %v860
        %v862 = vmul.f32 %v833, 1.442695
        %v863 = vpow.pop %v862
        %v864 = vmul.f32 %v834, 1.442695
        %v865 = vpow.pop %v864
        %v866 = vmul.f32 %v835, 1.442695
        %v867 = vpow.pop %v866
        %v868 = vsel %vm179, %v837, 0.0
        %869 = vadd.xlane.f32.xlu0 %v868
        %v870 = vpop.xlane.xlu0 %869
        %v871 = vsel %vm179, %v839, 0.0
        %872 = vadd.xlane.f32.xlu0 %v871
        %v873 = vpop.xlane.xlu0 %872
        %v874 = vsel %vm179, %v841, 0.0
        %875 = vadd.xlane.f32.xlu0 %v874
        %v876 = vpop.xlane.xlu0 %875
        %v877 = vsel %vm179, %v843, 0.0
        %878 = vadd.xlane.f32.xlu0 %v877
        %v879 = vpop.xlane.xlu0 %878
        %v880 = vsel %vm179, %v845, 0.0
        %881 = vadd.xlane.f32.xlu0 %v880
        %v882 = vpop.xlane.xlu0 %881
        %v883 = vsel %vm179, %v847, 0.0
        %884 = vadd.xlane.f32.xlu0 %v883
        %v885 = vpop.xlane.xlu0 %884
        %v886 = vsel %vm179, %v849, 0.0
        %887 = vadd.xlane.f32.xlu0 %v886
        %v888 = vpop.xlane.xlu0 %887
        %v889 = vsel %vm179, %v851, 0.0
        %890 = vadd.xlane.f32.xlu0 %v889
        %v891 = vpop.xlane.xlu0 %890
        %v892 = vsel %vm179, %v853, 0.0
        %893 = vadd.xlane.f32.xlu0 %v892
        %v894 = vpop.xlane.xlu0 %893
        %v895 = vsel %vm179, %v855, 0.0
        %896 = vadd.xlane.f32.xlu0 %v895
        %v897 = vpop.xlane.xlu0 %896
        %v898 = vsel %vm179, %v857, 0.0
        %899 = vadd.xlane.f32.xlu0 %v898
        %v900 = vpop.xlane.xlu0 %899
        %v901 = vsel %vm179, %v859, 0.0
        %902 = vadd.xlane.f32.xlu0 %v901
        %v903 = vpop.xlane.xlu0 %902
        %v904 = vsel %vm179, %v861, 0.0
        %905 = vadd.xlane.f32.xlu0 %v904
        %v906 = vpop.xlane.xlu0 %905
        %v907 = vsel %vm179, %v863, 0.0
        %908 = vadd.xlane.f32.xlu0 %v907
        %v909 = vpop.xlane.xlu0 %908
        %v910 = vsel %vm179, %v865, 0.0
        %911 = vadd.xlane.f32.xlu0 %v910
        %v912 = vpop.xlane.xlu0 %911
        %v913 = vsel %vm179, %v867, 0.0
        %914 = vadd.xlane.f32.xlu0 %v913
        %v915 = vpop.xlane.xlu0 %914
        %v916 = vrcp.pop %v870
        %v917 = vmul.f32 %v870, %v916
        %v918 = vsub.f32 1.0, %v917
        %v919 = vmul.f32 %v916, %v918
        %v920 = vadd.f32 %v916, %v919
        %vm921 = vweird.f32 %v870
        %vm922 = vweird.f32 %v916
        %vm923 = vmor %vm921, %vm922
        %v924 = vsel %vm923, %v916, %v920
        %v925 = vand.u32 2147483647, %v870
        %vm926 = vcmp.eq.f32.partialorder %v925, 8.507059e+37
        %v927 = vand.u32 %v870, 2147483648
        %v928 = vor.u32 1.1754944e-38, %v927
        %v929 = vsel %vm926, %v928, %v924
        %v930 = vmul.f32 %v837, %v929
        %v931 = vrcp.pop %v873
        %v932 = vmul.f32 %v873, %v931
        %v933 = vsub.f32 1.0, %v932
        %v934 = vmul.f32 %v931, %v933
        %v935 = vadd.f32 %v931, %v934
        %vm936 = vweird.f32 %v873
        %vm937 = vweird.f32 %v931
        %vm938 = vmor %vm936, %vm937
        %v939 = vsel %vm938, %v931, %v935
        %v940 = vand.u32 2147483647, %v873
        %vm941 = vcmp.eq.f32.partialorder %v940, 8.507059e+37
        %v942 = vand.u32 %v873, 2147483648
        %v943 = vor.u32 1.1754944e-38, %v942
        %v944 = vsel %vm941, %v943, %v939
        %v945 = vmul.f32 %v839, %v944
        %v946 = vrcp.pop %v876
        %v947 = vmul.f32 %v876, %v946
        %v948 = vsub.f32 1.0, %v947
        %v949 = vmul.f32 %v946, %v948
        %v950 = vadd.f32 %v946, %v949
        %vm951 = vweird.f32 %v876
        %vm952 = vweird.f32 %v946
        %vm953 = vmor %vm951, %vm952
        %v954 = vsel %vm953, %v946, %v950
        %v955 = vand.u32 2147483647, %v876
        %vm956 = vcmp.eq.f32.partialorder %v955, 8.507059e+37
        %v957 = vand.u32 %v876, 2147483648
        %v958 = vor.u32 1.1754944e-38, %v957
        %v959 = vsel %vm956, %v958, %v954
        %v960 = vmul.f32 %v841, %v959
        %v961 = vrcp.pop %v879
        %v962 = vmul.f32 %v879, %v961
        %v963 = vsub.f32 1.0, %v962
        %v964 = vmul.f32 %v961, %v963
        %v965 = vadd.f32 %v961, %v964
        %vm966 = vweird.f32 %v879
        %vm967 = vweird.f32 %v961
        %vm968 = vmor %vm966, %vm967
        %v969 = vsel %vm968, %v961, %v965
        %v970 = vand.u32 2147483647, %v879
        %vm971 = vcmp.eq.f32.partialorder %v970, 8.507059e+37
        %v972 = vand.u32 %v879, 2147483648
        %v973 = vor.u32 1.1754944e-38, %v972
        %v974 = vsel %vm971, %v973, %v969
        %v975 = vmul.f32 %v843, %v974
        %v976 = vrcp.pop %v882
        %v977 = vmul.f32 %v882, %v976
        %v978 = vsub.f32 1.0, %v977
        %v979 = vmul.f32 %v976, %v978
        %v980 = vadd.f32 %v976, %v979
        %vm981 = vweird.f32 %v882
        %vm982 = vweird.f32 %v976
        %vm983 = vmor %vm981, %vm982
        %v984 = vsel %vm983, %v976, %v980
        %v985 = vand.u32 2147483647, %v882
        %vm986 = vcmp.eq.f32.partialorder %v985, 8.507059e+37
        %v987 = vand.u32 %v882, 2147483648
        %v988 = vor.u32 1.1754944e-38, %v987
        %v989 = vsel %vm986, %v988, %v984
        %v990 = vmul.f32 %v845, %v989
        %v991 = vrcp.pop %v885
        %v992 = vmul.f32 %v885, %v991
        %v993 = vsub.f32 1.0, %v992
        %v994 = vmul.f32 %v991, %v993
        %v995 = vadd.f32 %v991, %v994
        %vm996 = vweird.f32 %v885
        %vm997 = vweird.f32 %v991
        %vm998 = vmor %vm996, %vm997
        %v999 = vsel %vm998, %v991, %v995
        %v1000 = vand.u32 2147483647, %v885
        %vm1001 = vcmp.eq.f32.partialorder %v1000, 8.507059e+37
        %v1002 = vand.u32 %v885, 2147483648
        %v1003 = vor.u32 1.1754944e-38, %v1002
        %v1004 = vsel %vm1001, %v1003, %v999
        %v1005 = vmul.f32 %v847, %v1004
        %v1006 = vrcp.pop %v888
        %v1007 = vmul.f32 %v888, %v1006
        %v1008 = vsub.f32 1.0, %v1007
        %v1009 = vmul.f32 %v1006, %v1008
        %v1010 = vadd.f32 %v1006, %v1009
        %vm1011 = vweird.f32 %v888
        %vm1012 = vweird.f32 %v1006
        %vm1013 = vmor %vm1011, %vm1012
        %v1014 = vsel %vm1013, %v1006, %v1010
        %v1015 = vand.u32 2147483647, %v888
        %vm1016 = vcmp.eq.f32.partialorder %v1015, 8.507059e+37
        %v1017 = vand.u32 %v888, 2147483648
        %v1018 = vor.u32 1.1754944e-38, %v1017
        %v1019 = vsel %vm1016, %v1018, %v1014
        %v1020 = vmul.f32 %v849, %v1019
        %v1021 = vrcp.pop %v891
        %v1022 = vmul.f32 %v891, %v1021
        %v1023 = vsub.f32 1.0, %v1022
        %v1024 = vmul.f32 %v1021, %v1023
        %v1025 = vadd.f32 %v1021, %v1024
        %vm1026 = vweird.f32 %v891
        %vm1027 = vweird.f32 %v1021
        %vm1028 = vmor %vm1026, %vm1027
        %v1029 = vsel %vm1028, %v1021, %v1025
        %v1030 = vand.u32 2147483647, %v891
        %vm1031 = vcmp.eq.f32.partialorder %v1030, 8.507059e+37
        %v1032 = vand.u32 %v891, 2147483648
        %v1033 = vor.u32 1.1754944e-38, %v1032
        %v1034 = vsel %vm1031, %v1033, %v1029
        %v1035 = vmul.f32 %v851, %v1034
        %v1036 = vrcp.pop %v894
        %v1037 = vmul.f32 %v894, %v1036
        %v1038 = vsub.f32 1.0, %v1037
        %v1039 = vmul.f32 %v1036, %v1038
        %v1040 = vadd.f32 %v1036, %v1039
        %vm1041 = vweird.f32 %v894
        %vm1042 = vweird.f32 %v1036
        %vm1043 = vmor %vm1041, %vm1042
        %v1044 = vsel %vm1043, %v1036, %v1040
        %v1045 = vand.u32 2147483647, %v894
        %vm1046 = vcmp.eq.f32.partialorder %v1045, 8.507059e+37
        %v1047 = vand.u32 %v894, 2147483648
        %v1048 = vor.u32 1.1754944e-38, %v1047
        %v1049 = vsel %vm1046, %v1048, %v1044
        %v1050 = vmul.f32 %v853, %v1049
        %v1051 = vrcp.pop %v897
        %v1052 = vmul.f32 %v897, %v1051
        %v1053 = vsub.f32 1.0, %v1052
        %v1054 = vmul.f32 %v1051, %v1053
        %v1055 = vadd.f32 %v1051, %v1054
        %vm1056 = vweird.f32 %v897
        %vm1057 = vweird.f32 %v1051
        %vm1058 = vmor %vm1056, %vm1057
        %v1059 = vsel %vm1058, %v1051, %v1055
        %v1060 = vand.u32 2147483647, %v897
        %vm1061 = vcmp.eq.f32.partialorder %v1060, 8.507059e+37
        %v1062 = vand.u32 %v897, 2147483648
        %v1063 = vor.u32 1.1754944e-38, %v1062
        %v1064 = vsel %vm1061, %v1063, %v1059
        %v1065 = vmul.f32 %v855, %v1064
        %v1066 = vrcp.pop %v900
        %v1067 = vmul.f32 %v900, %v1066
        %v1068 = vsub.f32 1.0, %v1067
        %v1069 = vmul.f32 %v1066, %v1068
        %v1070 = vadd.f32 %v1066, %v1069
        %vm1071 = vweird.f32 %v900
        %vm1072 = vweird.f32 %v1066
        %vm1073 = vmor %vm1071, %vm1072
        %v1074 = vsel %vm1073, %v1066, %v1070
        %v1075 = vand.u32 2147483647, %v900
        %vm1076 = vcmp.eq.f32.partialorder %v1075, 8.507059e+37
        %v1077 = vand.u32 %v900, 2147483648
        %v1078 = vor.u32 1.1754944e-38, %v1077
        %v1079 = vsel %vm1076, %v1078, %v1074
        %v1080 = vmul.f32 %v857, %v1079
        %v1081 = vrcp.pop %v903
        %v1082 = vmul.f32 %v903, %v1081
        %v1083 = vsub.f32 1.0, %v1082
        %v1084 = vmul.f32 %v1081, %v1083
        %v1085 = vadd.f32 %v1081, %v1084
        %vm1086 = vweird.f32 %v903
        %vm1087 = vweird.f32 %v1081
        %vm1088 = vmor %vm1086, %vm1087
        %v1089 = vsel %vm1088, %v1081, %v1085
        %v1090 = vand.u32 2147483647, %v903
        %vm1091 = vcmp.eq.f32.partialorder %v1090, 8.507059e+37
        %v1092 = vand.u32 %v903, 2147483648
        %v1093 = vor.u32 1.1754944e-38, %v1092
        %v1094 = vsel %vm1091, %v1093, %v1089
        %v1095 = vmul.f32 %v859, %v1094
        %v1096 = vrcp.pop %v906
        %v1097 = vmul.f32 %v906, %v1096
        %v1098 = vsub.f32 1.0, %v1097
        %v1099 = vmul.f32 %v1096, %v1098
        %v1100 = vadd.f32 %v1096, %v1099
        %vm1101 = vweird.f32 %v906
        %vm1102 = vweird.f32 %v1096
        %vm1103 = vmor %vm1101, %vm1102
        %v1104 = vsel %vm1103, %v1096, %v1100
        %v1105 = vand.u32 2147483647, %v906
        %vm1106 = vcmp.eq.f32.partialorder %v1105, 8.507059e+37
        %v1107 = vand.u32 %v906, 2147483648
        %v1108 = vor.u32 1.1754944e-38, %v1107
        %v1109 = vsel %vm1106, %v1108, %v1104
        %v1110 = vmul.f32 %v861, %v1109
        %v1111 = vrcp.pop %v909
        %v1112 = vmul.f32 %v909, %v1111
        %v1113 = vsub.f32 1.0, %v1112
        %v1114 = vmul.f32 %v1111, %v1113
        %v1115 = vadd.f32 %v1111, %v1114
        %vm1116 = vweird.f32 %v909
        %vm1117 = vweird.f32 %v1111
        %vm1118 = vmor %vm1116, %vm1117
        %v1119 = vsel %vm1118, %v1111, %v1115
        %v1120 = vand.u32 2147483647, %v909
        %vm1121 = vcmp.eq.f32.partialorder %v1120, 8.507059e+37
        %v1122 = vand.u32 %v909, 2147483648
        %v1123 = vor.u32 1.1754944e-38, %v1122
        %v1124 = vsel %vm1121, %v1123, %v1119
        %v1125 = vmul.f32 %v863, %v1124
        %v1126 = vrcp.pop %v912
        %v1127 = vmul.f32 %v912, %v1126
        %v1128 = vsub.f32 1.0, %v1127
        %v1129 = vmul.f32 %v1126, %v1128
        %v1130 = vadd.f32 %v1126, %v1129
        %vm1131 = vweird.f32 %v912
        %vm1132 = vweird.f32 %v1126
        %vm1133 = vmor %vm1131, %vm1132
        %v1134 = vsel %vm1133, %v1126, %v1130
        %v1135 = vand.u32 2147483647, %v912
        %vm1136 = vcmp.eq.f32.partialorder %v1135, 8.507059e+37
        %v1137 = vand.u32 %v912, 2147483648
        %v1138 = vor.u32 1.1754944e-38, %v1137
        %v1139 = vsel %vm1136, %v1138, %v1134
        %v1140 = vmul.f32 %v865, %v1139
        %v1141 = vrcp.pop %v915
        %v1142 = vmul.f32 %v915, %v1141
        %v1143 = vsub.f32 1.0, %v1142
        %v1144 = vmul.f32 %v1141, %v1143
        %v1145 = vadd.f32 %v1141, %v1144
        %vm1146 = vweird.f32 %v915
        %vm1147 = vweird.f32 %v1141
        %vm1148 = vmor %vm1146, %vm1147
        %v1149 = vsel %vm1148, %v1141, %v1145
        %v1150 = vand.u32 2147483647, %v915
        %vm1151 = vcmp.eq.f32.partialorder %v1150, 8.507059e+37
        %v1152 = vand.u32 %v915, 2147483648
        %v1153 = vor.u32 1.1754944e-38, %v1152
        %v1154 = vsel %vm1151, %v1153, %v1149
        %v1155 = vmul.f32 %v867, %v1154
        %1156 = vrot.lane.b32.xlu0 %v504, 64
        %v1157 = vpop.permute.xlu0 %1156
        %1158 = vrot.lane.b32.xlu0 %v507, 64
        %v1159 = vpop.permute.xlu0 %1158
        %1160 = vrot.lane.b32.xlu0 %v510, 64
        %v1161 = vpop.permute.xlu0 %1160
        %1162 = vrot.lane.b32.xlu0 %v513, 64
        %v1163 = vpop.permute.xlu0 %1162
        %v1169 = vsel %vm179, %v930, 0
        %v1172 = vsel %vm179, %v945, 0
        %v1175 = vsel %vm179, %v960, 0
        %v1178 = vsel %vm179, %v975, 0
        %1180 = vmatpush.msra.mxu0 0.0
        %1181 = vmatpush.msra.mxu0 0.0
        %1182 = vmatpush.msra.mxu0 0.0
        %1183 = vmatpush.msra.mxu0 0.0
        %1184 = vmatpush.msra.mxu0 0.0
        %1185 = vmatpush.msra.mxu0 0.0
        %1186 = vmatpush.msra.mxu0 0.0
        %1187 = vmatpush.msra.mxu0 0.0
        %1188 = vmatpush.msra.mxu0 0.0
        %1189 = vmatpush.msra.mxu0 0.0
        %1190 = vmatpush.msra.mxu0 0.0
        %1191 = vmatpush.msra.mxu0 0.0
        %1192 = vmatpush.msra.mxu0 %v1163
        %1193 = vmatpush.msra.mxu0 %v1161
        %1194 = vmatpush.msra.mxu0 %v1159
        %1195 = vmatpush.msra.mxu0 %v1157
        %1196 = vmatmul.f32.gmra.mxu0 %v1169
        %v1197 = vpop.f32.mrf.mxu0
        %v1198 = vadd.f32 0.0, %v1197
        %1199 = vmatmul.f32.gmra.mxu0 %v1172
        %v1200 = vpop.f32.mrf.mxu0
        %v1201 = vadd.f32 0.0, %v1200
        %1202 = vmatmul.f32.gmra.mxu0 %v1175
        %v1203 = vpop.f32.mrf.mxu0
        %v1204 = vadd.f32 0.0, %v1203
        %1205 = vmatmul.f32.gmra.mxu0 %v1178
        %v1206 = vpop.f32.mrf.mxu0
        %v1207 = vadd.f32 0.0, %v1206
        %1208 = vdwg.mxu0
        %1209 = vrot.lane.b32.xlu0 %v520, 64
        %v1210 = vpop.permute.xlu0 %1209
        %1211 = vrot.lane.b32.xlu0 %v522, 64
        %v1212 = vpop.permute.xlu0 %1211
        %1213 = vrot.lane.b32.xlu0 %v524, 64
        %v1214 = vpop.permute.xlu0 %1213
        %1215 = vrot.lane.b32.xlu0 %v526, 64
        %v1216 = vpop.permute.xlu0 %1215
        %v1222 = vsel %vm179, %v990, 0
        %v1225 = vsel %vm179, %v1005, 0
        %v1228 = vsel %vm179, %v1020, 0
        %v1231 = vsel %vm179, %v1035, 0
        %1233 = vmatpush.msra.mxu0 0.0
        %1234 = vmatpush.msra.mxu0 0.0
        %1235 = vmatpush.msra.mxu0 0.0
        %1236 = vmatpush.msra.mxu0 0.0
        %1237 = vmatpush.msra.mxu0 0.0
        %1238 = vmatpush.msra.mxu0 0.0
        %1239 = vmatpush.msra.mxu0 0.0
        %1240 = vmatpush.msra.mxu0 0.0
        %1241 = vmatpush.msra.mxu0 0.0
        %1242 = vmatpush.msra.mxu0 0.0
        %1243 = vmatpush.msra.mxu0 0.0
        %1244 = vmatpush.msra.mxu0 0.0
        %1245 = vmatpush.msra.mxu0 %v1216
        %1246 = vmatpush.msra.mxu0 %v1214
        %1247 = vmatpush.msra.mxu0 %v1212
        %1248 = vmatpush.msra.mxu0 %v1210
        %1249 = vmatmul.f32.gmra.mxu0 %v1222
        %v1250 = vpop.f32.mrf.mxu0
        %v1251 = vadd.f32 0.0, %v1250
        %1252 = vmatmul.f32.gmra.mxu0 %v1225
        %v1253 = vpop.f32.mrf.mxu0
        %v1254 = vadd.f32 0.0, %v1253
        %1255 = vmatmul.f32.gmra.mxu0 %v1228
        %v1256 = vpop.f32.mrf.mxu0
        %v1257 = vadd.f32 0.0, %v1256
        %1258 = vmatmul.f32.gmra.mxu0 %v1231
        %v1259 = vpop.f32.mrf.mxu0
        %v1260 = vadd.f32 0.0, %v1259
        %1261 = vdwg.mxu0
        %1262 = vrot.lane.b32.xlu0 %v528, 64
        %v1263 = vpop.permute.xlu0 %1262
        %1264 = vrot.lane.b32.xlu0 %v530, 64
        %v1265 = vpop.permute.xlu0 %1264
        %1266 = vrot.lane.b32.xlu0 %v532, 64
        %v1267 = vpop.permute.xlu0 %1266
        %1268 = vrot.lane.b32.xlu0 %v534, 64
        %v1269 = vpop.permute.xlu0 %1268
        %v1275 = vsel %vm179, %v1050, 0
        %v1278 = vsel %vm179, %v1065, 0
        %v1281 = vsel %vm179, %v1080, 0
        %v1284 = vsel %vm179, %v1095, 0
        %1286 = vmatpush.msra.mxu0 0.0
        %1287 = vmatpush.msra.mxu0 0.0
        %1288 = vmatpush.msra.mxu0 0.0
        %1289 = vmatpush.msra.mxu0 0.0
        %1290 = vmatpush.msra.mxu0 0.0
        %1291 = vmatpush.msra.mxu0 0.0
        %1292 = vmatpush.msra.mxu0 0.0
        %1293 = vmatpush.msra.mxu0 0.0
        %1294 = vmatpush.msra.mxu0 0.0
        %1295 = vmatpush.msra.mxu0 0.0
        %1296 = vmatpush.msra.mxu0 0.0
        %1297 = vmatpush.msra.mxu0 0.0
        %1298 = vmatpush.msra.mxu0 %v1269
        %1299 = vmatpush.msra.mxu0 %v1267
        %1300 = vmatpush.msra.mxu0 %v1265
        %1301 = vmatpush.msra.mxu0 %v1263
        %1302 = vmatmul.f32.gmra.mxu0 %v1275
        %v1303 = vpop.f32.mrf.mxu0
        %v1304 = vadd.f32 0.0, %v1303
        %1305 = vmatmul.f32.gmra.mxu0 %v1278
        %v1306 = vpop.f32.mrf.mxu0
        %v1307 = vadd.f32 0.0, %v1306
        %1308 = vmatmul.f32.gmra.mxu0 %v1281
        %v1309 = vpop.f32.mrf.mxu0
        %v1310 = vadd.f32 0.0, %v1309
        %1311 = vmatmul.f32.gmra.mxu0 %v1284
        %v1312 = vpop.f32.mrf.mxu0
        %v1313 = vadd.f32 0.0, %v1312
        %1314 = vdwg.mxu0
        %1315 = vrot.lane.b32.xlu0 %v536, 64
        %v1316 = vpop.permute.xlu0 %1315
        %1317 = vrot.lane.b32.xlu0 %v538, 64
        %v1318 = vpop.permute.xlu0 %1317
        %1319 = vrot.lane.b32.xlu0 %v540, 64
        %v1320 = vpop.permute.xlu0 %1319
        %1321 = vrot.lane.b32.xlu0 %v542, 64
        %v1322 = vpop.permute.xlu0 %1321
        %v1328 = vsel %vm179, %v1110, 0
        %v1331 = vsel %vm179, %v1125, 0
        %v1334 = vsel %vm179, %v1140, 0
        %v1337 = vsel %vm179, %v1155, 0
        %1339 = vmatpush.msra.mxu0 0.0
        %1340 = vmatpush.msra.mxu0 0.0
        %1341 = vmatpush.msra.mxu0 0.0
        %1342 = vmatpush.msra.mxu0 0.0
        %1343 = vmatpush.msra.mxu0 0.0
        %1344 = vmatpush.msra.mxu0 0.0
        %1345 = vmatpush.msra.mxu0 0.0
        %1346 = vmatpush.msra.mxu0 0.0
        %1347 = vmatpush.msra.mxu0 0.0
        %1348 = vmatpush.msra.mxu0 0.0
        %1349 = vmatpush.msra.mxu0 0.0
        %1350 = vmatpush.msra.mxu0 0.0
        %1351 = vmatpush.msra.mxu0 %v1322
        %1352 = vmatpush.msra.mxu0 %v1320
        %1353 = vmatpush.msra.mxu0 %v1318
        %1354 = vmatpush.msra.mxu0 %v1316
        %1355 = vmatmul.f32.gmra.mxu0 %v1328
        %v1356 = vpop.f32.mrf.mxu0
        %v1357 = vadd.f32 0.0, %v1356
        %1358 = vmatmul.f32.gmra.mxu0 %v1331
        %v1359 = vpop.f32.mrf.mxu0
        %v1360 = vadd.f32 0.0, %v1359
        %1361 = vmatmul.f32.gmra.mxu0 %v1334
        %v1362 = vpop.f32.mrf.mxu0
        %v1363 = vadd.f32 0.0, %v1362
        %1364 = vmatmul.f32.gmra.mxu0 %v1337
        %v1365 = vpop.f32.mrf.mxu0
        %v1366 = vadd.f32 0.0, %v1365
        %1367 = vdwg.mxu0
        %1372 = vrot.lane.b32.xlu0 %v1251, 8
        %v1373 = vpop.permute.xlu0 %1372
        %1374 = vrot.lane.b32.xlu0 %v1254, 8
        %v1375 = vpop.permute.xlu0 %1374
        %1376 = vrot.lane.b32.xlu0 %v1257, 8
        %v1377 = vpop.permute.xlu0 %1376
        %1378 = vrot.lane.b32.xlu0 %v1260, 8
        %v1379 = vpop.permute.xlu0 %1378
        %1388 = vrot.lane.b32.xlu0 %v1304, 16
        %v1389 = vpop.permute.xlu0 %1388
        %1390 = vrot.lane.b32.xlu0 %v1307, 16
        %v1391 = vpop.permute.xlu0 %1390
        %1392 = vrot.lane.b32.xlu0 %v1310, 16
        %v1393 = vpop.permute.xlu0 %1392
        %1394 = vrot.lane.b32.xlu0 %v1313, 16
        %v1395 = vpop.permute.xlu0 %1394
        %1404 = vrot.lane.b32.xlu0 %v1357, 24
        %v1405 = vpop.permute.xlu0 %1404
        %1406 = vrot.lane.b32.xlu0 %v1360, 24
        %v1407 = vpop.permute.xlu0 %1406
        %1408 = vrot.lane.b32.xlu0 %v1363, 24
        %v1409 = vpop.permute.xlu0 %1408
        %1410 = vrot.lane.b32.xlu0 %v1366, 24
        %v1411 = vpop.permute.xlu0 %1410
        %v1416 = vsel %vm551, %v1198, %v1373
        %v1417 = vsel %vm551, %v1201, %v1375
        %v1418 = vsel %vm551, %v1204, %v1377
        %v1419 = vsel %vm551, %v1207, %v1379
        %vm1420 = vcmask 130048
        %v1421 = vsel %vm1420, %v1416, %v1389
        %v1422 = vsel %vm1420, %v1417, %v1391
        %v1423 = vsel %vm1420, %v1418, %v1393
        %v1424 = vsel %vm1420, %v1419, %v1395
        %vm1425 = vcmask 195584
        %v1426 = vsel %vm1425, %v1421, %v1405
        %v1427 = vsel %vm1425, %v1422, %v1407
        %v1428 = vsel %vm1425, %v1423, %v1409
        %v1429 = vsel %vm1425, %v1424, %v1411
        %v1430 = vld [vmem:[%s1 + $0x60] sm:$0xff]
        %v1431 = vld [vmem:[%s1 + $0x68] sm:$0xff]
        %v1432 = vld [vmem:[%s1 + $0x70] sm:$0xff]
        %v1433 = vld [vmem:[%s1 + $0x78] sm:$0xff]
        %v1434 = vld [vmem:[%s2 + $0x4] sm:$0x1]
        %v1435 = vperm.slane %v1434, 0
        %v1437 = vsel %vm179, %v1426, 0
        %v1440 = vsel %vm179, %v1427, 0
        %v1443 = vsel %vm179, %v1428, 0
        %v1446 = vsel %vm179, %v1429, 0
        %1448 = vmatpush.msra.mxu0 0.0
        %1449 = vmatpush.msra.mxu0 0.0
        %1450 = vmatpush.msra.mxu0 0.0
        %1451 = vmatpush.msra.mxu0 0.0
        %1452 = vmatpush.msra.mxu0 0.0
        %1453 = vmatpush.msra.mxu0 0.0
        %1454 = vmatpush.msra.mxu0 0.0
        %1455 = vmatpush.msra.mxu0 0.0
        %1456 = vmatpush.msra.mxu0 0.0
        %1457 = vmatpush.msra.mxu0 0.0
        %1458 = vmatpush.msra.mxu0 0.0
        %1459 = vmatpush.msra.mxu0 0.0
        %1460 = vmatpush.msra.mxu0 %v1433
        %1461 = vmatpush.msra.mxu0 %v1432
        %1462 = vmatpush.msra.mxu0 %v1431
        %1463 = vmatpush.msra.mxu0 %v1430
        %1464 = vmatmul.f32.gmra.mxu0 %v1437
        %v1465 = vpop.f32.mrf.mxu0
        %v1466 = vadd.f32 %v1435, %v1465
        %1467 = vmatmul.f32.gmra.mxu0 %v1440
        %v1468 = vpop.f32.mrf.mxu0
        %v1469 = vadd.f32 %v1435, %v1468
        %1470 = vmatmul.f32.gmra.mxu0 %v1443
        %v1471 = vpop.f32.mrf.mxu0
        %v1472 = vadd.f32 %v1435, %v1471
        %1473 = vmatmul.f32.gmra.mxu0 %v1446
        %v1474 = vpop.f32.mrf.mxu0
        %v1475 = vadd.f32 %v1435, %v1474
        %1476 = vdwg.mxu0
        %v1477 = vadd.f32 %v464, %v1466
        %v1478 = vadd.f32 %v465, %v1469
        %v1479 = vadd.f32 %v466, %v1472
        %v1480 = vadd.f32 %v467, %v1475
        %v1481 = vld [vmem:[%s2 + $0x7] sm:$0x1]
        %v1482 = vld [vmem:[%s2 + $0x8] sm:$0x1]
        %v1483 = vsel %vm179, %v1477, 0.0
        %1484 = vadd.xlane.f32.xlu0 %v1483
        %v1485 = vpop.xlane.xlu0 %1484
        %v1486 = vsel %vm179, %v1478, 0.0
        %1487 = vadd.xlane.f32.xlu0 %v1486
        %v1488 = vpop.xlane.xlu0 %1487
        %v1489 = vsel %vm179, %v1479, 0.0
        %1490 = vadd.xlane.f32.xlu0 %v1489
        %v1491 = vpop.xlane.xlu0 %1490
        %v1492 = vsel %vm179, %v1480, 0.0
        %1493 = vadd.xlane.f32.xlu0 %v1492
        %v1494 = vpop.xlane.xlu0 %1493
        %v1495 = vmul.f32 %v1485, %v381
        %v1496 = vmul.f32 %v1488, %v381
        %v1497 = vmul.f32 %v1491, %v381
        %v1498 = vmul.f32 %v1494, %v381
        %v1499 = vsub.f32 %v1477, %v1495
        %v1500 = vsub.f32 %v1478, %v1496
        %v1501 = vsub.f32 %v1479, %v1497
        %v1502 = vsub.f32 %v1480, %v1498
        %v1503 = vmul.f32 %v1499, %v1499
        %v1504 = vmul.f32 %v1500, %v1500
        %v1505 = vmul.f32 %v1501, %v1501
        %v1506 = vmul.f32 %v1502, %v1502
        %v1507 = vsel %vm179, %v1503, 0.0
        %1508 = vadd.xlane.f32.xlu0 %v1507
        %v1509 = vpop.xlane.xlu0 %1508
        %v1510 = vsel %vm179, %v1504, 0.0
        %1511 = vadd.xlane.f32.xlu0 %v1510
        %v1512 = vpop.xlane.xlu0 %1511
        %v1513 = vsel %vm179, %v1505, 0.0
        %1514 = vadd.xlane.f32.xlu0 %v1513
        %v1515 = vpop.xlane.xlu0 %1514
        %v1516 = vsel %vm179, %v1506, 0.0
        %1517 = vadd.xlane.f32.xlu0 %v1516
        %v1518 = vpop.xlane.xlu0 %1517
        %v1519 = vmul.f32 %v1509, %v381
        %v1520 = vmul.f32 %v1512, %v381
        %v1521 = vmul.f32 %v1515, %v381
        %v1522 = vmul.f32 %v1518, %v381
        %v1523 = vadd.f32 %v1519, 1e-05
        %v1524 = vadd.f32 %v1520, 1e-05
        %v1525 = vadd.f32 %v1521, 1e-05
        %v1526 = vadd.f32 %v1522, 1e-05
        %v1527 = vrsqrt.pop %v1523
        %v1528 = vmul.f32 %v1527, %v1523
        %v1529 = vmul.f32 %v1528, %v1527
        %v1530 = vmul.f32 0.5, %v1529
        %v1531 = vsub.f32 1.5, %v1530
        %v1532 = vmul.f32 %v1527, %v1531
        %vm1533 = vweird.f32 %v1523
        %vm1534 = vweird.f32 %v1527
        %vm1535 = vmor %vm1533, %vm1534
        %v1536 = vsel %vm1535, %v1527, %v1532
        %v1537 = vrsqrt.pop %v1524
        %v1538 = vmul.f32 %v1537, %v1524
        %v1539 = vmul.f32 %v1538, %v1537
        %v1540 = vmul.f32 0.5, %v1539
        %v1541 = vsub.f32 1.5, %v1540
        %v1542 = vmul.f32 %v1537, %v1541
        %vm1543 = vweird.f32 %v1524
        %vm1544 = vweird.f32 %v1537
        %vm1545 = vmor %vm1543, %vm1544
        %v1546 = vsel %vm1545, %v1537, %v1542
        %v1547 = vrsqrt.pop %v1525
        %v1548 = vmul.f32 %v1547, %v1525
        %v1549 = vmul.f32 %v1548, %v1547
        %v1550 = vmul.f32 0.5, %v1549
        %v1551 = vsub.f32 1.5, %v1550
        %v1552 = vmul.f32 %v1547, %v1551
        %vm1553 = vweird.f32 %v1525
        %vm1554 = vweird.f32 %v1547
        %vm1555 = vmor %vm1553, %vm1554
        %v1556 = vsel %vm1555, %v1547, %v1552
        %v1557 = vrsqrt.pop %v1526
        %v1558 = vmul.f32 %v1557, %v1526
        %v1559 = vmul.f32 %v1558, %v1557
        %v1560 = vmul.f32 0.5, %v1559
        %v1561 = vsub.f32 1.5, %v1560
        %v1562 = vmul.f32 %v1557, %v1561
        %vm1563 = vweird.f32 %v1526
        %vm1564 = vweird.f32 %v1557
        %vm1565 = vmor %vm1563, %vm1564
        %v1566 = vsel %vm1565, %v1557, %v1562
        %v1567 = vmul.f32 %v1499, %v1536
        %v1568 = vmul.f32 %v1500, %v1546
        %v1569 = vmul.f32 %v1501, %v1556
        %v1570 = vmul.f32 %v1502, %v1566
        %v1571 = vperm.slane %v1481, 0
        %v1572 = vmul.f32 %v1567, %v1571
        %v1573 = vmul.f32 %v1568, %v1571
        %v1574 = vmul.f32 %v1569, %v1571
        %v1575 = vmul.f32 %v1570, %v1571
        %v1576 = vperm.slane %v1482, 0
        %v1577 = vadd.f32 %v1572, %v1576
        %v1578 = vadd.f32 %v1573, %v1576
        %v1579 = vadd.f32 %v1574, %v1576
        %v1580 = vadd.f32 %v1575, %v1576
        %v1581 = vld [vmem:[%s1 + $0xa0] sm:$0xff]
        %v1582 = vld [vmem:[%s1 + $0xa8] sm:$0xff]
        %v1583 = vld [vmem:[%s1 + $0xb0] sm:$0xff]
        %v1584 = vld [vmem:[%s1 + $0xb8] sm:$0xff]
        %v1585 = vld [vmem:[%s2 + $0x5] sm:$0x1]
        %v1586 = vperm.slane %v1585, 0
        %v1588 = vsel %vm179, %v1577, 0
        %v1591 = vsel %vm179, %v1578, 0
        %v1594 = vsel %vm179, %v1579, 0
        %v1597 = vsel %vm179, %v1580, 0
        %1599 = vmatpush.msra.mxu0 0.0
        %1600 = vmatpush.msra.mxu0 0.0
        %1601 = vmatpush.msra.mxu0 0.0
        %1602 = vmatpush.msra.mxu0 0.0
        %1603 = vmatpush.msra.mxu0 0.0
        %1604 = vmatpush.msra.mxu0 0.0
        %1605 = vmatpush.msra.mxu0 0.0
        %1606 = vmatpush.msra.mxu0 0.0
        %1607 = vmatpush.msra.mxu0 0.0
        %1608 = vmatpush.msra.mxu0 0.0
        %1609 = vmatpush.msra.mxu0 0.0
        %1610 = vmatpush.msra.mxu0 0.0
        %1611 = vmatpush.msra.mxu0 %v1584
        %1612 = vmatpush.msra.mxu0 %v1583
        %1613 = vmatpush.msra.mxu0 %v1582
        %1614 = vmatpush.msra.mxu0 %v1581
        %1615 = vmatmul.f32.gmra.mxu0 %v1588
        %v1616 = vpop.f32.mrf.mxu0
        %v1617 = vadd.f32 %v1586, %v1616
        %1618 = vmatmul.f32.gmra.mxu0 %v1591
        %v1619 = vpop.f32.mrf.mxu0
        %v1620 = vadd.f32 %v1586, %v1619
        %1621 = vmatmul.f32.gmra.mxu0 %v1594
        %v1622 = vpop.f32.mrf.mxu0
        %v1623 = vadd.f32 %v1586, %v1622
        %1624 = vmatmul.f32.gmra.mxu0 %v1597
        %v1625 = vpop.f32.mrf.mxu0
        %v1626 = vadd.f32 %v1586, %v1625
        %1627 = vdwg.mxu0
        %v1628 = vmax.f32 %v1617, 0.0
        %v1629 = vmax.f32 %v1620, 0.0
        %v1630 = vmax.f32 %v1623, 0.0
        %v1631 = vmax.f32 %v1626, 0.0
        %v1632 = vld [vmem:[%s1 + $0xe0] sm:$0xff]
        %v1633 = vld [vmem:[%s1 + $0xe8] sm:$0xff]
        %v1634 = vld [vmem:[%s1 + $0xf0] sm:$0xff]
        %v1635 = vld [vmem:[%s1 + $0xf8] sm:$0xff]
        %v1636 = vld [vmem:[%s1 + $0x100] sm:$0xff]
        %v1637 = vld [vmem:[%s1 + $0x108] sm:$0xff]
        %v1638 = vld [vmem:[%s1 + $0x110] sm:$0xff]
        %v1639 = vld [vmem:[%s1 + $0x118] sm:$0xff]
        %v1640 = vld [vmem:[%s2 + $0x6] sm:$0x1]
        %v1641 = vperm.slane %v1640, 0
        %vm1642 = vcmask 523264
        %v1644 = vsel %vm1642, %v1628, 0
        %v1647 = vsel %vm1642, %v1629, 0
        %v1650 = vsel %vm1642, %v1630, 0
        %v1653 = vsel %vm1642, %v1631, 0
        %1655 = vmatpush.msra.mxu0 0.0
        %1656 = vmatpush.msra.mxu0 0.0
        %1657 = vmatpush.msra.mxu0 0.0
        %1658 = vmatpush.msra.mxu0 0.0
        %1659 = vmatpush.msra.mxu0 0.0
        %1660 = vmatpush.msra.mxu0 0.0
        %1661 = vmatpush.msra.mxu0 0.0
        %1662 = vmatpush.msra.mxu0 0.0
        %1663 = vmatpush.msra.mxu0 %v1639
        %1664 = vmatpush.msra.mxu0 %v1638
        %1665 = vmatpush.msra.mxu0 %v1637
        %1666 = vmatpush.msra.mxu0 %v1636
        %1667 = vmatpush.msra.mxu0 %v1635
        %1668 = vmatpush.msra.mxu0 %v1634
        %1669 = vmatpush.msra.mxu0 %v1633
        %1670 = vmatpush.msra.mxu0 %v1632
        %1671 = vmatmul.f32.gmra.mxu0 %v1644
        %v1672 = vpop.f32.mrf.mxu0
        %v1673 = vadd.f32 %v1641, %v1672
        %1674 = vmatmul.f32.gmra.mxu0 %v1647
        %v1675 = vpop.f32.mrf.mxu0
        %v1676 = vadd.f32 %v1641, %v1675
        %1677 = vmatmul.f32.gmra.mxu0 %v1650
        %v1678 = vpop.f32.mrf.mxu0
        %v1679 = vadd.f32 %v1641, %v1678
        %1680 = vmatmul.f32.gmra.mxu0 %v1653
        %v1681 = vpop.f32.mrf.mxu0
        %v1682 = vadd.f32 %v1641, %v1681
        %1683 = vdwg.mxu0
        %v1684 = vadd.f32 %v1577, %v1673
        %v1685 = vadd.f32 %v1578, %v1676
        %v1686 = vadd.f32 %v1579, %v1679
        %v1687 = vadd.f32 %v1580, %v1682
        %v1688 = vld [vmem:[%s2 + $0x9] sm:$0x1]
        %v1689 = vld [vmem:[%s2 + $0xa] sm:$0x1]
        %v1690 = vsel %vm179, %v1684, 0.0
        %1691 = vadd.xlane.f32.xlu0 %v1690
        %v1692 = vpop.xlane.xlu0 %1691
        %v1693 = vsel %vm179, %v1685, 0.0
        %1694 = vadd.xlane.f32.xlu0 %v1693
        %v1695 = vpop.xlane.xlu0 %1694
        %v1696 = vsel %vm179, %v1686, 0.0
        %1697 = vadd.xlane.f32.xlu0 %v1696
        %v1698 = vpop.xlane.xlu0 %1697
        %v1699 = vsel %vm179, %v1687, 0.0
        %1700 = vadd.xlane.f32.xlu0 %v1699
        %v1701 = vpop.xlane.xlu0 %1700
        %v1702 = vmul.f32 %v1692, %v381
        %v1703 = vmul.f32 %v1695, %v381
        %v1704 = vmul.f32 %v1698, %v381
        %v1705 = vmul.f32 %v1701, %v381
        %v1706 = vsub.f32 %v1684, %v1702
        %v1707 = vsub.f32 %v1685, %v1703
        %v1708 = vsub.f32 %v1686, %v1704
        %v1709 = vsub.f32 %v1687, %v1705
        %v1710 = vmul.f32 %v1706, %v1706
        %v1711 = vmul.f32 %v1707, %v1707
        %v1712 = vmul.f32 %v1708, %v1708
        %v1713 = vmul.f32 %v1709, %v1709
        %v1714 = vsel %vm179, %v1710, 0.0
        %1715 = vadd.xlane.f32.xlu0 %v1714
        %v1716 = vpop.xlane.xlu0 %1715
        %v1717 = vsel %vm179, %v1711, 0.0
        %1718 = vadd.xlane.f32.xlu0 %v1717
        %v1719 = vpop.xlane.xlu0 %1718
        %v1720 = vsel %vm179, %v1712, 0.0
        %1721 = vadd.xlane.f32.xlu0 %v1720
        %v1722 = vpop.xlane.xlu0 %1721
        %v1723 = vsel %vm179, %v1713, 0.0
        %1724 = vadd.xlane.f32.xlu0 %v1723
        %v1725 = vpop.xlane.xlu0 %1724
        %v1726 = vmul.f32 %v1716, %v381
        %v1727 = vmul.f32 %v1719, %v381
        %v1728 = vmul.f32 %v1722, %v381
        %v1729 = vmul.f32 %v1725, %v381
        %v1730 = vadd.f32 %v1726, 1e-05
        %v1731 = vadd.f32 %v1727, 1e-05
        %v1732 = vadd.f32 %v1728, 1e-05
        %v1733 = vadd.f32 %v1729, 1e-05
        %v1734 = vrsqrt.pop %v1730
        %v1735 = vmul.f32 %v1734, %v1730
        %v1736 = vmul.f32 %v1735, %v1734
        %v1737 = vmul.f32 0.5, %v1736
        %v1738 = vsub.f32 1.5, %v1737
        %v1739 = vmul.f32 %v1734, %v1738
        %vm1740 = vweird.f32 %v1730
        %vm1741 = vweird.f32 %v1734
        %vm1742 = vmor %vm1740, %vm1741
        %v1743 = vsel %vm1742, %v1734, %v1739
        %v1744 = vrsqrt.pop %v1731
        %v1745 = vmul.f32 %v1744, %v1731
        %v1746 = vmul.f32 %v1745, %v1744
        %v1747 = vmul.f32 0.5, %v1746
        %v1748 = vsub.f32 1.5, %v1747
        %v1749 = vmul.f32 %v1744, %v1748
        %vm1750 = vweird.f32 %v1731
        %vm1751 = vweird.f32 %v1744
        %vm1752 = vmor %vm1750, %vm1751
        %v1753 = vsel %vm1752, %v1744, %v1749
        %v1754 = vrsqrt.pop %v1732
        %v1755 = vmul.f32 %v1754, %v1732
        %v1756 = vmul.f32 %v1755, %v1754
        %v1757 = vmul.f32 0.5, %v1756
        %v1758 = vsub.f32 1.5, %v1757
        %v1759 = vmul.f32 %v1754, %v1758
        %vm1760 = vweird.f32 %v1732
        %vm1761 = vweird.f32 %v1754
        %vm1762 = vmor %vm1760, %vm1761
        %v1763 = vsel %vm1762, %v1754, %v1759
        %v1764 = vrsqrt.pop %v1733
        %v1765 = vmul.f32 %v1764, %v1733
        %v1766 = vmul.f32 %v1765, %v1764
        %v1767 = vmul.f32 0.5, %v1766
        %v1768 = vsub.f32 1.5, %v1767
        %v1769 = vmul.f32 %v1764, %v1768
        %vm1770 = vweird.f32 %v1733
        %vm1771 = vweird.f32 %v1764
        %vm1772 = vmor %vm1770, %vm1771
        %v1773 = vsel %vm1772, %v1764, %v1769
        %v1774 = vmul.f32 %v1706, %v1743
        %v1775 = vmul.f32 %v1707, %v1753
        %v1776 = vmul.f32 %v1708, %v1763
        %v1777 = vmul.f32 %v1709, %v1773
        %v1778 = vperm.slane %v1688, 0
        %v1779 = vmul.f32 %v1774, %v1778
        %v1780 = vmul.f32 %v1775, %v1778
        %v1781 = vmul.f32 %v1776, %v1778
        %v1782 = vmul.f32 %v1777, %v1778
        %v1783 = vperm.slane %v1689, 0
        %v1784 = vadd.f32 %v1779, %v1783
        %v1785 = vadd.f32 %v1780, %v1783
        %v1786 = vadd.f32 %v1781, %v1783
        %v1787 = vadd.f32 %v1782, %v1783
        %v1788 = vld [vmem:[%s1 + $0x40] sm:$0xff]
        %v1789 = vld [vmem:[%s1 + $0x48] sm:$0xff]
        %v1790 = vld [vmem:[%s1 + $0x50] sm:$0xff]
        %v1791 = vld [vmem:[%s1 + $0x58] sm:$0xff]
        %v1792 = vld [vmem:[%s2 + $0xb] sm:$0x1]
        %v1793 = vperm.slane %v1792, 0
        %v1795 = vsel %vm179, %v1784, 0
        %v1798 = vsel %vm179, %v1785, 0
        %v1801 = vsel %vm179, %v1786, 0
        %v1804 = vsel %vm179, %v1787, 0
        %1806 = vmatpush.msra.mxu0 0.0
        %1807 = vmatpush.msra.mxu0 0.0
        %1808 = vmatpush.msra.mxu0 0.0
        %1809 = vmatpush.msra.mxu0 0.0
        %1810 = vmatpush.msra.mxu0 0.0
        %1811 = vmatpush.msra.mxu0 0.0
        %1812 = vmatpush.msra.mxu0 0.0
        %1813 = vmatpush.msra.mxu0 0.0
        %1814 = vmatpush.msra.mxu0 0.0
        %1815 = vmatpush.msra.mxu0 0.0
        %1816 = vmatpush.msra.mxu0 0.0
        %1817 = vmatpush.msra.mxu0 0.0
        %1818 = vmatpush.msra.mxu0 %v1791
        %1819 = vmatpush.msra.mxu0 %v1790
        %1820 = vmatpush.msra.mxu0 %v1789
        %1821 = vmatpush.msra.mxu0 %v1788
        %1822 = vmatmul.f32.gmra.mxu0 %v1795
        %v1823 = vpop.f32.mrf.mxu0
        %v1824 = vadd.f32 %v1793, %v1823
        %1825 = vmatmul.f32.gmra.mxu0 %v1798
        %v1826 = vpop.f32.mrf.mxu0
        %v1827 = vadd.f32 %v1793, %v1826
        %1828 = vmatmul.f32.gmra.mxu0 %v1801
        %v1829 = vpop.f32.mrf.mxu0
        %v1830 = vadd.f32 %v1793, %v1829
        %1831 = vmatmul.f32.gmra.mxu0 %v1804
        %v1832 = vpop.f32.mrf.mxu0
        %v1833 = vadd.f32 %v1793, %v1832
        %1834 = vdwg.mxu0
        %1839 = vrot.lane.b32.xlu0 %v1824, 120
        %v1840 = vpop.permute.xlu0 %1839
        %1841 = vrot.lane.b32.xlu0 %v1827, 120
        %v1842 = vpop.permute.xlu0 %1841
        %1843 = vrot.lane.b32.xlu0 %v1830, 120
        %v1844 = vpop.permute.xlu0 %1843
        %1845 = vrot.lane.b32.xlu0 %v1833, 120
        %v1846 = vpop.permute.xlu0 %1845
        %1847 = vrot.lane.b32.xlu0 %v1824, 112
        %v1848 = vpop.permute.xlu0 %1847
        %1849 = vrot.lane.b32.xlu0 %v1827, 112
        %v1850 = vpop.permute.xlu0 %1849
        %1851 = vrot.lane.b32.xlu0 %v1830, 112
        %v1852 = vpop.permute.xlu0 %1851
        %1853 = vrot.lane.b32.xlu0 %v1833, 112
        %v1854 = vpop.permute.xlu0 %1853
        %1855 = vrot.lane.b32.xlu0 %v1824, 104
        %v1856 = vpop.permute.xlu0 %1855
        %1857 = vrot.lane.b32.xlu0 %v1827, 104
        %v1858 = vpop.permute.xlu0 %1857
        %1859 = vrot.lane.b32.xlu0 %v1830, 104
        %v1860 = vpop.permute.xlu0 %1859
        %1861 = vrot.lane.b32.xlu0 %v1833, 104
        %v1862 = vpop.permute.xlu0 %1861
        %1863 = vrot.lane.b32.xlu0 %v1824, 96
        %v1864 = vpop.permute.xlu0 %1863
        %1865 = vrot.lane.b32.xlu0 %v1827, 96
        %v1866 = vpop.permute.xlu0 %1865
        %1867 = vrot.lane.b32.xlu0 %v1830, 96
        %v1868 = vpop.permute.xlu0 %1867
        %1869 = vrot.lane.b32.xlu0 %v1833, 96
        %v1870 = vpop.permute.xlu0 %1869
        %v1871 = vsel %vm551, %v1824, 0
        %v1873 = vsel %vm551, %v1827, 0
        %v1875 = vsel %vm551, %v1830, 0
        %v1877 = vsel %vm551, %v1833, 0
        %v1879 = vsel %vm551, %v1864, 0
        %v1881 = vsel %vm551, %v1866, 0
        %v1883 = vsel %vm551, %v1868, 0
        %v1885 = vsel %vm551, %v1870, 0
        %1887 = vmatpush.xpose.msra.mxu0 0.0
        %1888 = vmatpush.xpose.msra.mxu0 0.0
        %1889 = vmatpush.xpose.msra.mxu0 0.0
        %1890 = vmatpush.xpose.msra.mxu0 0.0
        %1891 = vmatpush.xpose.msra.mxu0 0.0
        %1892 = vmatpush.xpose.msra.mxu0 0.0
        %1893 = vmatpush.xpose.msra.mxu0 0.0
        %1894 = vmatpush.xpose.msra.mxu0 0.0
        %1895 = vmatpush.xpose.msra.mxu0 0.0
        %1896 = vmatpush.xpose.msra.mxu0 0.0
        %1897 = vmatpush.xpose.msra.mxu0 0.0
        %1898 = vmatpush.xpose.msra.mxu0 0.0
        %1899 = vmatpush.xpose.msra.mxu0 %v1885
        %1900 = vmatpush.xpose.msra.mxu0 %v1883
        %1901 = vmatpush.xpose.msra.mxu0 %v1881
        %1902 = vmatpush.xpose.msra.mxu0 %v1879
        %1903 = vmatmul.f32.gmra.mxu0 %v1871
        %v1904 = vpop.f32.mrf.mxu0
        %v1905 = vadd.f32 0.0, %v1904
        %1906 = vmatmul.f32.gmra.mxu0 %v1873
        %v1907 = vpop.f32.mrf.mxu0
        %v1908 = vadd.f32 0.0, %v1907
        %1909 = vmatmul.f32.gmra.mxu0 %v1875
        %v1910 = vpop.f32.mrf.mxu0
        %v1911 = vadd.f32 0.0, %v1910
        %1912 = vmatmul.f32.gmra.mxu0 %v1877
        %v1913 = vpop.f32.mrf.mxu0
        %v1914 = vadd.f32 0.0, %v1913
        %1915 = vdwg.mxu0
        %1916 = vrot.lane.b32.xlu0 %v1840, 96
        %v1917 = vpop.permute.xlu0 %1916
        %1918 = vrot.lane.b32.xlu0 %v1842, 96
        %v1919 = vpop.permute.xlu0 %1918
        %1920 = vrot.lane.b32.xlu0 %v1844, 96
        %v1921 = vpop.permute.xlu0 %1920
        %1922 = vrot.lane.b32.xlu0 %v1846, 96
        %v1923 = vpop.permute.xlu0 %1922
        %v1924 = vsel %vm551, %v1840, 0
        %v1926 = vsel %vm551, %v1842, 0
        %v1928 = vsel %vm551, %v1844, 0
        %v1930 = vsel %vm551, %v1846, 0
        %v1932 = vsel %vm551, %v1917, 0
        %v1934 = vsel %vm551, %v1919, 0
        %v1936 = vsel %vm551, %v1921, 0
        %v1938 = vsel %vm551, %v1923, 0
        %1940 = vmatpush.xpose.msra.mxu0 0.0
        %1941 = vmatpush.xpose.msra.mxu0 0.0
        %1942 = vmatpush.xpose.msra.mxu0 0.0
        %1943 = vmatpush.xpose.msra.mxu0 0.0
        %1944 = vmatpush.xpose.msra.mxu0 0.0
        %1945 = vmatpush.xpose.msra.mxu0 0.0
        %1946 = vmatpush.xpose.msra.mxu0 0.0
        %1947 = vmatpush.xpose.msra.mxu0 0.0
        %1948 = vmatpush.xpose.msra.mxu0 0.0
        %1949 = vmatpush.xpose.msra.mxu0 0.0
        %1950 = vmatpush.xpose.msra.mxu0 0.0
        %1951 = vmatpush.xpose.msra.mxu0 0.0
        %1952 = vmatpush.xpose.msra.mxu0 %v1938
        %1953 = vmatpush.xpose.msra.mxu0 %v1936
        %1954 = vmatpush.xpose.msra.mxu0 %v1934
        %1955 = vmatpush.xpose.msra.mxu0 %v1932
        %1956 = vmatmul.f32.gmra.mxu0 %v1924
        %v1957 = vpop.f32.mrf.mxu0
        %v1958 = vadd.f32 0.0, %v1957
        %1959 = vmatmul.f32.gmra.mxu0 %v1926
        %v1960 = vpop.f32.mrf.mxu0
        %v1961 = vadd.f32 0.0, %v1960
        %1962 = vmatmul.f32.gmra.mxu0 %v1928
        %v1963 = vpop.f32.mrf.mxu0
        %v1964 = vadd.f32 0.0, %v1963
        %1965 = vmatmul.f32.gmra.mxu0 %v1930
        %v1966 = vpop.f32.mrf.mxu0
        %v1967 = vadd.f32 0.0, %v1966
        %1968 = vdwg.mxu0
        %1969 = vrot.lane.b32.xlu0 %v1848, 96
        %v1970 = vpop.permute.xlu0 %1969
        %1971 = vrot.lane.b32.xlu0 %v1850, 96
        %v1972 = vpop.permute.xlu0 %1971
        %1973 = vrot.lane.b32.xlu0 %v1852, 96
        %v1974 = vpop.permute.xlu0 %1973
        %1975 = vrot.lane.b32.xlu0 %v1854, 96
        %v1976 = vpop.permute.xlu0 %1975
        %v1977 = vsel %vm551, %v1848, 0
        %v1979 = vsel %vm551, %v1850, 0
        %v1981 = vsel %vm551, %v1852, 0
        %v1983 = vsel %vm551, %v1854, 0
        %v1985 = vsel %vm551, %v1970, 0
        %v1987 = vsel %vm551, %v1972, 0
        %v1989 = vsel %vm551, %v1974, 0
        %v1991 = vsel %vm551, %v1976, 0
        %1993 = vmatpush.xpose.msra.mxu0 0.0
        %1994 = vmatpush.xpose.msra.mxu0 0.0
        %1995 = vmatpush.xpose.msra.mxu0 0.0
        %1996 = vmatpush.xpose.msra.mxu0 0.0
        %1997 = vmatpush.xpose.msra.mxu0 0.0
        %1998 = vmatpush.xpose.msra.mxu0 0.0
        %1999 = vmatpush.xpose.msra.mxu0 0.0
        %2000 = vmatpush.xpose.msra.mxu0 0.0
        %2001 = vmatpush.xpose.msra.mxu0 0.0
        %2002 = vmatpush.xpose.msra.mxu0 0.0
        %2003 = vmatpush.xpose.msra.mxu0 0.0
        %2004 = vmatpush.xpose.msra.mxu0 0.0
        %2005 = vmatpush.xpose.msra.mxu0 %v1991
        %2006 = vmatpush.xpose.msra.mxu0 %v1989
        %2007 = vmatpush.xpose.msra.mxu0 %v1987
        %2008 = vmatpush.xpose.msra.mxu0 %v1985
        %2009 = vmatmul.f32.gmra.mxu0 %v1977
        %v2010 = vpop.f32.mrf.mxu0
        %v2011 = vadd.f32 0.0, %v2010
        %2012 = vmatmul.f32.gmra.mxu0 %v1979
        %v2013 = vpop.f32.mrf.mxu0
        %v2014 = vadd.f32 0.0, %v2013
        %2015 = vmatmul.f32.gmra.mxu0 %v1981
        %v2016 = vpop.f32.mrf.mxu0
        %v2017 = vadd.f32 0.0, %v2016
        %2018 = vmatmul.f32.gmra.mxu0 %v1983
        %v2019 = vpop.f32.mrf.mxu0
        %v2020 = vadd.f32 0.0, %v2019
        %2021 = vdwg.mxu0
        %2022 = vrot.lane.b32.xlu0 %v1856, 96
        %v2023 = vpop.permute.xlu0 %2022
        %2024 = vrot.lane.b32.xlu0 %v1858, 96
        %v2025 = vpop.permute.xlu0 %2024
        %2026 = vrot.lane.b32.xlu0 %v1860, 96
        %v2027 = vpop.permute.xlu0 %2026
        %2028 = vrot.lane.b32.xlu0 %v1862, 96
        %v2029 = vpop.permute.xlu0 %2028
        %v2030 = vsel %vm551, %v1856, 0
        %v2032 = vsel %vm551, %v1858, 0
        %v2034 = vsel %vm551, %v1860, 0
        %v2036 = vsel %vm551, %v1862, 0
        %v2038 = vsel %vm551, %v2023, 0
        %v2040 = vsel %vm551, %v2025, 0
        %v2042 = vsel %vm551, %v2027, 0
        %v2044 = vsel %vm551, %v2029, 0
        %2046 = vmatpush.xpose.msra.mxu0 0.0
        %2047 = vmatpush.xpose.msra.mxu0 0.0
        %2048 = vmatpush.xpose.msra.mxu0 0.0
        %2049 = vmatpush.xpose.msra.mxu0 0.0
        %2050 = vmatpush.xpose.msra.mxu0 0.0
        %2051 = vmatpush.xpose.msra.mxu0 0.0
        %2052 = vmatpush.xpose.msra.mxu0 0.0
        %2053 = vmatpush.xpose.msra.mxu0 0.0
        %2054 = vmatpush.xpose.msra.mxu0 0.0
        %2055 = vmatpush.xpose.msra.mxu0 0.0
        %2056 = vmatpush.xpose.msra.mxu0 0.0
        %2057 = vmatpush.xpose.msra.mxu0 0.0
        %2058 = vmatpush.xpose.msra.mxu0 %v2044
        %2059 = vmatpush.xpose.msra.mxu0 %v2042
        %2060 = vmatpush.xpose.msra.mxu0 %v2040
        %2061 = vmatpush.xpose.msra.mxu0 %v2038
        %2062 = vmatmul.f32.gmra.mxu0 %v2030
        %v2063 = vpop.f32.mrf.mxu0
        %v2064 = vadd.f32 0.0, %v2063
        %2065 = vmatmul.f32.gmra.mxu0 %v2032
        %v2066 = vpop.f32.mrf.mxu0
        %v2067 = vadd.f32 0.0, %v2066
        %2068 = vmatmul.f32.gmra.mxu0 %v2034
        %v2069 = vpop.f32.mrf.mxu0
        %v2070 = vadd.f32 0.0, %v2069
        %2071 = vmatmul.f32.gmra.mxu0 %v2036
        %v2072 = vpop.f32.mrf.mxu0
        %v2073 = vadd.f32 0.0, %v2072
        %2074 = vdwg.mxu0
        %v2075 = vmul.f32 %v1905, 0.35355338
        %v2076 = vmul.f32 %v1908, 0.35355338
        %v2077 = vmul.f32 %v1911, 0.35355338
        %v2078 = vmul.f32 %v1914, 0.35355338
        %v2079 = vmul.f32 %v1958, 0.35355338
        %v2080 = vmul.f32 %v1961, 0.35355338
        %v2081 = vmul.f32 %v1964, 0.35355338
        %v2082 = vmul.f32 %v1967, 0.35355338
        %v2083 = vmul.f32 %v2011, 0.35355338
        %v2084 = vmul.f32 %v2014, 0.35355338
        %v2085 = vmul.f32 %v2017, 0.35355338
        %v2086 = vmul.f32 %v2020, 0.35355338
        %v2087 = vmul.f32 %v2064, 0.35355338
        %v2088 = vmul.f32 %v2067, 0.35355338
        %v2089 = vmul.f32 %v2070, 0.35355338
        %v2090 = vmul.f32 %v2073, 0.35355338
        %v2091 = vsel %vm179, %v2075, -inf
        %2092 = vmax.xlane.f32.xlu0 %v2091
        %v2093 = vpop.xlane.xlu0 %2092
        %v2094 = vsel %vm179, %v2076, -inf
        %2095 = vmax.xlane.f32.xlu0 %v2094
        %v2096 = vpop.xlane.xlu0 %2095
        %v2097 = vsel %vm179, %v2077, -inf
        %2098 = vmax.xlane.f32.xlu0 %v2097
        %v2099 = vpop.xlane.xlu0 %2098
        %v2100 = vsel %vm179, %v2078, -inf
        %2101 = vmax.xlane.f32.xlu0 %v2100
        %v2102 = vpop.xlane.xlu0 %2101
        %v2103 = vsel %vm179, %v2079, -inf
        %2104 = vmax.xlane.f32.xlu0 %v2103
        %v2105 = vpop.xlane.xlu0 %2104
        %v2106 = vsel %vm179, %v2080, -inf
        %2107 = vmax.xlane.f32.xlu0 %v2106
        %v2108 = vpop.xlane.xlu0 %2107
        %v2109 = vsel %vm179, %v2081, -inf
        %2110 = vmax.xlane.f32.xlu0 %v2109
        %v2111 = vpop.xlane.xlu0 %2110
        %v2112 = vsel %vm179, %v2082, -inf
        %2113 = vmax.xlane.f32.xlu0 %v2112
        %v2114 = vpop.xlane.xlu0 %2113
        %v2115 = vsel %vm179, %v2083, -inf
        %2116 = vmax.xlane.f32.xlu0 %v2115
        %v2117 = vpop.xlane.xlu0 %2116
        %v2118 = vsel %vm179, %v2084, -inf
        %2119 = vmax.xlane.f32.xlu0 %v2118
        %v2120 = vpop.xlane.xlu0 %2119
        %v2121 = vsel %vm179, %v2085, -inf
        %2122 = vmax.xlane.f32.xlu0 %v2121
        %v2123 = vpop.xlane.xlu0 %2122
        %v2124 = vsel %vm179, %v2086, -inf
        %2125 = vmax.xlane.f32.xlu0 %v2124
        %v2126 = vpop.xlane.xlu0 %2125
        %v2127 = vsel %vm179, %v2087, -inf
        %2128 = vmax.xlane.f32.xlu0 %v2127
        %v2129 = vpop.xlane.xlu0 %2128
        %v2130 = vsel %vm179, %v2088, -inf
        %2131 = vmax.xlane.f32.xlu0 %v2130
        %v2132 = vpop.xlane.xlu0 %2131
        %v2133 = vsel %vm179, %v2089, -inf
        %2134 = vmax.xlane.f32.xlu0 %v2133
        %v2135 = vpop.xlane.xlu0 %2134
        %v2136 = vsel %vm179, %v2090, -inf
        %2137 = vmax.xlane.f32.xlu0 %v2136
        %v2138 = vpop.xlane.xlu0 %2137
        %v2139 = vsub.f32 %v2075, %v2093
        %v2140 = vsub.f32 %v2076, %v2096
        %v2141 = vsub.f32 %v2077, %v2099
        %v2142 = vsub.f32 %v2078, %v2102
        %v2143 = vsub.f32 %v2079, %v2105
        %v2144 = vsub.f32 %v2080, %v2108
        %v2145 = vsub.f32 %v2081, %v2111
        %v2146 = vsub.f32 %v2082, %v2114
        %v2147 = vsub.f32 %v2083, %v2117
        %v2148 = vsub.f32 %v2084, %v2120
        %v2149 = vsub.f32 %v2085, %v2123
        %v2150 = vsub.f32 %v2086, %v2126
        %v2151 = vsub.f32 %v2087, %v2129
        %v2152 = vsub.f32 %v2088, %v2132
        %v2153 = vsub.f32 %v2089, %v2135
        %v2154 = vsub.f32 %v2090, %v2138
        %v2155 = vmul.f32 %v2139, 1.442695
        %v2156 = vpow.pop %v2155
        %v2157 = vmul.f32 %v2140, 1.442695
        %v2158 = vpow.pop %v2157
        %v2159 = vmul.f32 %v2141, 1.442695
        %v2160 = vpow.pop %v2159
        %v2161 = vmul.f32 %v2142, 1.442695
        %v2162 = vpow.pop %v2161
        %v2163 = vmul.f32 %v2143, 1.442695
        %v2164 = vpow.pop %v2163
        %v2165 = vmul.f32 %v2144, 1.442695
        %v2166 = vpow.pop %v2165
        %v2167 = vmul.f32 %v2145, 1.442695
        %v2168 = vpow.pop %v2167
        %v2169 = vmul.f32 %v2146, 1.442695
        %v2170 = vpow.pop %v2169
        %v2171 = vmul.f32 %v2147, 1.442695
        %v2172 = vpow.pop %v2171
        %v2173 = vmul.f32 %v2148, 1.442695
        %v2174 = vpow.pop %v2173
        %v2175 = vmul.f32 %v2149, 1.442695
        %v2176 = vpow.pop %v2175
        %v2177 = vmul.f32 %v2150, 1.442695
        %v2178 = vpow.pop %v2177
        %v2179 = vmul.f32 %v2151, 1.442695
        %v2180 = vpow.pop %v2179
        %v2181 = vmul.f32 %v2152, 1.442695
        %v2182 = vpow.pop %v2181
        %v2183 = vmul.f32 %v2153, 1.442695
        %v2184 = vpow.pop %v2183
        %v2185 = vmul.f32 %v2154, 1.442695
        %v2186 = vpow.pop %v2185
        %v2187 = vsel %vm179, %v2156, 0.0
        %2188 = vadd.xlane.f32.xlu0 %v2187
        %v2189 = vpop.xlane.xlu0 %2188
        %v2190 = vsel %vm179, %v2158, 0.0
        %2191 = vadd.xlane.f32.xlu0 %v2190
        %v2192 = vpop.xlane.xlu0 %2191
        %v2193 = vsel %vm179, %v2160, 0.0
        %2194 = vadd.xlane.f32.xlu0 %v2193
        %v2195 = vpop.xlane.xlu0 %2194
        %v2196 = vsel %vm179, %v2162, 0.0
        %2197 = vadd.xlane.f32.xlu0 %v2196
        %v2198 = vpop.xlane.xlu0 %2197
        %v2199 = vsel %vm179, %v2164, 0.0
        %2200 = vadd.xlane.f32.xlu0 %v2199
        %v2201 = vpop.xlane.xlu0 %2200
        %v2202 = vsel %vm179, %v2166, 0.0
        %2203 = vadd.xlane.f32.xlu0 %v2202
        %v2204 = vpop.xlane.xlu0 %2203
        %v2205 = vsel %vm179, %v2168, 0.0
        %2206 = vadd.xlane.f32.xlu0 %v2205
        %v2207 = vpop.xlane.xlu0 %2206
        %v2208 = vsel %vm179, %v2170, 0.0
        %2209 = vadd.xlane.f32.xlu0 %v2208
        %v2210 = vpop.xlane.xlu0 %2209
        %v2211 = vsel %vm179, %v2172, 0.0
        %2212 = vadd.xlane.f32.xlu0 %v2211
        %v2213 = vpop.xlane.xlu0 %2212
        %v2214 = vsel %vm179, %v2174, 0.0
        %2215 = vadd.xlane.f32.xlu0 %v2214
        %v2216 = vpop.xlane.xlu0 %2215
        %v2217 = vsel %vm179, %v2176, 0.0
        %2218 = vadd.xlane.f32.xlu0 %v2217
        %v2219 = vpop.xlane.xlu0 %2218
        %v2220 = vsel %vm179, %v2178, 0.0
        %2221 = vadd.xlane.f32.xlu0 %v2220
        %v2222 = vpop.xlane.xlu0 %2221
        %v2223 = vsel %vm179, %v2180, 0.0
        %2224 = vadd.xlane.f32.xlu0 %v2223
        %v2225 = vpop.xlane.xlu0 %2224
        %v2226 = vsel %vm179, %v2182, 0.0
        %2227 = vadd.xlane.f32.xlu0 %v2226
        %v2228 = vpop.xlane.xlu0 %2227
        %v2229 = vsel %vm179, %v2184, 0.0
        %2230 = vadd.xlane.f32.xlu0 %v2229
        %v2231 = vpop.xlane.xlu0 %2230
        %v2232 = vsel %vm179, %v2186, 0.0
        %2233 = vadd.xlane.f32.xlu0 %v2232
        %v2234 = vpop.xlane.xlu0 %2233
        %v2235 = vrcp.pop %v2189
        %v2236 = vmul.f32 %v2189, %v2235
        %v2237 = vsub.f32 1.0, %v2236
        %v2238 = vmul.f32 %v2235, %v2237
        %v2239 = vadd.f32 %v2235, %v2238
        %vm2240 = vweird.f32 %v2189
        %vm2241 = vweird.f32 %v2235
        %vm2242 = vmor %vm2240, %vm2241
        %v2243 = vsel %vm2242, %v2235, %v2239
        %v2244 = vand.u32 2147483647, %v2189
        %vm2245 = vcmp.eq.f32.partialorder %v2244, 8.507059e+37
        %v2246 = vand.u32 %v2189, 2147483648
        %v2247 = vor.u32 1.1754944e-38, %v2246
        %v2248 = vsel %vm2245, %v2247, %v2243
        %v2249 = vmul.f32 %v2156, %v2248
        %v2250 = vrcp.pop %v2192
        %v2251 = vmul.f32 %v2192, %v2250
        %v2252 = vsub.f32 1.0, %v2251
        %v2253 = vmul.f32 %v2250, %v2252
        %v2254 = vadd.f32 %v2250, %v2253
        %vm2255 = vweird.f32 %v2192
        %vm2256 = vweird.f32 %v2250
        %vm2257 = vmor %vm2255, %vm2256
        %v2258 = vsel %vm2257, %v2250, %v2254
        %v2259 = vand.u32 2147483647, %v2192
        %vm2260 = vcmp.eq.f32.partialorder %v2259, 8.507059e+37
        %v2261 = vand.u32 %v2192, 2147483648
        %v2262 = vor.u32 1.1754944e-38, %v2261
        %v2263 = vsel %vm2260, %v2262, %v2258
        %v2264 = vmul.f32 %v2158, %v2263
        %v2265 = vrcp.pop %v2195
        %v2266 = vmul.f32 %v2195, %v2265
        %v2267 = vsub.f32 1.0, %v2266
        %v2268 = vmul.f32 %v2265, %v2267
        %v2269 = vadd.f32 %v2265, %v2268
        %vm2270 = vweird.f32 %v2195
        %vm2271 = vweird.f32 %v2265
        %vm2272 = vmor %vm2270, %vm2271
        %v2273 = vsel %vm2272, %v2265, %v2269
        %v2274 = vand.u32 2147483647, %v2195
        %vm2275 = vcmp.eq.f32.partialorder %v2274, 8.507059e+37
        %v2276 = vand.u32 %v2195, 2147483648
        %v2277 = vor.u32 1.1754944e-38, %v2276
        %v2278 = vsel %vm2275, %v2277, %v2273
        %v2279 = vmul.f32 %v2160, %v2278
        %v2280 = vrcp.pop %v2198
        %v2281 = vmul.f32 %v2198, %v2280
        %v2282 = vsub.f32 1.0, %v2281
        %v2283 = vmul.f32 %v2280, %v2282
        %v2284 = vadd.f32 %v2280, %v2283
        %vm2285 = vweird.f32 %v2198
        %vm2286 = vweird.f32 %v2280
        %vm2287 = vmor %vm2285, %vm2286
        %v2288 = vsel %vm2287, %v2280, %v2284
        %v2289 = vand.u32 2147483647, %v2198
        %vm2290 = vcmp.eq.f32.partialorder %v2289, 8.507059e+37
        %v2291 = vand.u32 %v2198, 2147483648
        %v2292 = vor.u32 1.1754944e-38, %v2291
        %v2293 = vsel %vm2290, %v2292, %v2288
        %v2294 = vmul.f32 %v2162, %v2293
        %v2295 = vrcp.pop %v2201
        %v2296 = vmul.f32 %v2201, %v2295
        %v2297 = vsub.f32 1.0, %v2296
        %v2298 = vmul.f32 %v2295, %v2297
        %v2299 = vadd.f32 %v2295, %v2298
        %vm2300 = vweird.f32 %v2201
        %vm2301 = vweird.f32 %v2295
        %vm2302 = vmor %vm2300, %vm2301
        %v2303 = vsel %vm2302, %v2295, %v2299
        %v2304 = vand.u32 2147483647, %v2201
        %vm2305 = vcmp.eq.f32.partialorder %v2304, 8.507059e+37
        %v2306 = vand.u32 %v2201, 2147483648
        %v2307 = vor.u32 1.1754944e-38, %v2306
        %v2308 = vsel %vm2305, %v2307, %v2303
        %v2309 = vmul.f32 %v2164, %v2308
        %v2310 = vrcp.pop %v2204
        %v2311 = vmul.f32 %v2204, %v2310
        %v2312 = vsub.f32 1.0, %v2311
        %v2313 = vmul.f32 %v2310, %v2312
        %v2314 = vadd.f32 %v2310, %v2313
        %vm2315 = vweird.f32 %v2204
        %vm2316 = vweird.f32 %v2310
        %vm2317 = vmor %vm2315, %vm2316
        %v2318 = vsel %vm2317, %v2310, %v2314
        %v2319 = vand.u32 2147483647, %v2204
        %vm2320 = vcmp.eq.f32.partialorder %v2319, 8.507059e+37
        %v2321 = vand.u32 %v2204, 2147483648
        %v2322 = vor.u32 1.1754944e-38, %v2321
        %v2323 = vsel %vm2320, %v2322, %v2318
        %v2324 = vmul.f32 %v2166, %v2323
        %v2325 = vrcp.pop %v2207
        %v2326 = vmul.f32 %v2207, %v2325
        %v2327 = vsub.f32 1.0, %v2326
        %v2328 = vmul.f32 %v2325, %v2327
        %v2329 = vadd.f32 %v2325, %v2328
        %vm2330 = vweird.f32 %v2207
        %vm2331 = vweird.f32 %v2325
        %vm2332 = vmor %vm2330, %vm2331
        %v2333 = vsel %vm2332, %v2325, %v2329
        %v2334 = vand.u32 2147483647, %v2207
        %vm2335 = vcmp.eq.f32.partialorder %v2334, 8.507059e+37
        %v2336 = vand.u32 %v2207, 2147483648
        %v2337 = vor.u32 1.1754944e-38, %v2336
        %v2338 = vsel %vm2335, %v2337, %v2333
        %v2339 = vmul.f32 %v2168, %v2338
        %v2340 = vrcp.pop %v2210
        %v2341 = vmul.f32 %v2210, %v2340
        %v2342 = vsub.f32 1.0, %v2341
        %v2343 = vmul.f32 %v2340, %v2342
        %v2344 = vadd.f32 %v2340, %v2343
        %vm2345 = vweird.f32 %v2210
        %vm2346 = vweird.f32 %v2340
        %vm2347 = vmor %vm2345, %vm2346
        %v2348 = vsel %vm2347, %v2340, %v2344
        %v2349 = vand.u32 2147483647, %v2210
        %vm2350 = vcmp.eq.f32.partialorder %v2349, 8.507059e+37
        %v2351 = vand.u32 %v2210, 2147483648
        %v2352 = vor.u32 1.1754944e-38, %v2351
        %v2353 = vsel %vm2350, %v2352, %v2348
        %v2354 = vmul.f32 %v2170, %v2353
        %v2355 = vrcp.pop %v2213
        %v2356 = vmul.f32 %v2213, %v2355
        %v2357 = vsub.f32 1.0, %v2356
        %v2358 = vmul.f32 %v2355, %v2357
        %v2359 = vadd.f32 %v2355, %v2358
        %vm2360 = vweird.f32 %v2213
        %vm2361 = vweird.f32 %v2355
        %vm2362 = vmor %vm2360, %vm2361
        %v2363 = vsel %vm2362, %v2355, %v2359
        %v2364 = vand.u32 2147483647, %v2213
        %vm2365 = vcmp.eq.f32.partialorder %v2364, 8.507059e+37
        %v2366 = vand.u32 %v2213, 2147483648
        %v2367 = vor.u32 1.1754944e-38, %v2366
        %v2368 = vsel %vm2365, %v2367, %v2363
        %v2369 = vmul.f32 %v2172, %v2368
        %v2370 = vrcp.pop %v2216
        %v2371 = vmul.f32 %v2216, %v2370
        %v2372 = vsub.f32 1.0, %v2371
        %v2373 = vmul.f32 %v2370, %v2372
        %v2374 = vadd.f32 %v2370, %v2373
        %vm2375 = vweird.f32 %v2216
        %vm2376 = vweird.f32 %v2370
        %vm2377 = vmor %vm2375, %vm2376
        %v2378 = vsel %vm2377, %v2370, %v2374
        %v2379 = vand.u32 2147483647, %v2216
        %vm2380 = vcmp.eq.f32.partialorder %v2379, 8.507059e+37
        %v2381 = vand.u32 %v2216, 2147483648
        %v2382 = vor.u32 1.1754944e-38, %v2381
        %v2383 = vsel %vm2380, %v2382, %v2378
        %v2384 = vmul.f32 %v2174, %v2383
        %v2385 = vrcp.pop %v2219
        %v2386 = vmul.f32 %v2219, %v2385
        %v2387 = vsub.f32 1.0, %v2386
        %v2388 = vmul.f32 %v2385, %v2387
        %v2389 = vadd.f32 %v2385, %v2388
        %vm2390 = vweird.f32 %v2219
        %vm2391 = vweird.f32 %v2385
        %vm2392 = vmor %vm2390, %vm2391
        %v2393 = vsel %vm2392, %v2385, %v2389
        %v2394 = vand.u32 2147483647, %v2219
        %vm2395 = vcmp.eq.f32.partialorder %v2394, 8.507059e+37
        %v2396 = vand.u32 %v2219, 2147483648
        %v2397 = vor.u32 1.1754944e-38, %v2396
        %v2398 = vsel %vm2395, %v2397, %v2393
        %v2399 = vmul.f32 %v2176, %v2398
        %v2400 = vrcp.pop %v2222
        %v2401 = vmul.f32 %v2222, %v2400
        %v2402 = vsub.f32 1.0, %v2401
        %v2403 = vmul.f32 %v2400, %v2402
        %v2404 = vadd.f32 %v2400, %v2403
        %vm2405 = vweird.f32 %v2222
        %vm2406 = vweird.f32 %v2400
        %vm2407 = vmor %vm2405, %vm2406
        %v2408 = vsel %vm2407, %v2400, %v2404
        %v2409 = vand.u32 2147483647, %v2222
        %vm2410 = vcmp.eq.f32.partialorder %v2409, 8.507059e+37
        %v2411 = vand.u32 %v2222, 2147483648
        %v2412 = vor.u32 1.1754944e-38, %v2411
        %v2413 = vsel %vm2410, %v2412, %v2408
        %v2414 = vmul.f32 %v2178, %v2413
        %v2415 = vrcp.pop %v2225
        %v2416 = vmul.f32 %v2225, %v2415
        %v2417 = vsub.f32 1.0, %v2416
        %v2418 = vmul.f32 %v2415, %v2417
        %v2419 = vadd.f32 %v2415, %v2418
        %vm2420 = vweird.f32 %v2225
        %vm2421 = vweird.f32 %v2415
        %vm2422 = vmor %vm2420, %vm2421
        %v2423 = vsel %vm2422, %v2415, %v2419
        %v2424 = vand.u32 2147483647, %v2225
        %vm2425 = vcmp.eq.f32.partialorder %v2424, 8.507059e+37
        %v2426 = vand.u32 %v2225, 2147483648
        %v2427 = vor.u32 1.1754944e-38, %v2426
        %v2428 = vsel %vm2425, %v2427, %v2423
        %v2429 = vmul.f32 %v2180, %v2428
        %v2430 = vrcp.pop %v2228
        %v2431 = vmul.f32 %v2228, %v2430
        %v2432 = vsub.f32 1.0, %v2431
        %v2433 = vmul.f32 %v2430, %v2432
        %v2434 = vadd.f32 %v2430, %v2433
        %vm2435 = vweird.f32 %v2228
        %vm2436 = vweird.f32 %v2430
        %vm2437 = vmor %vm2435, %vm2436
        %v2438 = vsel %vm2437, %v2430, %v2434
        %v2439 = vand.u32 2147483647, %v2228
        %vm2440 = vcmp.eq.f32.partialorder %v2439, 8.507059e+37
        %v2441 = vand.u32 %v2228, 2147483648
        %v2442 = vor.u32 1.1754944e-38, %v2441
        %v2443 = vsel %vm2440, %v2442, %v2438
        %v2444 = vmul.f32 %v2182, %v2443
        %v2445 = vrcp.pop %v2231
        %v2446 = vmul.f32 %v2231, %v2445
        %v2447 = vsub.f32 1.0, %v2446
        %v2448 = vmul.f32 %v2445, %v2447
        %v2449 = vadd.f32 %v2445, %v2448
        %vm2450 = vweird.f32 %v2231
        %vm2451 = vweird.f32 %v2445
        %vm2452 = vmor %vm2450, %vm2451
        %v2453 = vsel %vm2452, %v2445, %v2449
        %v2454 = vand.u32 2147483647, %v2231
        %vm2455 = vcmp.eq.f32.partialorder %v2454, 8.507059e+37
        %v2456 = vand.u32 %v2231, 2147483648
        %v2457 = vor.u32 1.1754944e-38, %v2456
        %v2458 = vsel %vm2455, %v2457, %v2453
        %v2459 = vmul.f32 %v2184, %v2458
        %v2460 = vrcp.pop %v2234
        %v2461 = vmul.f32 %v2234, %v2460
        %v2462 = vsub.f32 1.0, %v2461
        %v2463 = vmul.f32 %v2460, %v2462
        %v2464 = vadd.f32 %v2460, %v2463
        %vm2465 = vweird.f32 %v2234
        %vm2466 = vweird.f32 %v2460
        %vm2467 = vmor %vm2465, %vm2466
        %v2468 = vsel %vm2467, %v2460, %v2464
        %v2469 = vand.u32 2147483647, %v2234
        %vm2470 = vcmp.eq.f32.partialorder %v2469, 8.507059e+37
        %v2471 = vand.u32 %v2234, 2147483648
        %v2472 = vor.u32 1.1754944e-38, %v2471
        %v2473 = vsel %vm2470, %v2472, %v2468
        %v2474 = vmul.f32 %v2186, %v2473
        %2475 = vrot.lane.b32.xlu0 %v1824, 64
        %v2476 = vpop.permute.xlu0 %2475
        %2477 = vrot.lane.b32.xlu0 %v1827, 64
        %v2478 = vpop.permute.xlu0 %2477
        %2479 = vrot.lane.b32.xlu0 %v1830, 64
        %v2480 = vpop.permute.xlu0 %2479
        %2481 = vrot.lane.b32.xlu0 %v1833, 64
        %v2482 = vpop.permute.xlu0 %2481
        %v2488 = vsel %vm179, %v2249, 0
        %v2491 = vsel %vm179, %v2264, 0
        %v2494 = vsel %vm179, %v2279, 0
        %v2497 = vsel %vm179, %v2294, 0
        %2499 = vmatpush.msra.mxu0 0.0
        %2500 = vmatpush.msra.mxu0 0.0
        %2501 = vmatpush.msra.mxu0 0.0
        %2502 = vmatpush.msra.mxu0 0.0
        %2503 = vmatpush.msra.mxu0 0.0
        %2504 = vmatpush.msra.mxu0 0.0
        %2505 = vmatpush.msra.mxu0 0.0
        %2506 = vmatpush.msra.mxu0 0.0
        %2507 = vmatpush.msra.mxu0 0.0
        %2508 = vmatpush.msra.mxu0 0.0
        %2509 = vmatpush.msra.mxu0 0.0
        %2510 = vmatpush.msra.mxu0 0.0
        %2511 = vmatpush.msra.mxu0 %v2482
        %2512 = vmatpush.msra.mxu0 %v2480
        %2513 = vmatpush.msra.mxu0 %v2478
        %2514 = vmatpush.msra.mxu0 %v2476
        %2515 = vmatmul.f32.gmra.mxu0 %v2488
        %v2516 = vpop.f32.mrf.mxu0
        %v2517 = vadd.f32 0.0, %v2516
        %2518 = vmatmul.f32.gmra.mxu0 %v2491
        %v2519 = vpop.f32.mrf.mxu0
        %v2520 = vadd.f32 0.0, %v2519
        %2521 = vmatmul.f32.gmra.mxu0 %v2494
        %v2522 = vpop.f32.mrf.mxu0
        %v2523 = vadd.f32 0.0, %v2522
        %2524 = vmatmul.f32.gmra.mxu0 %v2497
        %v2525 = vpop.f32.mrf.mxu0
        %v2526 = vadd.f32 0.0, %v2525
        %2527 = vdwg.mxu0
        %2528 = vrot.lane.b32.xlu0 %v1840, 64
        %v2529 = vpop.permute.xlu0 %2528
        %2530 = vrot.lane.b32.xlu0 %v1842, 64
        %v2531 = vpop.permute.xlu0 %2530
        %2532 = vrot.lane.b32.xlu0 %v1844, 64
        %v2533 = vpop.permute.xlu0 %2532
        %2534 = vrot.lane.b32.xlu0 %v1846, 64
        %v2535 = vpop.permute.xlu0 %2534
        %v2541 = vsel %vm179, %v2309, 0
        %v2544 = vsel %vm179, %v2324, 0
        %v2547 = vsel %vm179, %v2339, 0
        %v2550 = vsel %vm179, %v2354, 0
        %2552 = vmatpush.msra.mxu0 0.0
        %2553 = vmatpush.msra.mxu0 0.0
        %2554 = vmatpush.msra.mxu0 0.0
        %2555 = vmatpush.msra.mxu0 0.0
        %2556 = vmatpush.msra.mxu0 0.0
        %2557 = vmatpush.msra.mxu0 0.0
        %2558 = vmatpush.msra.mxu0 0.0
        %2559 = vmatpush.msra.mxu0 0.0
        %2560 = vmatpush.msra.mxu0 0.0
        %2561 = vmatpush.msra.mxu0 0.0
        %2562 = vmatpush.msra.mxu0 0.0
        %2563 = vmatpush.msra.mxu0 0.0
        %2564 = vmatpush.msra.mxu0 %v2535
        %2565 = vmatpush.msra.mxu0 %v2533
        %2566 = vmatpush.msra.mxu0 %v2531
        %2567 = vmatpush.msra.mxu0 %v2529
        %2568 = vmatmul.f32.gmra.mxu0 %v2541
        %v2569 = vpop.f32.mrf.mxu0
        %v2570 = vadd.f32 0.0, %v2569
        %2571 = vmatmul.f32.gmra.mxu0 %v2544
        %v2572 = vpop.f32.mrf.mxu0
        %v2573 = vadd.f32 0.0, %v2572
        %2574 = vmatmul.f32.gmra.mxu0 %v2547
        %v2575 = vpop.f32.mrf.mxu0
        %v2576 = vadd.f32 0.0, %v2575
        %2577 = vmatmul.f32.gmra.mxu0 %v2550
        %v2578 = vpop.f32.mrf.mxu0
        %v2579 = vadd.f32 0.0, %v2578
        %2580 = vdwg.mxu0
        %2581 = vrot.lane.b32.xlu0 %v1848, 64
        %v2582 = vpop.permute.xlu0 %2581
        %2583 = vrot.lane.b32.xlu0 %v1850, 64
        %v2584 = vpop.permute.xlu0 %2583
        %2585 = vrot.lane.b32.xlu0 %v1852, 64
        %v2586 = vpop.permute.xlu0 %2585
        %2587 = vrot.lane.b32.xlu0 %v1854, 64
        %v2588 = vpop.permute.xlu0 %2587
        %v2594 = vsel %vm179, %v2369, 0
        %v2597 = vsel %vm179, %v2384, 0
        %v2600 = vsel %vm179, %v2399, 0
        %v2603 = vsel %vm179, %v2414, 0
        %2605 = vmatpush.msra.mxu0 0.0
        %2606 = vmatpush.msra.mxu0 0.0
        %2607 = vmatpush.msra.mxu0 0.0
        %2608 = vmatpush.msra.mxu0 0.0
        %2609 = vmatpush.msra.mxu0 0.0
        %2610 = vmatpush.msra.mxu0 0.0
        %2611 = vmatpush.msra.mxu0 0.0
        %2612 = vmatpush.msra.mxu0 0.0
        %2613 = vmatpush.msra.mxu0 0.0
        %2614 = vmatpush.msra.mxu0 0.0
        %2615 = vmatpush.msra.mxu0 0.0
        %2616 = vmatpush.msra.mxu0 0.0
        %2617 = vmatpush.msra.mxu0 %v2588
        %2618 = vmatpush.msra.mxu0 %v2586
        %2619 = vmatpush.msra.mxu0 %v2584
        %2620 = vmatpush.msra.mxu0 %v2582
        %2621 = vmatmul.f32.gmra.mxu0 %v2594
        %v2622 = vpop.f32.mrf.mxu0
        %v2623 = vadd.f32 0.0, %v2622
        %2624 = vmatmul.f32.gmra.mxu0 %v2597
        %v2625 = vpop.f32.mrf.mxu0
        %v2626 = vadd.f32 0.0, %v2625
        %2627 = vmatmul.f32.gmra.mxu0 %v2600
        %v2628 = vpop.f32.mrf.mxu0
        %v2629 = vadd.f32 0.0, %v2628
        %2630 = vmatmul.f32.gmra.mxu0 %v2603
        %v2631 = vpop.f32.mrf.mxu0
        %v2632 = vadd.f32 0.0, %v2631
        %2633 = vdwg.mxu0
        %2634 = vrot.lane.b32.xlu0 %v1856, 64
        %v2635 = vpop.permute.xlu0 %2634
        %2636 = vrot.lane.b32.xlu0 %v1858, 64
        %v2637 = vpop.permute.xlu0 %2636
        %2638 = vrot.lane.b32.xlu0 %v1860, 64
        %v2639 = vpop.permute.xlu0 %2638
        %2640 = vrot.lane.b32.xlu0 %v1862, 64
        %v2641 = vpop.permute.xlu0 %2640
        %v2647 = vsel %vm179, %v2429, 0
        %v2650 = vsel %vm179, %v2444, 0
        %v2653 = vsel %vm179, %v2459, 0
        %v2656 = vsel %vm179, %v2474, 0
        %2658 = vmatpush.msra.mxu0 0.0
        %2659 = vmatpush.msra.mxu0 0.0
        %2660 = vmatpush.msra.mxu0 0.0
        %2661 = vmatpush.msra.mxu0 0.0
        %2662 = vmatpush.msra.mxu0 0.0
        %2663 = vmatpush.msra.mxu0 0.0
        %2664 = vmatpush.msra.mxu0 0.0
        %2665 = vmatpush.msra.mxu0 0.0
        %2666 = vmatpush.msra.mxu0 0.0
        %2667 = vmatpush.msra.mxu0 0.0
        %2668 = vmatpush.msra.mxu0 0.0
        %2669 = vmatpush.msra.mxu0 0.0
        %2670 = vmatpush.msra.mxu0 %v2641
        %2671 = vmatpush.msra.mxu0 %v2639
        %2672 = vmatpush.msra.mxu0 %v2637
        %2673 = vmatpush.msra.mxu0 %v2635
        %2674 = vmatmul.f32.gmra.mxu0 %v2647
        %v2675 = vpop.f32.mrf.mxu0
        %v2676 = vadd.f32 0.0, %v2675
        %2677 = vmatmul.f32.gmra.mxu0 %v2650
        %v2678 = vpop.f32.mrf.mxu0
        %v2679 = vadd.f32 0.0, %v2678
        %2680 = vmatmul.f32.gmra.mxu0 %v2653
        %v2681 = vpop.f32.mrf.mxu0
        %v2682 = vadd.f32 0.0, %v2681
        %2683 = vmatmul.f32.gmra.mxu0 %v2656
        %v2684 = vpop.f32.mrf.mxu0
        %v2685 = vadd.f32 0.0, %v2684
        %2686 = vdwg.mxu0
        %2691 = vrot.lane.b32.xlu0 %v2570, 8
        %v2692 = vpop.permute.xlu0 %2691
        %2693 = vrot.lane.b32.xlu0 %v2573, 8
        %v2694 = vpop.permute.xlu0 %2693
        %2695 = vrot.lane.b32.xlu0 %v2576, 8
        %v2696 = vpop.permute.xlu0 %2695
        %2697 = vrot.lane.b32.xlu0 %v2579, 8
        %v2698 = vpop.permute.xlu0 %2697
        %2707 = vrot.lane.b32.xlu0 %v2623, 16
        %v2708 = vpop.permute.xlu0 %2707
        %2709 = vrot.lane.b32.xlu0 %v2626, 16
        %v2710 = vpop.permute.xlu0 %2709
        %2711 = vrot.lane.b32.xlu0 %v2629, 16
        %v2712 = vpop.permute.xlu0 %2711
        %2713 = vrot.lane.b32.xlu0 %v2632, 16
        %v2714 = vpop.permute.xlu0 %2713
        %2723 = vrot.lane.b32.xlu0 %v2676, 24
        %v2724 = vpop.permute.xlu0 %2723
        %2725 = vrot.lane.b32.xlu0 %v2679, 24
        %v2726 = vpop.permute.xlu0 %2725
        %2727 = vrot.lane.b32.xlu0 %v2682, 24
        %v2728 = vpop.permute.xlu0 %2727
        %2729 = vrot.lane.b32.xlu0 %v2685, 24
        %v2730 = vpop.permute.xlu0 %2729
        %v2735 = vsel %vm551, %v2517, %v2692
        %v2736 = vsel %vm551, %v2520, %v2694
        %v2737 = vsel %vm551, %v2523, %v2696
        %v2738 = vsel %vm551, %v2526, %v2698
        %v2739 = vsel %vm1420, %v2735, %v2708
        %v2740 = vsel %vm1420, %v2736, %v2710
        %v2741 = vsel %vm1420, %v2737, %v2712
        %v2742 = vsel %vm1420, %v2738, %v2714
        %v2743 = vsel %vm1425, %v2739, %v2724
        %v2744 = vsel %vm1425, %v2740, %v2726
        %v2745 = vsel %vm1425, %v2741, %v2728
        %v2746 = vsel %vm1425, %v2742, %v2730
        %v2747 = vld [vmem:[%s1 + $0x80] sm:$0xff]
        %v2748 = vld [vmem:[%s1 + $0x88] sm:$0xff]
        %v2749 = vld [vmem:[%s1 + $0x90] sm:$0xff]
        %v2750 = vld [vmem:[%s1 + $0x98] sm:$0xff]
        %v2751 = vld [vmem:[%s2 + $0xc] sm:$0x1]
        %v2752 = vperm.slane %v2751, 0
        %v2754 = vsel %vm179, %v2743, 0
        %v2757 = vsel %vm179, %v2744, 0
        %v2760 = vsel %vm179, %v2745, 0
        %v2763 = vsel %vm179, %v2746, 0
        %2765 = vmatpush.msra.mxu0 0.0
        %2766 = vmatpush.msra.mxu0 0.0
        %2767 = vmatpush.msra.mxu0 0.0
        %2768 = vmatpush.msra.mxu0 0.0
        %2769 = vmatpush.msra.mxu0 0.0
        %2770 = vmatpush.msra.mxu0 0.0
        %2771 = vmatpush.msra.mxu0 0.0
        %2772 = vmatpush.msra.mxu0 0.0
        %2773 = vmatpush.msra.mxu0 0.0
        %2774 = vmatpush.msra.mxu0 0.0
        %2775 = vmatpush.msra.mxu0 0.0
        %2776 = vmatpush.msra.mxu0 0.0
        %2777 = vmatpush.msra.mxu0 %v2750
        %2778 = vmatpush.msra.mxu0 %v2749
        %2779 = vmatpush.msra.mxu0 %v2748
        %2780 = vmatpush.msra.mxu0 %v2747
        %2781 = vmatmul.f32.gmra.mxu0 %v2754
        %v2782 = vpop.f32.mrf.mxu0
        %v2783 = vadd.f32 %v2752, %v2782
        %2784 = vmatmul.f32.gmra.mxu0 %v2757
        %v2785 = vpop.f32.mrf.mxu0
        %v2786 = vadd.f32 %v2752, %v2785
        %2787 = vmatmul.f32.gmra.mxu0 %v2760
        %v2788 = vpop.f32.mrf.mxu0
        %v2789 = vadd.f32 %v2752, %v2788
        %2790 = vmatmul.f32.gmra.mxu0 %v2763
        %v2791 = vpop.f32.mrf.mxu0
        %v2792 = vadd.f32 %v2752, %v2791
        %2793 = vdwg.mxu0
        %v2794 = vadd.f32 %v1784, %v2783
        %v2795 = vadd.f32 %v1785, %v2786
        %v2796 = vadd.f32 %v1786, %v2789
        %v2797 = vadd.f32 %v1787, %v2792
        %v2798 = vld [vmem:[%s2 + $0xf] sm:$0x1]
        %v2799 = vld [vmem:[%s2 + $0x10] sm:$0x1]
        %v2800 = vsel %vm179, %v2794, 0.0
        %2801 = vadd.xlane.f32.xlu0 %v2800
        %v2802 = vpop.xlane.xlu0 %2801
        %v2803 = vsel %vm179, %v2795, 0.0
        %2804 = vadd.xlane.f32.xlu0 %v2803
        %v2805 = vpop.xlane.xlu0 %2804
        %v2806 = vsel %vm179, %v2796, 0.0
        %2807 = vadd.xlane.f32.xlu0 %v2806
        %v2808 = vpop.xlane.xlu0 %2807
        %v2809 = vsel %vm179, %v2797, 0.0
        %2810 = vadd.xlane.f32.xlu0 %v2809
        %v2811 = vpop.xlane.xlu0 %2810
        %v2812 = vmul.f32 %v2802, %v381
        %v2813 = vmul.f32 %v2805, %v381
        %v2814 = vmul.f32 %v2808, %v381
        %v2815 = vmul.f32 %v2811, %v381
        %v2816 = vsub.f32 %v2794, %v2812
        %v2817 = vsub.f32 %v2795, %v2813
        %v2818 = vsub.f32 %v2796, %v2814
        %v2819 = vsub.f32 %v2797, %v2815
        %v2820 = vmul.f32 %v2816, %v2816
        %v2821 = vmul.f32 %v2817, %v2817
        %v2822 = vmul.f32 %v2818, %v2818
        %v2823 = vmul.f32 %v2819, %v2819
        %v2824 = vsel %vm179, %v2820, 0.0
        %2825 = vadd.xlane.f32.xlu0 %v2824
        %v2826 = vpop.xlane.xlu0 %2825
        %v2827 = vsel %vm179, %v2821, 0.0
        %2828 = vadd.xlane.f32.xlu0 %v2827
        %v2829 = vpop.xlane.xlu0 %2828
        %v2830 = vsel %vm179, %v2822, 0.0
        %2831 = vadd.xlane.f32.xlu0 %v2830
        %v2832 = vpop.xlane.xlu0 %2831
        %v2833 = vsel %vm179, %v2823, 0.0
        %2834 = vadd.xlane.f32.xlu0 %v2833
        %v2835 = vpop.xlane.xlu0 %2834
        %v2836 = vmul.f32 %v2826, %v381
        %v2837 = vmul.f32 %v2829, %v381
        %v2838 = vmul.f32 %v2832, %v381
        %v2839 = vmul.f32 %v2835, %v381
        %v2840 = vadd.f32 %v2836, 1e-05
        %v2841 = vadd.f32 %v2837, 1e-05
        %v2842 = vadd.f32 %v2838, 1e-05
        %v2843 = vadd.f32 %v2839, 1e-05
        %v2844 = vrsqrt.pop %v2840
        %v2845 = vmul.f32 %v2844, %v2840
        %v2846 = vmul.f32 %v2845, %v2844
        %v2847 = vmul.f32 0.5, %v2846
        %v2848 = vsub.f32 1.5, %v2847
        %v2849 = vmul.f32 %v2844, %v2848
        %vm2850 = vweird.f32 %v2840
        %vm2851 = vweird.f32 %v2844
        %vm2852 = vmor %vm2850, %vm2851
        %v2853 = vsel %vm2852, %v2844, %v2849
        %v2854 = vrsqrt.pop %v2841
        %v2855 = vmul.f32 %v2854, %v2841
        %v2856 = vmul.f32 %v2855, %v2854
        %v2857 = vmul.f32 0.5, %v2856
        %v2858 = vsub.f32 1.5, %v2857
        %v2859 = vmul.f32 %v2854, %v2858
        %vm2860 = vweird.f32 %v2841
        %vm2861 = vweird.f32 %v2854
        %vm2862 = vmor %vm2860, %vm2861
        %v2863 = vsel %vm2862, %v2854, %v2859
        %v2864 = vrsqrt.pop %v2842
        %v2865 = vmul.f32 %v2864, %v2842
        %v2866 = vmul.f32 %v2865, %v2864
        %v2867 = vmul.f32 0.5, %v2866
        %v2868 = vsub.f32 1.5, %v2867
        %v2869 = vmul.f32 %v2864, %v2868
        %vm2870 = vweird.f32 %v2842
        %vm2871 = vweird.f32 %v2864
        %vm2872 = vmor %vm2870, %vm2871
        %v2873 = vsel %vm2872, %v2864, %v2869
        %v2874 = vrsqrt.pop %v2843
        %v2875 = vmul.f32 %v2874, %v2843
        %v2876 = vmul.f32 %v2875, %v2874
        %v2877 = vmul.f32 0.5, %v2876
        %v2878 = vsub.f32 1.5, %v2877
        %v2879 = vmul.f32 %v2874, %v2878
        %vm2880 = vweird.f32 %v2843
        %vm2881 = vweird.f32 %v2874
        %vm2882 = vmor %vm2880, %vm2881
        %v2883 = vsel %vm2882, %v2874, %v2879
        %v2884 = vmul.f32 %v2816, %v2853
        %v2885 = vmul.f32 %v2817, %v2863
        %v2886 = vmul.f32 %v2818, %v2873
        %v2887 = vmul.f32 %v2819, %v2883
        %v2888 = vperm.slane %v2798, 0
        %v2889 = vmul.f32 %v2884, %v2888
        %v2890 = vmul.f32 %v2885, %v2888
        %v2891 = vmul.f32 %v2886, %v2888
        %v2892 = vmul.f32 %v2887, %v2888
        %v2893 = vperm.slane %v2799, 0
        %v2894 = vadd.f32 %v2889, %v2893
        %v2895 = vadd.f32 %v2890, %v2893
        %v2896 = vadd.f32 %v2891, %v2893
        %v2897 = vadd.f32 %v2892, %v2893
        %v2898 = vld [vmem:[%s1 + $0xc0] sm:$0xff]
        %v2899 = vld [vmem:[%s1 + $0xc8] sm:$0xff]
        %v2900 = vld [vmem:[%s1 + $0xd0] sm:$0xff]
        %v2901 = vld [vmem:[%s1 + $0xd8] sm:$0xff]
        %v2902 = vld [vmem:[%s2 + $0xd] sm:$0x1]
        %v2903 = vperm.slane %v2902, 0
        %v2905 = vsel %vm179, %v2894, 0
        %v2908 = vsel %vm179, %v2895, 0
        %v2911 = vsel %vm179, %v2896, 0
        %v2914 = vsel %vm179, %v2897, 0
        %2916 = vmatpush.msra.mxu0 0.0
        %2917 = vmatpush.msra.mxu0 0.0
        %2918 = vmatpush.msra.mxu0 0.0
        %2919 = vmatpush.msra.mxu0 0.0
        %2920 = vmatpush.msra.mxu0 0.0
        %2921 = vmatpush.msra.mxu0 0.0
        %2922 = vmatpush.msra.mxu0 0.0
        %2923 = vmatpush.msra.mxu0 0.0
        %2924 = vmatpush.msra.mxu0 0.0
        %2925 = vmatpush.msra.mxu0 0.0
        %2926 = vmatpush.msra.mxu0 0.0
        %2927 = vmatpush.msra.mxu0 0.0
        %2928 = vmatpush.msra.mxu0 %v2901
        %2929 = vmatpush.msra.mxu0 %v2900
        %2930 = vmatpush.msra.mxu0 %v2899
        %2931 = vmatpush.msra.mxu0 %v2898
        %2932 = vmatmul.f32.gmra.mxu0 %v2905
        %v2933 = vpop.f32.mrf.mxu0
        %v2934 = vadd.f32 %v2903, %v2933
        %2935 = vmatmul.f32.gmra.mxu0 %v2908
        %v2936 = vpop.f32.mrf.mxu0
        %v2937 = vadd.f32 %v2903, %v2936
        %2938 = vmatmul.f32.gmra.mxu0 %v2911
        %v2939 = vpop.f32.mrf.mxu0
        %v2940 = vadd.f32 %v2903, %v2939
        %2941 = vmatmul.f32.gmra.mxu0 %v2914
        %v2942 = vpop.f32.mrf.mxu0
        %v2943 = vadd.f32 %v2903, %v2942
        %2944 = vdwg.mxu0
        %v2945 = vmax.f32 %v2934, 0.0
        %v2946 = vmax.f32 %v2937, 0.0
        %v2947 = vmax.f32 %v2940, 0.0
        %v2948 = vmax.f32 %v2943, 0.0
        %v2949 = vld [vmem:[%s1 + $0x120] sm:$0xff]
        %v2950 = vld [vmem:[%s1 + $0x128] sm:$0xff]
        %v2951 = vld [vmem:[%s1 + $0x130] sm:$0xff]
        %v2952 = vld [vmem:[%s1 + $0x138] sm:$0xff]
        %v2953 = vld [vmem:[%s1 + $0x140] sm:$0xff]
        %v2954 = vld [vmem:[%s1 + $0x148] sm:$0xff]
        %v2955 = vld [vmem:[%s1 + $0x150] sm:$0xff]
        %v2956 = vld [vmem:[%s1 + $0x158] sm:$0xff]
        %v2957 = vld [vmem:[%s2 + $0xe] sm:$0x1]
        %v2958 = vperm.slane %v2957, 0
        %v2960 = vsel %vm1642, %v2945, 0
        %v2963 = vsel %vm1642, %v2946, 0
        %v2966 = vsel %vm1642, %v2947, 0
        %v2969 = vsel %vm1642, %v2948, 0
        %2971 = vmatpush.msra.mxu0 0.0
        %2972 = vmatpush.msra.mxu0 0.0
        %2973 = vmatpush.msra.mxu0 0.0
        %2974 = vmatpush.msra.mxu0 0.0
        %2975 = vmatpush.msra.mxu0 0.0
        %2976 = vmatpush.msra.mxu0 0.0
        %2977 = vmatpush.msra.mxu0 0.0
        %2978 = vmatpush.msra.mxu0 0.0
        %2979 = vmatpush.msra.mxu0 %v2956
        %2980 = vmatpush.msra.mxu0 %v2955
        %2981 = vmatpush.msra.mxu0 %v2954
        %2982 = vmatpush.msra.mxu0 %v2953
        %2983 = vmatpush.msra.mxu0 %v2952
        %2984 = vmatpush.msra.mxu0 %v2951
        %2985 = vmatpush.msra.mxu0 %v2950
        %2986 = vmatpush.msra.mxu0 %v2949
        %2987 = vmatmul.f32.gmra.mxu0 %v2960
        %v2988 = vpop.f32.mrf.mxu0
        %v2989 = vadd.f32 %v2958, %v2988
        %2990 = vmatmul.f32.gmra.mxu0 %v2963
        %v2991 = vpop.f32.mrf.mxu0
        %v2992 = vadd.f32 %v2958, %v2991
        %2993 = vmatmul.f32.gmra.mxu0 %v2966
        %v2994 = vpop.f32.mrf.mxu0
        %v2995 = vadd.f32 %v2958, %v2994
        %2996 = vmatmul.f32.gmra.mxu0 %v2969
        %v2997 = vpop.f32.mrf.mxu0
        %v2998 = vadd.f32 %v2958, %v2997
        %2999 = vdwg.mxu0
        %v3000 = vadd.f32 %v2894, %v2989
        %v3001 = vadd.f32 %v2895, %v2992
        %v3002 = vadd.f32 %v2896, %v2995
        %v3003 = vadd.f32 %v2897, %v2998
        %v3004 = vld [vmem:[%s2 + $0x11] sm:$0x1]
        %v3005 = vld [vmem:[%s2 + $0x12] sm:$0x1]
        %v3006 = vsel %vm179, %v3000, 0.0
        %3007 = vadd.xlane.f32.xlu0 %v3006
        %v3008 = vpop.xlane.xlu0 %3007
        %v3009 = vsel %vm179, %v3001, 0.0
        %3010 = vadd.xlane.f32.xlu0 %v3009
        %v3011 = vpop.xlane.xlu0 %3010
        %v3012 = vsel %vm179, %v3002, 0.0
        %3013 = vadd.xlane.f32.xlu0 %v3012
        %v3014 = vpop.xlane.xlu0 %3013
        %v3015 = vsel %vm179, %v3003, 0.0
        %3016 = vadd.xlane.f32.xlu0 %v3015
        %v3017 = vpop.xlane.xlu0 %3016
        %v3018 = vmul.f32 %v3008, %v381
        %v3019 = vmul.f32 %v3011, %v381
        %v3020 = vmul.f32 %v3014, %v381
        %v3021 = vmul.f32 %v3017, %v381
        %v3022 = vsub.f32 %v3000, %v3018
        %v3023 = vsub.f32 %v3001, %v3019
        %v3024 = vsub.f32 %v3002, %v3020
        %v3025 = vsub.f32 %v3003, %v3021
        %v3026 = vmul.f32 %v3022, %v3022
        %v3027 = vmul.f32 %v3023, %v3023
        %v3028 = vmul.f32 %v3024, %v3024
        %v3029 = vmul.f32 %v3025, %v3025
        %v3030 = vsel %vm179, %v3026, 0.0
        %3031 = vadd.xlane.f32.xlu0 %v3030
        %v3032 = vpop.xlane.xlu0 %3031
        %v3033 = vsel %vm179, %v3027, 0.0
        %3034 = vadd.xlane.f32.xlu0 %v3033
        %v3035 = vpop.xlane.xlu0 %3034
        %v3036 = vsel %vm179, %v3028, 0.0
        %3037 = vadd.xlane.f32.xlu0 %v3036
        %v3038 = vpop.xlane.xlu0 %3037
        %v3039 = vsel %vm179, %v3029, 0.0
        %3040 = vadd.xlane.f32.xlu0 %v3039
        %v3041 = vpop.xlane.xlu0 %3040
        %v3042 = vmul.f32 %v3032, %v381
        %v3043 = vmul.f32 %v3035, %v381
        %v3044 = vmul.f32 %v3038, %v381
        %v3045 = vmul.f32 %v3041, %v381
        %v3046 = vadd.f32 %v3042, 1e-05
        %v3047 = vadd.f32 %v3043, 1e-05
        %v3048 = vadd.f32 %v3044, 1e-05
        %v3049 = vadd.f32 %v3045, 1e-05
        %v3050 = vrsqrt.pop %v3046
        %v3051 = vmul.f32 %v3050, %v3046
        %v3052 = vmul.f32 %v3051, %v3050
        %v3053 = vmul.f32 0.5, %v3052
        %v3054 = vsub.f32 1.5, %v3053
        %v3055 = vmul.f32 %v3050, %v3054
        %vm3056 = vweird.f32 %v3046
        %vm3057 = vweird.f32 %v3050
        %vm3058 = vmor %vm3056, %vm3057
        %v3059 = vsel %vm3058, %v3050, %v3055
        %v3060 = vrsqrt.pop %v3047
        %v3061 = vmul.f32 %v3060, %v3047
        %v3062 = vmul.f32 %v3061, %v3060
        %v3063 = vmul.f32 0.5, %v3062
        %v3064 = vsub.f32 1.5, %v3063
        %v3065 = vmul.f32 %v3060, %v3064
        %vm3066 = vweird.f32 %v3047
        %vm3067 = vweird.f32 %v3060
        %vm3068 = vmor %vm3066, %vm3067
        %v3069 = vsel %vm3068, %v3060, %v3065
        %v3070 = vrsqrt.pop %v3048
        %v3071 = vmul.f32 %v3070, %v3048
        %v3072 = vmul.f32 %v3071, %v3070
        %v3073 = vmul.f32 0.5, %v3072
        %v3074 = vsub.f32 1.5, %v3073
        %v3075 = vmul.f32 %v3070, %v3074
        %vm3076 = vweird.f32 %v3048
        %vm3077 = vweird.f32 %v3070
        %vm3078 = vmor %vm3076, %vm3077
        %v3079 = vsel %vm3078, %v3070, %v3075
        %v3080 = vrsqrt.pop %v3049
        %v3081 = vmul.f32 %v3080, %v3049
        %v3082 = vmul.f32 %v3081, %v3080
        %v3083 = vmul.f32 0.5, %v3082
        %v3084 = vsub.f32 1.5, %v3083
        %v3085 = vmul.f32 %v3080, %v3084
        %vm3086 = vweird.f32 %v3049
        %vm3087 = vweird.f32 %v3080
        %vm3088 = vmor %vm3086, %vm3087
        %v3089 = vsel %vm3088, %v3080, %v3085
        %v3090 = vmul.f32 %v3022, %v3059
        %v3091 = vmul.f32 %v3023, %v3069
        %v3092 = vmul.f32 %v3024, %v3079
        %v3093 = vmul.f32 %v3025, %v3089
        %v3094 = vperm.slane %v3004, 0
        %v3095 = vmul.f32 %v3090, %v3094
        %v3096 = vmul.f32 %v3091, %v3094
        %v3097 = vmul.f32 %v3092, %v3094
        %v3098 = vmul.f32 %v3093, %v3094
        %v3099 = vperm.slane %v3005, 0
        %v3100 = vadd.f32 %v3095, %v3099
        %v3101 = vadd.f32 %v3096, %v3099
        %v3102 = vadd.f32 %v3097, %v3099
        %v3103 = vadd.f32 %v3098, %v3099
        %v3104 = vld [vmem:[%s1 + $0x160] sm:$0xff]
        %v3105 = vld [vmem:[%s1 + $0x168] sm:$0xff]
        %v3106 = vld [vmem:[%s1 + $0x170] sm:$0xff]
        %v3107 = vld [vmem:[%s1 + $0x178] sm:$0xff]
        %v3108 = vld [vmem:[%s2 + $0x13] sm:$0x1]
        %v3109 = vperm.slane %v3108, 0
        %v3111 = vsel %vm179, %v3100, 0
        %v3114 = vsel %vm179, %v3101, 0
        %v3117 = vsel %vm179, %v3102, 0
        %v3120 = vsel %vm179, %v3103, 0
        %3122 = vmatpush.msra.mxu0 0.0
        %3123 = vmatpush.msra.mxu0 0.0
        %3124 = vmatpush.msra.mxu0 0.0
        %3125 = vmatpush.msra.mxu0 0.0
        %3126 = vmatpush.msra.mxu0 0.0
        %3127 = vmatpush.msra.mxu0 0.0
        %3128 = vmatpush.msra.mxu0 0.0
        %3129 = vmatpush.msra.mxu0 0.0
        %3130 = vmatpush.msra.mxu0 0.0
        %3131 = vmatpush.msra.mxu0 0.0
        %3132 = vmatpush.msra.mxu0 0.0
        %3133 = vmatpush.msra.mxu0 0.0
        %3134 = vmatpush.msra.mxu0 %v3107
        %3135 = vmatpush.msra.mxu0 %v3106
        %3136 = vmatpush.msra.mxu0 %v3105
        %3137 = vmatpush.msra.mxu0 %v3104
        %3138 = vmatmul.f32.gmra.mxu0 %v3111
        %v3139 = vpop.f32.mrf.mxu0
        %v3140 = vadd.f32 %v3109, %v3139
        %3141 = vmatmul.f32.gmra.mxu0 %v3114
        %v3142 = vpop.f32.mrf.mxu0
        %v3143 = vadd.f32 %v3109, %v3142
        %3144 = vmatmul.f32.gmra.mxu0 %v3117
        %v3145 = vpop.f32.mrf.mxu0
        %v3146 = vadd.f32 %v3109, %v3145
        %3147 = vmatmul.f32.gmra.mxu0 %v3120
        %v3148 = vpop.f32.mrf.mxu0
        %v3149 = vadd.f32 %v3109, %v3148
        %3150 = vdwg.mxu0
        %3151 = vrot.lane.b32.xlu0 %v169, 96
        %v3152 = vpop.permute.xlu0 %3151
        %3153 = vrot.lane.b32.xlu0 %v170, 96
        %v3154 = vpop.permute.xlu0 %3153
        %3155 = vrot.lane.b32.xlu0 %v171, 96
        %v3156 = vpop.permute.xlu0 %3155
        %3157 = vrot.lane.b32.xlu0 %v172, 96
        %v3158 = vpop.permute.xlu0 %3157
        %v3163 = vsel %vm179, %v3152, 0
        %v3165 = vsel %vm179, %v3154, 0
        %v3167 = vsel %vm179, %v3156, 0
        %v3169 = vsel %vm179, %v3158, 0
        %3171 = vmatpush.msra.mxu0 0.0
        %3172 = vmatpush.msra.mxu0 0.0
        %3173 = vmatpush.msra.mxu0 0.0
        %3174 = vmatpush.msra.mxu0 0.0
        %3175 = vmatpush.msra.mxu0 0.0
        %3176 = vmatpush.msra.mxu0 0.0
        %3177 = vmatpush.msra.mxu0 0.0
        %3178 = vmatpush.msra.mxu0 0.0
        %3179 = vmatpush.msra.mxu0 0.0
        %3180 = vmatpush.msra.mxu0 0.0
        %3181 = vmatpush.msra.mxu0 0.0
        %3182 = vmatpush.msra.mxu0 0.0
        %3183 = vmatpush.msra.mxu0 %v3158
        %3184 = vmatpush.msra.mxu0 %v3156
        %3185 = vmatpush.msra.mxu0 %v3154
        %3186 = vmatpush.msra.mxu0 %v3152
        %3187 = vmatmul.f32.gmra.mxu0 %v3163
        %v3188 = vpop.f32.mrf.mxu0
        %v3189 = vadd.f32 0.0, %v3188
        %3190 = vmatmul.f32.gmra.mxu0 %v3165
        %v3191 = vpop.f32.mrf.mxu0
        %v3192 = vadd.f32 0.0, %v3191
        %3193 = vmatmul.f32.gmra.mxu0 %v3167
        %v3194 = vpop.f32.mrf.mxu0
        %v3195 = vadd.f32 0.0, %v3194
        %3196 = vmatmul.f32.gmra.mxu0 %v3169
        %v3197 = vpop.f32.mrf.mxu0
        %v3198 = vadd.f32 0.0, %v3197
        %3199 = vdwg.mxu0
        %v3200 = vsel %vm179, %v3152, 0.0
        %3201 = vadd.xlane.f32.xlu0 %v3200
        %v3202 = vpop.xlane.xlu0 %3201
        %v3203 = vsel %vm179, %v3154, 0.0
        %3204 = vadd.xlane.f32.xlu0 %v3203
        %v3205 = vpop.xlane.xlu0 %3204
        %v3206 = vsel %vm179, %v3156, 0.0
        %3207 = vadd.xlane.f32.xlu0 %v3206
        %v3208 = vpop.xlane.xlu0 %3207
        %v3209 = vsel %vm179, %v3158, 0.0
        %3210 = vadd.xlane.f32.xlu0 %v3209
        %v3211 = vpop.xlane.xlu0 %3210
        %vm3212 = vcmask 523520
        %v3213 = vsel %vm3212, %v169, 0.0
        %v3214 = vsel %vm3212, %v170, 0.0
        %v3215 = vadd.f32 %v3213, %v3214
        %v3216 = vsel %vm3212, %v171, 0.0
        %v3217 = vadd.f32 %v3215, %v3216
        %v3218 = vsel %vm3212, %v172, 0.0
        %v3219 = vadd.f32 %v3217, %v3218
        %v3220 = vrot.slane %v3219, 4
        %v3221 = vadd.f32 %v3219, %v3220
        %v3222 = vrot.slane %v3221, 2
        %v3223 = vadd.f32 %v3221, %v3222
        %v3224 = vrot.slane %v3223, 1
        %v3225 = vadd.f32 %v3223, %v3224
        %v3226 = vadd.f32 %v3202, %v3225
        %v3227 = vadd.f32 %v3205, %v3225
        %v3228 = vadd.f32 %v3208, %v3225
        %v3229 = vadd.f32 %v3211, %v3225
        %3234 = vrot.lane.b32.xlu0 %v3189, 32
        %v3235 = vpop.permute.xlu0 %3234
        %3236 = vrot.lane.b32.xlu0 %v3192, 32
        %v3237 = vpop.permute.xlu0 %3236
        %3238 = vrot.lane.b32.xlu0 %v3195, 32
        %v3239 = vpop.permute.xlu0 %3238
        %3240 = vrot.lane.b32.xlu0 %v3198, 32
        %v3241 = vpop.permute.xlu0 %3240
        %v3246 = vsub.f32 %v3226, %v3235
        %v3247 = vsub.f32 %v3227, %v3237
        %v3248 = vsub.f32 %v3228, %v3239
        %v3249 = vsub.f32 %v3229, %v3241
        %v3250 = vadd.f32 %v3246, 1e-06
        %v3251 = vadd.f32 %v3247, 1e-06
        %v3252 = vadd.f32 %v3248, 1e-06
        %v3253 = vadd.f32 %v3249, 1e-06
        %3258 = vrot.lane.b32.xlu0 %v3250, 96
        %v3259 = vpop.permute.xlu0 %3258
        %3260 = vrot.lane.b32.xlu0 %v3251, 96
        %v3261 = vpop.permute.xlu0 %3260
        %3262 = vrot.lane.b32.xlu0 %v3252, 96
        %v3263 = vpop.permute.xlu0 %3262
        %3264 = vrot.lane.b32.xlu0 %v3253, 96
        %v3265 = vpop.permute.xlu0 %3264
        %v3270 = vrcp.pop %v3259
        %v3271 = vmul.f32 %v3259, %v3270
        %v3272 = vsub.f32 1.0, %v3271
        %v3273 = vmul.f32 %v3270, %v3272
        %v3274 = vadd.f32 %v3270, %v3273
        %vm3275 = vweird.f32 %v3259
        %vm3276 = vweird.f32 %v3270
        %vm3277 = vmor %vm3275, %vm3276
        %v3278 = vsel %vm3277, %v3270, %v3274
        %v3279 = vand.u32 2147483647, %v3259
        %vm3280 = vcmp.eq.f32.partialorder %v3279, 8.507059e+37
        %v3281 = vand.u32 %v3259, 2147483648
        %v3282 = vor.u32 1.1754944e-38, %v3281
        %v3283 = vsel %vm3280, %v3282, %v3278
        %v3284 = vmul.f32 %v3189, %v3283
        %v3285 = vrcp.pop %v3261
        %v3286 = vmul.f32 %v3261, %v3285
        %v3287 = vsub.f32 1.0, %v3286
        %v3288 = vmul.f32 %v3285, %v3287
        %v3289 = vadd.f32 %v3285, %v3288
        %vm3290 = vweird.f32 %v3261
        %vm3291 = vweird.f32 %v3285
        %vm3292 = vmor %vm3290, %vm3291
        %v3293 = vsel %vm3292, %v3285, %v3289
        %v3294 = vand.u32 2147483647, %v3261
        %vm3295 = vcmp.eq.f32.partialorder %v3294, 8.507059e+37
        %v3296 = vand.u32 %v3261, 2147483648
        %v3297 = vor.u32 1.1754944e-38, %v3296
        %v3298 = vsel %vm3295, %v3297, %v3293
        %v3299 = vmul.f32 %v3192, %v3298
        %v3300 = vrcp.pop %v3263
        %v3301 = vmul.f32 %v3263, %v3300
        %v3302 = vsub.f32 1.0, %v3301
        %v3303 = vmul.f32 %v3300, %v3302
        %v3304 = vadd.f32 %v3300, %v3303
        %vm3305 = vweird.f32 %v3263
        %vm3306 = vweird.f32 %v3300
        %vm3307 = vmor %vm3305, %vm3306
        %v3308 = vsel %vm3307, %v3300, %v3304
        %v3309 = vand.u32 2147483647, %v3263
        %vm3310 = vcmp.eq.f32.partialorder %v3309, 8.507059e+37
        %v3311 = vand.u32 %v3263, 2147483648
        %v3312 = vor.u32 1.1754944e-38, %v3311
        %v3313 = vsel %vm3310, %v3312, %v3308
        %v3314 = vmul.f32 %v3195, %v3313
        %v3315 = vrcp.pop %v3265
        %v3316 = vmul.f32 %v3265, %v3315
        %v3317 = vsub.f32 1.0, %v3316
        %v3318 = vmul.f32 %v3315, %v3317
        %v3319 = vadd.f32 %v3315, %v3318
        %vm3320 = vweird.f32 %v3265
        %vm3321 = vweird.f32 %v3315
        %vm3322 = vmor %vm3320, %vm3321
        %v3323 = vsel %vm3322, %v3315, %v3319
        %v3324 = vand.u32 2147483647, %v3265
        %vm3325 = vcmp.eq.f32.partialorder %v3324, 8.507059e+37
        %v3326 = vand.u32 %v3265, 2147483648
        %v3327 = vor.u32 1.1754944e-38, %v3326
        %v3328 = vsel %vm3325, %v3327, %v3323
        %v3329 = vmul.f32 %v3198, %v3328
        %v3331 = vsel %vm179, %v3284, 0
        %v3334 = vsel %vm179, %v3299, 0
        %v3337 = vsel %vm179, %v3314, 0
        %v3340 = vsel %vm179, %v3329, 0
        %3342 = vmatpush.msra.mxu0 0.0
        %3343 = vmatpush.msra.mxu0 0.0
        %3344 = vmatpush.msra.mxu0 0.0
        %3345 = vmatpush.msra.mxu0 0.0
        %3346 = vmatpush.msra.mxu0 0.0
        %3347 = vmatpush.msra.mxu0 0.0
        %3348 = vmatpush.msra.mxu0 0.0
        %3349 = vmatpush.msra.mxu0 0.0
        %3350 = vmatpush.msra.mxu0 0.0
        %3351 = vmatpush.msra.mxu0 0.0
        %3352 = vmatpush.msra.mxu0 0.0
        %3353 = vmatpush.msra.mxu0 0.0
        %3354 = vmatpush.msra.mxu0 %v172
        %3355 = vmatpush.msra.mxu0 %v171
        %3356 = vmatpush.msra.mxu0 %v170
        %3357 = vmatpush.msra.mxu0 %v169
        %3358 = vmatmul.f32.gmra.mxu0 %v3331
        %v3359 = vpop.f32.mrf.mxu0
        %v3360 = vadd.f32 0.0, %v3359
        %3361 = vmatmul.f32.gmra.mxu0 %v3334
        %v3362 = vpop.f32.mrf.mxu0
        %v3363 = vadd.f32 0.0, %v3362
        %3364 = vmatmul.f32.gmra.mxu0 %v3337
        %v3365 = vpop.f32.mrf.mxu0
        %v3366 = vadd.f32 0.0, %v3365
        %3367 = vmatmul.f32.gmra.mxu0 %v3340
        %v3368 = vpop.f32.mrf.mxu0
        %v3369 = vadd.f32 0.0, %v3368
        %3370 = vdwg.mxu0
        %3371 = vrot.lane.b32.xlu0 %v169, 64
        %v3372 = vpop.permute.xlu0 %3371
        %3373 = vrot.lane.b32.xlu0 %v170, 64
        %v3374 = vpop.permute.xlu0 %3373
        %3375 = vrot.lane.b32.xlu0 %v171, 64
        %v3376 = vpop.permute.xlu0 %3375
        %3377 = vrot.lane.b32.xlu0 %v172, 64
        %v3378 = vpop.permute.xlu0 %3377
        %v3379 = vsel %vm179, %v3372, 0
        %v3381 = vsel %vm179, %v3374, 0
        %v3383 = vsel %vm179, %v3376, 0
        %v3385 = vsel %vm179, %v3378, 0
        %3387 = vmatpush.msra.mxu0 0.0
        %3388 = vmatpush.msra.mxu0 0.0
        %3389 = vmatpush.msra.mxu0 0.0
        %3390 = vmatpush.msra.mxu0 0.0
        %3391 = vmatpush.msra.mxu0 0.0
        %3392 = vmatpush.msra.mxu0 0.0
        %3393 = vmatpush.msra.mxu0 0.0
        %3394 = vmatpush.msra.mxu0 0.0
        %3395 = vmatpush.msra.mxu0 0.0
        %3396 = vmatpush.msra.mxu0 0.0
        %3397 = vmatpush.msra.mxu0 0.0
        %3398 = vmatpush.msra.mxu0 0.0
        %3399 = vmatpush.msra.mxu0 %v172
        %3400 = vmatpush.msra.mxu0 %v171
        %3401 = vmatpush.msra.mxu0 %v170
        %3402 = vmatpush.msra.mxu0 %v169
        %3403 = vmatmul.f32.gmra.mxu0 %v3379
        %v3404 = vpop.f32.mrf.mxu0
        %v3405 = vadd.f32 0.0, %v3404
        %3406 = vmatmul.f32.gmra.mxu0 %v3381
        %v3407 = vpop.f32.mrf.mxu0
        %v3408 = vadd.f32 0.0, %v3407
        %3409 = vmatmul.f32.gmra.mxu0 %v3383
        %v3410 = vpop.f32.mrf.mxu0
        %v3411 = vadd.f32 0.0, %v3410
        %3412 = vmatmul.f32.gmra.mxu0 %v3385
        %v3413 = vpop.f32.mrf.mxu0
        %v3414 = vadd.f32 0.0, %v3413
        %3415 = vdwg.mxu0
        %3416 = vmatpush.msra.mxu0 0.0
        %3417 = vmatpush.msra.mxu0 0.0
        %3418 = vmatpush.msra.mxu0 0.0
        %3419 = vmatpush.msra.mxu0 0.0
        %3420 = vmatpush.msra.mxu0 0.0
        %3421 = vmatpush.msra.mxu0 0.0
        %3422 = vmatpush.msra.mxu0 0.0
        %3423 = vmatpush.msra.mxu0 0.0
        %3424 = vmatpush.msra.mxu0 0.0
        %3425 = vmatpush.msra.mxu0 0.0
        %3426 = vmatpush.msra.mxu0 0.0
        %3427 = vmatpush.msra.mxu0 0.0
        %3428 = vmatpush.msra.mxu0 %v172
        %3429 = vmatpush.msra.mxu0 %v171
        %3430 = vmatpush.msra.mxu0 %v170
        %3431 = vmatpush.msra.mxu0 %v169
        %3432 = vmatmul.f32.gmra.mxu0 %v3163
        %v3433 = vpop.f32.mrf.mxu0
        %v3434 = vadd.f32 %v3360, %v3433
        %3435 = vmatmul.f32.gmra.mxu0 %v3165
        %v3436 = vpop.f32.mrf.mxu0
        %v3437 = vadd.f32 %v3363, %v3436
        %3438 = vmatmul.f32.gmra.mxu0 %v3167
        %v3439 = vpop.f32.mrf.mxu0
        %v3440 = vadd.f32 %v3366, %v3439
        %3441 = vmatmul.f32.gmra.mxu0 %v3169
        %v3442 = vpop.f32.mrf.mxu0
        %v3443 = vadd.f32 %v3369, %v3442
        %3444 = vdwg.mxu0
        %v3445 = vadd.f32 %v3434, %v3405
        %v3446 = vadd.f32 %v3437, %v3408
        %v3447 = vadd.f32 %v3440, %v3411
        %v3448 = vadd.f32 %v3443, %v3414
        %v3449 = vadd.f32 %v3140, %v3445
        %v3450 = vadd.f32 %v3143, %v3446
        %v3451 = vadd.f32 %v3146, %v3447
        %v3452 = vadd.f32 %v3149, %v3448
        %v3453 = vmax.f32 %v3449, 0.0
        %v3454 = vmax.f32 %v3450, 0.0
        %v3455 = vmax.f32 %v3451, 0.0
        %v3456 = vmax.f32 %v3452, 0.0
        %3457 = vst.msk [vmem:[%s163] sm:$0xff] %vm179, %v3453
        %3458 = vst.msk [vmem:[%s163 + $0x8] sm:$0xff] %vm179, %v3454
        %3459 = vst.msk [vmem:[%s163 + $0x10] sm:$0xff] %vm179, %v3455
        %3460 = vst.msk [vmem:[%s163 + $0x18] sm:$0xff] %vm179, %v3456
        %s3461 = sand.u32 %s93, 1
        %s3462 = scalar_lea.sflag [#allocation3], %s3461
        %s3463 = sand.u32 %s93, 1
        %s3464 = smul.addr %s3463, 32
        %s3465 = scalar_lea.vmem [#allocation2], %s3464
        // Predicated region
        $region33: #{graph_transformer_v2.1} parent=31 // pred_check
          %p3466 = pneg %p103
        $region34: #{graph_transformer_v2.1} parent=31 // pred_check_branch
          %3468 = sbr.rel (%p3466) target = $region36
        $region35: #{graph_transformer_v2.1} parent=31 // pred_region
          %3470 = vsyncadd %s3462, 0
          %s3471 = smul.addr %s17, 4
          %s3472 = smul.addr %s3471, 8
          %s3473 = scalar_lea.hbm %s3, %s3472
          %s3474 = sshll.u32 %s3465, 4
          %s3475 = int_to_ptr.vmem [resolvable:$true] %s3474
          %s3476 = sshll.u32 %s3473, 4
          %s3477 = int_to_ptr.hbm [resolvable:$true] %s3476
          %3482 = dma.vmem_to_hbm [thread:$0]  %s3475, 512, %s3477, %s3462, 128, 128, 8
        $region36: #{graph_transformer_v2.1} parent=31 // pred_fallthru
          _
      $region32: #{graph_transformer_v2.1} parent=5 // pred_fallthru
        _
      %p3483 = scmp.le.s32.totalorder 2, %s12
      // Predicated region
      $region37: #{graph_transformer_v2.1} parent=5 // pred_check
        %p3484 = pneg %p3483
      $region38: #{graph_transformer_v2.1} parent=5 // pred_check_branch
        %3486 = sbr.rel (%p3484) target = $region40
      $region39: #{graph_transformer_v2.1} parent=5 // pred_region
        %s3487 = ssub.s32 %s12, 2
        // Predicated region
        $region41: #{graph_transformer_v2.1} parent=39 // pred_check
          %p3488 = pneg %p109
        $region42: #{graph_transformer_v2.1} parent=39 // pred_check_branch
          %3490 = sbr.rel (%p3488) target = $region44
        $region43: #{graph_transformer_v2.1} parent=39 // pred_region
          %s3491 = sand.u32 %s94, 1
          %s3492 = scalar_lea.sflag [#allocation3], %s3491
          %s3493 = sand.u32 %s94, 1
          %s3494 = smul.addr %s3493, 32
          %s3495 = scalar_lea.vmem [#allocation2], %s3494
          %3497 = dma.done %s3492, 512
        $region44: #{graph_transformer_v2.1} parent=39 // pred_fallthru
          _
      $region40: #{graph_transformer_v2.1} parent=5 // pred_fallthru
        _
    $region6: #{graph_transformer_v2.1} parent=1 // loop_footer
      %s16 = sadd.s32 1, %s12
    $region7: #{graph_transformer_v2.1} parent=1 // loop_footer_branch
      %11 = sbr.rel target = $region3
    $region8: #{graph_transformer_v2.1} parent=1 // loop_exit
      _
    %3498 = vsyncpa [#allocation3], 1
    %s3499 = scalar_lea.sflag [#allocation3], 1
    %3500 = vsyncpa %s3499, 1

</llo_original>
